<compile_context>
chip_gen: v7x
topology: tpu7x:2x2x1
jax: 0.10.0
libtpu: 0.0.40
codegen_flags: <defaults>
</compile_context>

<pallas_src>
import functools
import math
from typing import NamedTuple

import jax
import jax.numpy as jnp
from jax.experimental import pallas as pl
from jax.experimental.pallas import tpu as pltpu

_PREC = jax.lax.Precision.HIGHEST          # reference path only
_SQRT_2_OVER_PI = math.sqrt(2.0 / math.pi)


class BertConfig(NamedTuple):
    vocab_size: int = 128
    max_position: int = 64
    type_vocab: int = 2
    hidden: int = 128         # multiple of 128 -> lane dense
    num_heads: int = 2        # head_dim = 64
    intermediate: int = 512   # multiple of 128 -> lane dense
    num_layers: int = 2


# ----------------------------------------------------------------------------
# shared math (used by both the Pallas kernel and the pure-JAX reference)
# ----------------------------------------------------------------------------
def _gelu(x):
    # tanh-approx GELU (BERT "gelu_new") -> lowers to EUP tanh on TPU.
    return 0.5 * x * (1.0 + jnp.tanh(_SQRT_2_OVER_PI * (x + 0.044715 * x * x * x)))


def _ln(x, gamma, beta, eps=1e-12):
    mu = jnp.mean(x, axis=-1, keepdims=True)
    var = jnp.mean(jnp.square(x - mu), axis=-1, keepdims=True)
    return (x - mu) * jax.lax.rsqrt(var + eps) * gamma + beta


# ----------------------------------------------------------------------------
# fused Pallas kernel: embedding LN + one encoder layer per grid step
# ----------------------------------------------------------------------------
def _make_fused_encoder_kernel(num_heads, head_dim, eps=1e-12):
    scale = 1.0 / math.sqrt(head_dim)

    def kernel(xemb_ref, mask_ref, embg_ref, embb_ref,
               wq_ref, bq_ref, wk_ref, bk_ref, wv_ref, bv_ref,
               wo_ref, bo_ref, ln1g_ref, ln1b_ref,
               w1_ref, b1_ref, w2_ref, b2_ref, ln2g_ref, ln2b_ref,
               out_ref):
        layer = pl.program_id(1)

        # Layer 0 seeds the resident activation (the output block, which keeps
        # the same block index across the "arbitrary" layer axis) with the
        # embedding LayerNorm.
        @pl.when(layer == 0)
        def _():
            out_ref[0] = _ln(xemb_ref[0], embg_ref[...], embb_ref[...], eps=eps)

        x = out_ref[0]                     # [S, H] f32, resident across layers
        xb = x.astype(jnp.bfloat16)        # bf16 MXU operands, f32 accumulate
        mask = mask_ref[0]                 # [1, S] additive key mask (0/-1e4)

        # ---- per-head masked softmax attention ---------------------------
        # output projection accumulated per head:
        #   concat_h(ctx_h) @ Wo == sum_h ctx_h @ Wo_h
        attn = bo_ref[0]                                   # [1, H] broadcast
        for h in range(num_heads):                         # static unroll
            q = jnp.dot(xb, wq_ref[0, h],
                        preferred_element_type=jnp.float32) + bq_ref[0, h]
            k = jnp.dot(xb, wk_ref[0, h],
                        preferred_element_type=jnp.float32) + bk_ref[0, h]
            v = jnp.dot(xb, wv_ref[0, h],
                        preferred_element_type=jnp.float32) + bv_ref[0, h]
            s = jax.lax.dot_general(
                q.astype(jnp.bfloat16), k.astype(jnp.bfloat16),
                (((1,), (1,)), ((), ())),
                preferred_element_type=jnp.float32) * scale + mask   # [S, S]
            s = s - jnp.max(s, axis=-1, keepdims=True)
            p = jnp.exp(s)
            p = p * pl.reciprocal(jnp.sum(p, axis=-1, keepdims=True), approx=True)
            ctx = jnp.dot(p.astype(jnp.bfloat16), v.astype(jnp.bfloat16),
                          preferred_element_type=jnp.float32)        # [S, hd]
            attn = attn + jnp.dot(ctx.astype(jnp.bfloat16), wo_ref[0, h],
                                  preferred_element_type=jnp.float32)

        # ---- residual + LayerNorm ----------------------------------------
        h1 = _ln(x + attn, ln1g_ref[0], ln1b_ref[0], eps=eps)

        # ---- FFN (GELU) + residual + LayerNorm ---------------------------
        ff = _gelu(jnp.dot(h1.astype(jnp.bfloat16), w1_ref[0],
                           preferred_element_type=jnp.float32) + b1_ref[0])
        ff = jnp.dot(ff.astype(jnp.bfloat16), w2_ref[0],
                     preferred_element_type=jnp.float32) + b2_ref[0]

        out_ref[0] = _ln(h1 + ff, ln2g_ref[0], ln2b_ref[0], eps=eps)

    return kernel


def pack_layer_params(layer_params, cfg):
    """Stack per-layer params along a leading layer axis; reshape per-head;
    cast matmul weights to bf16 (free layout plumbing in the wrapper)."""
    L = len(layer_params)
    H, nh = cfg.hidden, cfg.num_heads
    hd = H // nh

    def stk(i):
        return jnp.stack([lp[i] for lp in layer_params], axis=0)

    wq = stk(0).reshape(L, H, nh, hd).transpose(0, 2, 1, 3).astype(jnp.bfloat16)
    bq = stk(1).reshape(L, nh, 1, hd)
    wk = stk(2).reshape(L, H, nh, hd).transpose(0, 2, 1, 3).astype(jnp.bfloat16)
    bk = stk(3).reshape(L, nh, 1, hd)
    wv = stk(4).reshape(L, H, nh, hd).transpose(0, 2, 1, 3).astype(jnp.bfloat16)
    bv = stk(5).reshape(L, nh, 1, hd)
    wo = stk(6).reshape(L, nh, hd, H).astype(jnp.bfloat16)
    bo = stk(7).reshape(L, 1, H)
    ln1g, ln1b = stk(8), stk(9)                  # [L, 1, H]
    w1 = stk(10).astype(jnp.bfloat16)            # [L, H, I]
    b1 = stk(11)                                 # [L, 1, I]
    w2 = stk(12).astype(jnp.bfloat16)            # [L, I, H]
    b2 = stk(13)                                 # [L, 1, H]
    ln2g, ln2b = stk(14), stk(15)
    return (wq, bq, wk, bk, wv, bv, wo, bo, ln1g, ln1b,
            w1, b1, w2, b2, ln2g, ln2b)


# ----------------------------------------------------------------------------
# full forward (Pallas path)
# ----------------------------------------------------------------------------
def bert_cls_forward(input_ids, attention_mask, token_type_ids, params, cfg):
    emb_params, layer_params = params
    word_emb, pos_emb, type_emb, emb_ln_g, emb_ln_b = emb_params
    B, S = input_ids.shape
    H, I, nh = cfg.hidden, cfg.intermediate, cfg.num_heads
    hd = H // nh
    L = cfg.num_layers

    # Embedding lookups (gather) stay as XLA indexing in the wrapper.
    # TODO(synk): replace with a scalar-prefetch DMA-gather Pallas kernel.
    x_emb = (word_emb[input_ids] + pos_emb[:S][None, :, :]
             + type_emb[token_type_ids]).astype(jnp.float32)

    # Additive attention mask, BERT-style: 0 for valid keys, -10000 for padding.
    mask_add = ((1.0 - attention_mask.astype(jnp.float32)) * -10000.0
                ).reshape(B, 1, S)

    packed = pack_layer_params(layer_params, cfg)

    kernel = _make_fused_encoder_kernel(nh, hd)

    def batch_spec(arr):
        n_trail = arr.ndim - 1
        def imap(b, l):
            return (b,) + (0,) * n_trail
        return pl.BlockSpec((1,) + arr.shape[1:], imap)

    def layer_spec(arr):
        n_trail = arr.ndim - 1
        def imap(b, l):
            return (l,) + (0,) * n_trail
        return pl.BlockSpec((1,) + arr.shape[1:], imap)

    def const_spec(arr):
        nd = arr.ndim
        def imap(b, l):
            return (0,) * nd
        return pl.BlockSpec(arr.shape, imap)

    in_specs = ([batch_spec(x_emb), batch_spec(mask_add),
                 const_spec(emb_ln_g), const_spec(emb_ln_b)]
                + [layer_spec(p) for p in packed])

    matmul_flops = B * L * (2 * S * H * H * 4          # QKV + output proj
                            + 2 * nh * S * S * hd * 2  # scores + context
                            + 2 * S * H * I * 2)       # FFN
    transcendentals = B * L * (nh * S * S + S * I)     # softmax exp + gelu tanh
    bytes_accessed = (4 * (2 * B * S * H + B * S)      # activations + mask
                      + 2 * L * (4 * H * H + 2 * H * I)   # bf16 weights
                      + 4 * (L * (9 * H + I) + 2 * H))    # f32 biases / LN
    cost = pl.CostEstimate(flops=int(matmul_flops),
                           transcendentals=int(transcendentals),
                           bytes_accessed=int(bytes_accessed))

    out = pl.pallas_call(
        kernel,
        out_shape=jax.ShapeDtypeStruct((B, S, H), jnp.float32),
        grid=(B, L),                              # layer axis innermost
        in_specs=in_specs,
        out_specs=pl.BlockSpec((1, S, H), lambda b, l: (b, 0, 0)),
        compiler_params=pltpu.CompilerParams(
            dimension_semantics=("parallel", "arbitrary"),  # megacore over batch
            vmem_limit_bytes=32 * 1024 * 1024),
        cost_estimate=cost,
    )(x_emb, mask_add, emb_ln_g, emb_ln_b, *packed)

    return out[:, 0, :]   # CLS token hidden state


# ----------------------------------------------------------------------------
# parameters + pure-JAX reference (f32, HIGHEST precision)
# ----------------------------------------------------------------------------
def init_bert_params(key, cfg):
    H, I = cfg.hidden, cfg.intermediate
    keys = jax.random.split(key, 1 + cfg.num_layers)

    kw, kp, kt, kg, kb = jax.random.split(keys[0], 5)
    word_emb = 0.02 * jax.random.normal(kw, (cfg.vocab_size, H), jnp.float32)
    pos_emb = 0.02 * jax.random.normal(kp, (cfg.max_position, H), jnp.float32)
    type_emb = 0.02 * jax.random.normal(kt, (cfg.type_vocab, H), jnp.float32)
    emb_ln_g = 1.0 + 0.1 * jax.random.normal(kg, (1, H), jnp.float32)
    emb_ln_b = 0.1 * jax.random.normal(kb, (1, H), jnp.float32)
    emb_params = (word_emb, pos_emb, type_emb, emb_ln_g, emb_ln_b)

    def mk(k, shape, s):
        return s * jax.random.normal(k, shape, jnp.float32)

    layers = []
    for l in range(cfg.num_layers):
        ks = jax.random.split(keys[1 + l], 16)
        wq, bq = mk(ks[0], (H, H), 0.05), mk(ks[1], (1, H), 0.02)
        wk, bk = mk(ks[2], (H, H), 0.05), mk(ks[3], (1, H), 0.02)
        wv, bv = mk(ks[4], (H, H), 0.05), mk(ks[5], (1, H), 0.02)
        wo, bo = mk(ks[6], (H, H), 0.05), mk(ks[7], (1, H), 0.02)
        g1 = 1.0 + 0.1 * jax.random.normal(ks[8], (1, H), jnp.float32)
        b1n = 0.1 * jax.random.normal(ks[9], (1, H), jnp.float32)
        w1, b1 = mk(ks[10], (H, I), 0.05), mk(ks[11], (1, I), 0.02)
        w2, b2 = mk(ks[12], (I, H), 0.05), mk(ks[13], (1, H), 0.02)
        g2 = 1.0 + 0.1 * jax.random.normal(ks[14], (1, H), jnp.float32)
        b2n = 0.1 * jax.random.normal(ks[15], (1, H), jnp.float32)
        layers.append((wq, bq, wk, bk, wv, bv, wo, bo,
                       g1, b1n, w1, b1, w2, b2, g2, b2n))
    return emb_params, tuple(layers)


def reference_forward(input_ids, attention_mask, token_type_ids, params, cfg):
    emb_params, layer_params = params
    word_emb, pos_emb, type_emb, emb_ln_g, emb_ln_b = emb_params
    B, S = input_ids.shape
    H, nh = cfg.hidden, cfg.num_heads
    hd = H // nh

    x = word_emb[input_ids] + pos_emb[:S][None, :, :] + type_emb[token_type_ids]
    x = _ln(x, emb_ln_g, emb_ln_b)
    mask_add = (1.0 - attention_mask.astype(jnp.float32))[:, None, None, :] * -10000.0

    for (wq, bq, wk, bk, wv, bv, wo, bo,
         g1, b1n, w1, b1, w2, b2, g2, b2n) in layer_params:
        q = jnp.einsum('bsh,hd->bsd', x, wq, precision=_PREC) + bq
        k = jnp.einsum('bsh,hd->bsd', x, wk, precision=_PREC) + bk
        v = jnp.einsum('bsh,hd->bsd', x, wv, precision=_PREC) + bv
        qh = q.reshape(B, S, nh, hd).transpose(0, 2, 1, 3)
        kh = k.reshape(B, S, nh, hd).transpose(0, 2, 1, 3)
        vh = v.reshape(B, S, nh, hd).transpose(0, 2, 1, 3)
        s = jnp.einsum('bnqd,bnkd->bnqk', qh, kh,
                       precision=_PREC) / math.sqrt(hd) + mask_add
        p = jax.nn.softmax(s, axis=-1)
        ctx = jnp.einsum('bnqk,bnkd->bnqd', p, vh,
                         precision=_PREC).transpose(0, 2, 1, 3).reshape(B, S, H)
        attn = jnp.einsum('bsh,hd->bsd', ctx, wo, precision=_PREC) + bo
        x = _ln(x + attn, g1, b1n)
        ff = _gelu(jnp.einsum('bsh,hi->bsi', x, w1, precision=_PREC) + b1)
        ff = jnp.einsum('bsi,ih->bsh', ff, w2, precision=_PREC) + b2
        x = _ln(x + ff, g2, b2n)
    return x[:, 0, :]


# ----------------------------------------------------------------------------
if __name__ == "__main__":
    cfg = BertConfig()
    B, S = 2, 16

    key = jax.random.PRNGKey(0)
    kparam, kid = jax.random.split(key, 2)
    params = init_bert_params(kparam, cfg)

    input_ids = jax.random.randint(kid, (B, S), 0, cfg.vocab_size, dtype=jnp.int32)
    token_type_ids = jnp.concatenate(
        [jnp.zeros((B, S // 2), jnp.int32), jnp.ones((B, S - S // 2), jnp.int32)],
        axis=1)
    attention_mask = jnp.ones((B, S), jnp.int32).at[1, S - 4:].set(0)  # batch 1 padded

    fwd = jax.jit(functools.partial(bert_cls_forward, cfg=cfg))
    cls = jax.block_until_ready(fwd(input_ids, attention_mask, token_type_ids, params))

    ref = reference_forward(input_ids, attention_mask, token_type_ids, params, cfg)
    assert cls.shape == (B, cfg.hidden), cls.shape
    max_err = float(jnp.max(jnp.abs(cls - ref)))
    # Kernel matmuls use bf16 MXU operands (f32 accumulation) per the perf
    # review; the pure-JAX reference is f32 HIGHEST, so allow bf16 tolerance.
    assert jnp.allclose(cls, ref, atol=2e-2, rtol=2e-2), \
        f"mismatch vs reference: max abs err {max_err}"
    print("KERNEL_OK")
</pallas_src>

<mosaic_0001>
module attributes {stable_mosaic.version = 11 : i64} {
  func.func @kernel(%arg0: i32, %arg1: i32, %arg2: memref<1x16x128xf32, #tpu.memory_space<vmem>>, %arg3: memref<1x1x16xf32, #tpu.memory_space<vmem>>, %arg4: memref<1x128xf32, #tpu.memory_space<vmem>>, %arg5: memref<1x128xf32, #tpu.memory_space<vmem>>, %arg6: memref<1x2x128x64xbf16, #tpu.memory_space<vmem>>, %arg7: memref<1x2x1x64xf32, #tpu.memory_space<vmem>>, %arg8: memref<1x2x128x64xbf16, #tpu.memory_space<vmem>>, %arg9: memref<1x2x1x64xf32, #tpu.memory_space<vmem>>, %arg10: memref<1x2x128x64xbf16, #tpu.memory_space<vmem>>, %arg11: memref<1x2x1x64xf32, #tpu.memory_space<vmem>>, %arg12: memref<1x2x64x128xbf16, #tpu.memory_space<vmem>>, %arg13: memref<1x1x128xf32, #tpu.memory_space<vmem>>, %arg14: memref<1x1x128xf32, #tpu.memory_space<vmem>>, %arg15: memref<1x1x128xf32, #tpu.memory_space<vmem>>, %arg16: memref<1x128x512xbf16, #tpu.memory_space<vmem>>, %arg17: memref<1x1x512xf32, #tpu.memory_space<vmem>>, %arg18: memref<1x512x128xbf16, #tpu.memory_space<vmem>>, %arg19: memref<1x1x128xf32, #tpu.memory_space<vmem>>, %arg20: memref<1x1x128xf32, #tpu.memory_space<vmem>>, %arg21: memref<1x1x128xf32, #tpu.memory_space<vmem>>, %arg22: memref<1x16x128xf32, #tpu.memory_space<vmem>>) attributes {dimension_semantics = [#tpu.dimension_semantics<parallel>, #tpu.dimension_semantics<arbitrary>], iteration_bounds = array<i64: 2, 2>, scalar_prefetch = 0 : i64, scratch_operands = 0 : i64, tpu.core_type = #tpu.core_type<tc>, window_params = [{transform_indices = @transform_0, window_bounds = array<i64: 1, 16, 128>}, {transform_indices = @transform_1, window_bounds = array<i64: 1, 1, 16>}, {pipeline_mode = #tpu.pipeline_mode<synchronous>, transform_indices = @transform_2, window_bounds = array<i64: 1, 128>}, {pipeline_mode = #tpu.pipeline_mode<synchronous>, transform_indices = @transform_3, window_bounds = array<i64: 1, 128>}, {transform_indices = @transform_4, window_bounds = array<i64: 1, 2, 128, 64>}, {transform_indices = @transform_5, window_bounds = array<i64: 1, 2, 1, 64>}, {transform_indices = @transform_6, window_bounds = array<i64: 1, 2, 128, 64>}, {transform_indices = @transform_7, window_bounds = array<i64: 1, 2, 1, 64>}, {transform_indices = @transform_8, window_bounds = array<i64: 1, 2, 128, 64>}, {transform_indices = @transform_9, window_bounds = array<i64: 1, 2, 1, 64>}, {transform_indices = @transform_10, window_bounds = array<i64: 1, 2, 64, 128>}, {transform_indices = @transform_11, window_bounds = array<i64: 1, 1, 128>}, {transform_indices = @transform_12, window_bounds = array<i64: 1, 1, 128>}, {transform_indices = @transform_13, window_bounds = array<i64: 1, 1, 128>}, {transform_indices = @transform_14, window_bounds = array<i64: 1, 128, 512>}, {transform_indices = @transform_15, window_bounds = array<i64: 1, 1, 512>}, {transform_indices = @transform_16, window_bounds = array<i64: 1, 512, 128>}, {transform_indices = @transform_17, window_bounds = array<i64: 1, 1, 128>}, {transform_indices = @transform_18, window_bounds = array<i64: 1, 1, 128>}, {transform_indices = @transform_19, window_bounds = array<i64: 1, 1, 128>}, {transform_indices = @transform_20, window_bounds = array<i64: 1, 16, 128>}]} {
    %c0_i32 = arith.constant 0 : i32
    %0 = arith.cmpi eq, %arg1, %c0_i32 : i32
    %1 = arith.extui %0 : i1 to i32
    %c0_i32_0 = arith.constant 0 : i32
    %2 = arith.cmpi ne, %1, %c0_i32_0 : i32
    scf.if %2 {
      %c0_124 = arith.constant 0 : index
      %c0_125 = arith.constant 0 : index
      %c0_126 = arith.constant 0 : index
      %189 = vector.load %arg2[%c0_124, %c0_125, %c0_126] : memref<1x16x128xf32, #tpu.memory_space<vmem>>, vector<1x16x128xf32>
      %190 = vector.shape_cast %189 : vector<1x16x128xf32> to vector<16x128xf32>
      %c0_127 = arith.constant 0 : index
      %c0_128 = arith.constant 0 : index
      %191 = vector.load %arg4[%c0_127, %c0_128] : memref<1x128xf32, #tpu.memory_space<vmem>>, vector<1x128xf32>
      %c0_129 = arith.constant 0 : index
      %c0_130 = arith.constant 0 : index
      %192 = vector.load %arg5[%c0_129, %c0_130] : memref<1x128xf32, #tpu.memory_space<vmem>>, vector<1x128xf32>
      %cst_131 = arith.constant dense<0.000000e+00> : vector<16xf32>
      %193 = vector.multi_reduction <add>, %190, %cst_131 [1] : vector<16x128xf32> to vector<16xf32>
      %194 = vector.shape_cast %193 : vector<16xf32> to vector<16x1xf32>
      %cst_132 = arith.constant 1.280000e+02 : f32
      %195 = vector.broadcast %cst_132 : f32 to vector<16x1xf32>
      %196 = arith.divf %194, %195 : vector<16x1xf32>
      %197 = vector.broadcast %196 : vector<16x1xf32> to vector<16x128xf32>
      %198 = arith.subf %190, %197 : vector<16x128xf32>
      %199 = arith.mulf %198, %198 : vector<16x128xf32>
      %cst_133 = arith.constant dense<0.000000e+00> : vector<16xf32>
      %200 = vector.multi_reduction <add>, %199, %cst_133 [1] : vector<16x128xf32> to vector<16xf32>
      %201 = vector.shape_cast %200 : vector<16xf32> to vector<16x1xf32>
      %cst_134 = arith.constant 1.280000e+02 : f32
      %202 = vector.broadcast %cst_134 : f32 to vector<16x1xf32>
      %203 = arith.divf %201, %202 : vector<16x1xf32>
      %204 = vector.broadcast %196 : vector<16x1xf32> to vector<16x128xf32>
      %205 = arith.subf %190, %204 : vector<16x128xf32>
      %cst_135 = arith.constant 9.99999996E-13 : f32
      %206 = vector.broadcast %cst_135 : f32 to vector<16x1xf32>
      %207 = arith.addf %203, %206 : vector<16x1xf32>
      %208 = math.rsqrt %207 : vector<16x1xf32>
      %209 = vector.broadcast %208 : vector<16x1xf32> to vector<16x128xf32>
      %210 = arith.mulf %205, %209 : vector<16x128xf32>
      %211 = vector.broadcast %191 : vector<1x128xf32> to vector<16x128xf32>
      %212 = arith.mulf %210, %211 : vector<16x128xf32>
      %213 = vector.broadcast %192 : vector<1x128xf32> to vector<16x128xf32>
      %214 = arith.addf %212, %213 : vector<16x128xf32>
      %c0_136 = arith.constant 0 : index
      %c0_137 = arith.constant 0 : index
      %c0_138 = arith.constant 0 : index
      %215 = vector.load %arg22[%c0_136, %c0_137, %c0_138] : memref<1x16x128xf32, #tpu.memory_space<vmem>>, vector<1x16x128xf32>
      %216 = vector.shape_cast %215 : vector<1x16x128xf32> to vector<16x128xf32>
      %217 = vector.shape_cast %214 : vector<16x128xf32> to vector<1x16x128xf32>
      tpu.vector_store %arg22[%c0_136, %c0_137, %c0_138], %217 {strides = array<i32>} : memref<1x16x128xf32, #tpu.memory_space<vmem>>, vector<1x16x128xf32>,
    } else {
    }
    %c0 = arith.constant 0 : index
    %c0_1 = arith.constant 0 : index
    %c0_2 = arith.constant 0 : index
    %3 = vector.load %arg22[%c0, %c0_1, %c0_2] : memref<1x16x128xf32, #tpu.memory_space<vmem>>, vector<1x16x128xf32>
    %4 = vector.shape_cast %3 : vector<1x16x128xf32> to vector<16x128xf32>
    %5 = arith.truncf %4 : vector<16x128xf32> to vector<16x128xbf16>
    %c0_3 = arith.constant 0 : index
    %c0_4 = arith.constant 0 : index
    %c0_5 = arith.constant 0 : index
    %6 = vector.load %arg3[%c0_3, %c0_4, %c0_5] : memref<1x1x16xf32, #tpu.memory_space<vmem>>, vector<1x1x16xf32>
    %7 = vector.shape_cast %6 : vector<1x1x16xf32> to vector<1x16xf32>
    %c0_6 = arith.constant 0 : index
    %c0_7 = arith.constant 0 : index
    %c0_8 = arith.constant 0 : index
    %8 = vector.load %arg13[%c0_6, %c0_7, %c0_8] : memref<1x1x128xf32, #tpu.memory_space<vmem>>, vector<1x1x128xf32>
    %9 = vector.shape_cast %8 : vector<1x1x128xf32> to vector<1x128xf32>
    %c0_9 = arith.constant 0 : index
    %c0_10 = arith.constant 0 : index
    %c0_11 = arith.constant 0 : index
    %c0_12 = arith.constant 0 : index
    %10 = vector.load %arg6[%c0_9, %c0_10, %c0_11, %c0_12] : memref<1x2x128x64xbf16, #tpu.memory_space<vmem>>, vector<1x1x128x64xbf16>
    %11 = vector.shape_cast %10 : vector<1x1x128x64xbf16> to vector<128x64xbf16>
    %cst = arith.constant dense<0.000000e+00> : vector<16x64xf32>
    %12 = tpu.matmul %5, %11, %cst {dimension_numbers = #tpu.dot_dimension_numbers<[1], [0], [0], [1], [0, 0, 1, 1], [], []>} : vector<16x128xbf16>, vector<128x64xbf16>, vector<16x64xf32> -> vector<16x64xf32>
    %c0_13 = arith.constant 0 : index
    %c0_14 = arith.constant 0 : index
    %c0_15 = arith.constant 0 : index
    %c0_16 = arith.constant 0 : index
    %13 = vector.load %arg7[%c0_13, %c0_14, %c0_15, %c0_16] : memref<1x2x1x64xf32, #tpu.memory_space<vmem>>, vector<1x1x1x64xf32>
    %14 = vector.shape_cast %13 : vector<1x1x1x64xf32> to vector<1x64xf32>
    %15 = vector.broadcast %14 : vector<1x64xf32> to vector<16x64xf32>
    %16 = arith.addf %12, %15 : vector<16x64xf32>
    %c0_17 = arith.constant 0 : index
    %c0_18 = arith.constant 0 : index
    %c0_19 = arith.constant 0 : index
    %c0_20 = arith.constant 0 : index
    %17 = vector.load %arg8[%c0_17, %c0_18, %c0_19, %c0_20] : memref<1x2x128x64xbf16, #tpu.memory_space<vmem>>, vector<1x1x128x64xbf16>
    %18 = vector.shape_cast %17 : vector<1x1x128x64xbf16> to vector<128x64xbf16>
    %cst_21 = arith.constant dense<0.000000e+00> : vector<16x64xf32>
    %19 = tpu.matmul %5, %18, %cst_21 {dimension_numbers = #tpu.dot_dimension_numbers<[1], [0], [0], [1], [0, 0, 1, 1], [], []>} : vector<16x128xbf16>, vector<128x64xbf16>, vector<16x64xf32> -> vector<16x64xf32>
    %c0_22 = arith.constant 0 : index
    %c0_23 = arith.constant 0 : index
    %c0_24 = arith.constant 0 : index
    %c0_25 = arith.constant 0 : index
    %20 = vector.load %arg9[%c0_22, %c0_23, %c0_24, %c0_25] : memref<1x2x1x64xf32, #tpu.memory_space<vmem>>, vector<1x1x1x64xf32>
    %21 = vector.shape_cast %20 : vector<1x1x1x64xf32> to vector<1x64xf32>
    %22 = vector.broadcast %21 : vector<1x64xf32> to vector<16x64xf32>
    %23 = arith.addf %19, %22 : vector<16x64xf32>
    %c0_26 = arith.constant 0 : index
    %c0_27 = arith.constant 0 : index
    %c0_28 = arith.constant 0 : index
    %c0_29 = arith.constant 0 : index
    %24 = vector.load %arg10[%c0_26, %c0_27, %c0_28, %c0_29] : memref<1x2x128x64xbf16, #tpu.memory_space<vmem>>, vector<1x1x128x64xbf16>
    %25 = vector.shape_cast %24 : vector<1x1x128x64xbf16> to vector<128x64xbf16>
    %cst_30 = arith.constant dense<0.000000e+00> : vector<16x64xf32>
    %26 = tpu.matmul %5, %25, %cst_30 {dimension_numbers = #tpu.dot_dimension_numbers<[1], [0], [0], [1], [0, 0, 1, 1], [], []>} : vector<16x128xbf16>, vector<128x64xbf16>, vector<16x64xf32> -> vector<16x64xf32>
    %c0_31 = arith.constant 0 : index
    %c0_32 = arith.constant 0 : index
    %c0_33 = arith.constant 0 : index
    %c0_34 = arith.constant 0 : index
    %27 = vector.load %arg11[%c0_31, %c0_32, %c0_33, %c0_34] : memref<1x2x1x64xf32, #tpu.memory_space<vmem>>, vector<1x1x1x64xf32>
    %28 = vector.shape_cast %27 : vector<1x1x1x64xf32> to vector<1x64xf32>
    %29 = vector.broadcast %28 : vector<1x64xf32> to vector<16x64xf32>
    %30 = arith.addf %26, %29 : vector<16x64xf32>
    %31 = arith.truncf %16 : vector<16x64xf32> to vector<16x64xbf16>
    %32 = arith.truncf %23 : vector<16x64xf32> to vector<16x64xbf16>
    %cst_35 = arith.constant dense<0.000000e+00> : vector<16x16xf32>
    %33 = tpu.matmul %31, %32, %cst_35 {dimension_numbers = #tpu.dot_dimension_numbers<[1], [1], [0], [0], [0, 0, 1, 0], [], []>} : vector<16x64xbf16>, vector<16x64xbf16>, vector<16x16xf32> -> vector<16x16xf32>
    %cst_36 = arith.constant 1.250000e-01 : f32
    %34 = vector.broadcast %cst_36 : f32 to vector<16x16xf32>
    %35 = arith.mulf %33, %34 : vector<16x16xf32>
    %36 = vector.broadcast %7 : vector<1x16xf32> to vector<16x16xf32>
    %37 = arith.addf %35, %36 : vector<16x16xf32>
    %cst_37 = arith.constant dense<0xFF800000> : vector<16xf32>
    %38 = vector.multi_reduction <maximumf>, %37, %cst_37 [1] : vector<16x16xf32> to vector<16xf32>
    %39 = vector.shape_cast %38 : vector<16xf32> to vector<16x1xf32>
    %40 = vector.broadcast %39 : vector<16x1xf32> to vector<16x16xf32>
    %41 = arith.subf %37, %40 : vector<16x16xf32>
    %42 = math.exp %41 : vector<16x16xf32>
    %cst_38 = arith.constant dense<0.000000e+00> : vector<16xf32>
    %43 = vector.multi_reduction <add>, %42, %cst_38 [1] : vector<16x16xf32> to vector<16xf32>
    %44 = vector.shape_cast %43 : vector<16xf32> to vector<16x1xf32>
    %45 = tpu.reciprocal %44 {approx = true} : vector<16x1xf32> -> vector<16x1xf32>
    %46 = vector.broadcast %45 : vector<16x1xf32> to vector<16x16xf32>
    %47 = arith.mulf %42, %46 : vector<16x16xf32>
    %48 = arith.truncf %47 : vector<16x16xf32> to vector<16x16xbf16>
    %49 = arith.truncf %30 : vector<16x64xf32> to vector<16x64xbf16>
    %cst_39 = arith.constant dense<0.000000e+00> : vector<16x64xf32>
    %50 = tpu.matmul %48, %49, %cst_39 {dimension_numbers = #tpu.dot_dimension_numbers<[1], [0], [0], [1], [0, 0, 1, 1], [], []>} : vector<16x16xbf16>, vector<16x64xbf16>, vector<16x64xf32> -> vector<16x64xf32>
    %51 = arith.truncf %50 : vector<16x64xf32> to vector<16x64xbf16>
    %c0_40 = arith.constant 0 : index
    %c0_41 = arith.constant 0 : index
    %c0_42 = arith.constant 0 : index
    %c0_43 = arith.constant 0 : index
    %52 = vector.load %arg12[%c0_40, %c0_41, %c0_42, %c0_43] : memref<1x2x64x128xbf16, #tpu.memory_space<vmem>>, vector<1x1x64x128xbf16>
    %53 = vector.shape_cast %52 : vector<1x1x64x128xbf16> to vector<64x128xbf16>
    %cst_44 = arith.constant dense<0.000000e+00> : vector<16x128xf32>
    %54 = tpu.matmul %51, %53, %cst_44 {dimension_numbers = #tpu.dot_dimension_numbers<[1], [0], [0], [1], [0, 0, 1, 1], [], []>} : vector<16x64xbf16>, vector<64x128xbf16>, vector<16x128xf32> -> vector<16x128xf32>
    %55 = vector.broadcast %9 : vector<1x128xf32> to vector<16x128xf32>
    %56 = arith.addf %55, %54 : vector<16x128xf32>
    %c0_45 = arith.constant 0 : index
    %c1 = arith.constant 1 : index
    %c0_46 = arith.constant 0 : index
    %c0_47 = arith.constant 0 : index
    %57 = vector.load %arg6[%c0_45, %c1, %c0_46, %c0_47] : memref<1x2x128x64xbf16, #tpu.memory_space<vmem>>, vector<1x1x128x64xbf16>
    %58 = vector.shape_cast %57 : vector<1x1x128x64xbf16> to vector<128x64xbf16>
    %cst_48 = arith.constant dense<0.000000e+00> : vector<16x64xf32>
    %59 = tpu.matmul %5, %58, %cst_48 {dimension_numbers = #tpu.dot_dimension_numbers<[1], [0], [0], [1], [0, 0, 1, 1], [], []>} : vector<16x128xbf16>, vector<128x64xbf16>, vector<16x64xf32> -> vector<16x64xf32>
    %c0_49 = arith.constant 0 : index
    %c1_50 = arith.constant 1 : index
    %c0_51 = arith.constant 0 : index
    %c0_52 = arith.constant 0 : index
    %60 = vector.load %arg7[%c0_49, %c1_50, %c0_51, %c0_52] : memref<1x2x1x64xf32, #tpu.memory_space<vmem>>, vector<1x1x1x64xf32>
    %61 = vector.shape_cast %60 : vector<1x1x1x64xf32> to vector<1x64xf32>
    %62 = vector.broadcast %61 : vector<1x64xf32> to vector<16x64xf32>
    %63 = arith.addf %59, %62 : vector<16x64xf32>
    %c0_53 = arith.constant 0 : index
    %c1_54 = arith.constant 1 : index
    %c0_55 = arith.constant 0 : index
    %c0_56 = arith.constant 0 : index
    %64 = vector.load %arg8[%c0_53, %c1_54, %c0_55, %c0_56] : memref<1x2x128x64xbf16, #tpu.memory_space<vmem>>, vector<1x1x128x64xbf16>
    %65 = vector.shape_cast %64 : vector<1x1x128x64xbf16> to vector<128x64xbf16>
    %cst_57 = arith.constant dense<0.000000e+00> : vector<16x64xf32>
    %66 = tpu.matmul %5, %65, %cst_57 {dimension_numbers = #tpu.dot_dimension_numbers<[1], [0], [0], [1], [0, 0, 1, 1], [], []>} : vector<16x128xbf16>, vector<128x64xbf16>, vector<16x64xf32> -> vector<16x64xf32>
    %c0_58 = arith.constant 0 : index
    %c1_59 = arith.constant 1 : index
    %c0_60 = arith.constant 0 : index
    %c0_61 = arith.constant 0 : index
    %67 = vector.load %arg9[%c0_58, %c1_59, %c0_60, %c0_61] : memref<1x2x1x64xf32, #tpu.memory_space<vmem>>, vector<1x1x1x64xf32>
    %68 = vector.shape_cast %67 : vector<1x1x1x64xf32> to vector<1x64xf32>
    %69 = vector.broadcast %68 : vector<1x64xf32> to vector<16x64xf32>
    %70 = arith.addf %66, %69 : vector<16x64xf32>
    %c0_62 = arith.constant 0 : index
    %c1_63 = arith.constant 1 : index
    %c0_64 = arith.constant 0 : index
    %c0_65 = arith.constant 0 : index
    %71 = vector.load %arg10[%c0_62, %c1_63, %c0_64, %c0_65] : memref<1x2x128x64xbf16, #tpu.memory_space<vmem>>, vector<1x1x128x64xbf16>
    %72 = vector.shape_cast %71 : vector<1x1x128x64xbf16> to vector<128x64xbf16>
    %cst_66 = arith.constant dense<0.000000e+00> : vector<16x64xf32>
    %73 = tpu.matmul %5, %72, %cst_66 {dimension_numbers = #tpu.dot_dimension_numbers<[1], [0], [0], [1], [0, 0, 1, 1], [], []>} : vector<16x128xbf16>, vector<128x64xbf16>, vector<16x64xf32> -> vector<16x64xf32>
    %c0_67 = arith.constant 0 : index
    %c1_68 = arith.constant 1 : index
    %c0_69 = arith.constant 0 : index
    %c0_70 = arith.constant 0 : index
    %74 = vector.load %arg11[%c0_67, %c1_68, %c0_69, %c0_70] : memref<1x2x1x64xf32, #tpu.memory_space<vmem>>, vector<1x1x1x64xf32>
    %75 = vector.shape_cast %74 : vector<1x1x1x64xf32> to vector<1x64xf32>
    %76 = vector.broadcast %75 : vector<1x64xf32> to vector<16x64xf32>
    %77 = arith.addf %73, %76 : vector<16x64xf32>
    %78 = arith.truncf %63 : vector<16x64xf32> to vector<16x64xbf16>
    %79 = arith.truncf %70 : vector<16x64xf32> to vector<16x64xbf16>
    %cst_71 = arith.constant dense<0.000000e+00> : vector<16x16xf32>
    %80 = tpu.matmul %78, %79, %cst_71 {dimension_numbers = #tpu.dot_dimension_numbers<[1], [1], [0], [0], [0, 0, 1, 0], [], []>} : vector<16x64xbf16>, vector<16x64xbf16>, vector<16x16xf32> -> vector<16x16xf32>
    %cst_72 = arith.constant 1.250000e-01 : f32
    %81 = vector.broadcast %cst_72 : f32 to vector<16x16xf32>
    %82 = arith.mulf %80, %81 : vector<16x16xf32>
    %83 = vector.broadcast %7 : vector<1x16xf32> to vector<16x16xf32>
    %84 = arith.addf %82, %83 : vector<16x16xf32>
    %cst_73 = arith.constant dense<0xFF800000> : vector<16xf32>
    %85 = vector.multi_reduction <maximumf>, %84, %cst_73 [1] : vector<16x16xf32> to vector<16xf32>
    %86 = vector.shape_cast %85 : vector<16xf32> to vector<16x1xf32>
    %87 = vector.broadcast %86 : vector<16x1xf32> to vector<16x16xf32>
    %88 = arith.subf %84, %87 : vector<16x16xf32>
    %89 = math.exp %88 : vector<16x16xf32>
    %cst_74 = arith.constant dense<0.000000e+00> : vector<16xf32>
    %90 = vector.multi_reduction <add>, %89, %cst_74 [1] : vector<16x16xf32> to vector<16xf32>
    %91 = vector.shape_cast %90 : vector<16xf32> to vector<16x1xf32>
    %92 = tpu.reciprocal %91 {approx = true} : vector<16x1xf32> -> vector<16x1xf32>
    %93 = vector.broadcast %92 : vector<16x1xf32> to vector<16x16xf32>
    %94 = arith.mulf %89, %93 : vector<16x16xf32>
    %95 = arith.truncf %94 : vector<16x16xf32> to vector<16x16xbf16>
    %96 = arith.truncf %77 : vector<16x64xf32> to vector<16x64xbf16>
    %cst_75 = arith.constant dense<0.000000e+00> : vector<16x64xf32>
    %97 = tpu.matmul %95, %96, %cst_75 {dimension_numbers = #tpu.dot_dimension_numbers<[1], [0], [0], [1], [0, 0, 1, 1], [], []>} : vector<16x16xbf16>, vector<16x64xbf16>, vector<16x64xf32> -> vector<16x64xf32>
    %98 = arith.truncf %97 : vector<16x64xf32> to vector<16x64xbf16>
    %c0_76 = arith.constant 0 : index
    %c1_77 = arith.constant 1 : index
    %c0_78 = arith.constant 0 : index
    %c0_79 = arith.constant 0 : index
    %99 = vector.load %arg12[%c0_76, %c1_77, %c0_78, %c0_79] : memref<1x2x64x128xbf16, #tpu.memory_space<vmem>>, vector<1x1x64x128xbf16>
    %100 = vector.shape_cast %99 : vector<1x1x64x128xbf16> to vector<64x128xbf16>
    %cst_80 = arith.constant dense<0.000000e+00> : vector<16x128xf32>
    %101 = tpu.matmul %98, %100, %cst_80 {dimension_numbers = #tpu.dot_dimension_numbers<[1], [0], [0], [1], [0, 0, 1, 1], [], []>} : vector<16x64xbf16>, vector<64x128xbf16>, vector<16x128xf32> -> vector<16x128xf32>
    %102 = arith.addf %56, %101 : vector<16x128xf32>
    %103 = arith.addf %4, %102 : vector<16x128xf32>
    %c0_81 = arith.constant 0 : index
    %c0_82 = arith.constant 0 : index
    %c0_83 = arith.constant 0 : index
    %104 = vector.load %arg14[%c0_81, %c0_82, %c0_83] : memref<1x1x128xf32, #tpu.memory_space<vmem>>, vector<1x1x128xf32>
    %105 = vector.shape_cast %104 : vector<1x1x128xf32> to vector<1x128xf32>
    %c0_84 = arith.constant 0 : index
    %c0_85 = arith.constant 0 : index
    %c0_86 = arith.constant 0 : index
    %106 = vector.load %arg15[%c0_84, %c0_85, %c0_86] : memref<1x1x128xf32, #tpu.memory_space<vmem>>, vector<1x1x128xf32>
    %107 = vector.shape_cast %106 : vector<1x1x128xf32> to vector<1x128xf32>
    %cst_87 = arith.constant dense<0.000000e+00> : vector<16xf32>
    %108 = vector.multi_reduction <add>, %103, %cst_87 [1] : vector<16x128xf32> to vector<16xf32>
    %109 = vector.shape_cast %108 : vector<16xf32> to vector<16x1xf32>
    %cst_88 = arith.constant 1.280000e+02 : f32
    %110 = vector.broadcast %cst_88 : f32 to vector<16x1xf32>
    %111 = arith.divf %109, %110 : vector<16x1xf32>
    %112 = vector.broadcast %111 : vector<16x1xf32> to vector<16x128xf32>
    %113 = arith.subf %103, %112 : vector<16x128xf32>
    %114 = arith.mulf %113, %113 : vector<16x128xf32>
    %cst_89 = arith.constant dense<0.000000e+00> : vector<16xf32>
    %115 = vector.multi_reduction <add>, %114, %cst_89 [1] : vector<16x128xf32> to vector<16xf32>
    %116 = vector.shape_cast %115 : vector<16xf32> to vector<16x1xf32>
    %cst_90 = arith.constant 1.280000e+02 : f32
    %117 = vector.broadcast %cst_90 : f32 to vector<16x1xf32>
    %118 = arith.divf %116, %117 : vector<16x1xf32>
    %119 = vector.broadcast %111 : vector<16x1xf32> to vector<16x128xf32>
    %120 = arith.subf %103, %119 : vector<16x128xf32>
    %cst_91 = arith.constant 9.99999996E-13 : f32
    %121 = vector.broadcast %cst_91 : f32 to vector<16x1xf32>
    %122 = arith.addf %118, %121 : vector<16x1xf32>
    %123 = math.rsqrt %122 : vector<16x1xf32>
    %124 = vector.broadcast %123 : vector<16x1xf32> to vector<16x128xf32>
    %125 = arith.mulf %120, %124 : vector<16x128xf32>
    %126 = vector.broadcast %105 : vector<1x128xf32> to vector<16x128xf32>
    %127 = arith.mulf %125, %126 : vector<16x128xf32>
    %128 = vector.broadcast %107 : vector<1x128xf32> to vector<16x128xf32>
    %129 = arith.addf %127, %128 : vector<16x128xf32>
    %130 = arith.truncf %129 : vector<16x128xf32> to vector<16x128xbf16>
    %c0_92 = arith.constant 0 : index
    %c0_93 = arith.constant 0 : index
    %c0_94 = arith.constant 0 : index
    %131 = vector.load %arg16[%c0_92, %c0_93, %c0_94] : memref<1x128x512xbf16, #tpu.memory_space<vmem>>, vector<1x128x512xbf16>
    %132 = vector.shape_cast %131 : vector<1x128x512xbf16> to vector<128x512xbf16>
    %cst_95 = arith.constant dense<0.000000e+00> : vector<16x512xf32>
    %133 = tpu.matmul %130, %132, %cst_95 {dimension_numbers = #tpu.dot_dimension_numbers<[1], [0], [0], [1], [0, 0, 1, 1], [], []>} : vector<16x128xbf16>, vector<128x512xbf16>, vector<16x512xf32> -> vector<16x512xf32>
    %c0_96 = arith.constant 0 : index
    %c0_97 = arith.constant 0 : index
    %c0_98 = arith.constant 0 : index
    %134 = vector.load %arg17[%c0_96, %c0_97, %c0_98] : memref<1x1x512xf32, #tpu.memory_space<vmem>>, vector<1x1x512xf32>
    %135 = vector.shape_cast %134 : vector<1x1x512xf32> to vector<1x512xf32>
    %136 = vector.broadcast %135 : vector<1x512xf32> to vector<16x512xf32>
    %137 = arith.addf %133, %136 : vector<16x512xf32>
    %cst_99 = arith.constant 5.000000e-01 : f32
    %138 = vector.broadcast %cst_99 : f32 to vector<16x512xf32>
    %139 = arith.mulf %138, %137 : vector<16x512xf32>
    %cst_100 = arith.constant 4.471500e-02 : f32
    %140 = vector.broadcast %cst_100 : f32 to vector<16x512xf32>
    %141 = arith.mulf %140, %137 : vector<16x512xf32>
    %142 = arith.mulf %141, %137 : vector<16x512xf32>
    %143 = arith.mulf %142, %137 : vector<16x512xf32>
    %144 = arith.addf %137, %143 : vector<16x512xf32>
    %cst_101 = arith.constant 0.797884583 : f32
    %145 = vector.broadcast %cst_101 : f32 to vector<16x512xf32>
    %146 = arith.mulf %145, %144 : vector<16x512xf32>
    %147 = math.tanh %146 : vector<16x512xf32>
    %cst_102 = arith.constant 1.000000e+00 : f32
    %148 = vector.broadcast %cst_102 : f32 to vector<16x512xf32>
    %149 = arith.addf %148, %147 : vector<16x512xf32>
    %150 = arith.mulf %139, %149 : vector<16x512xf32>
    %151 = arith.truncf %150 : vector<16x512xf32> to vector<16x512xbf16>
    %c0_103 = arith.constant 0 : index
    %c0_104 = arith.constant 0 : index
    %c0_105 = arith.constant 0 : index
    %152 = vector.load %arg18[%c0_103, %c0_104, %c0_105] : memref<1x512x128xbf16, #tpu.memory_space<vmem>>, vector<1x512x128xbf16>
    %153 = vector.shape_cast %152 : vector<1x512x128xbf16> to vector<512x128xbf16>
    %cst_106 = arith.constant dense<0.000000e+00> : vector<16x128xf32>
    %154 = tpu.matmul %151, %153, %cst_106 {dimension_numbers = #tpu.dot_dimension_numbers<[1], [0], [0], [1], [0, 0, 1, 1], [], []>} : vector<16x512xbf16>, vector<512x128xbf16>, vector<16x128xf32> -> vector<16x128xf32>
    %c0_107 = arith.constant 0 : index
    %c0_108 = arith.constant 0 : index
    %c0_109 = arith.constant 0 : index
    %155 = vector.load %arg19[%c0_107, %c0_108, %c0_109] : memref<1x1x128xf32, #tpu.memory_space<vmem>>, vector<1x1x128xf32>
    %156 = vector.shape_cast %155 : vector<1x1x128xf32> to vector<1x128xf32>
    %157 = vector.broadcast %156 : vector<1x128xf32> to vector<16x128xf32>
    %158 = arith.addf %154, %157 : vector<16x128xf32>
    %159 = arith.addf %129, %158 : vector<16x128xf32>
    %c0_110 = arith.constant 0 : index
    %c0_111 = arith.constant 0 : index
    %c0_112 = arith.constant 0 : index
    %160 = vector.load %arg20[%c0_110, %c0_111, %c0_112] : memref<1x1x128xf32, #tpu.memory_space<vmem>>, vector<1x1x128xf32>
    %161 = vector.shape_cast %160 : vector<1x1x128xf32> to vector<1x128xf32>
    %c0_113 = arith.constant 0 : index
    %c0_114 = arith.constant 0 : index
    %c0_115 = arith.constant 0 : index
    %162 = vector.load %arg21[%c0_113, %c0_114, %c0_115] : memref<1x1x128xf32, #tpu.memory_space<vmem>>, vector<1x1x128xf32>
    %163 = vector.shape_cast %162 : vector<1x1x128xf32> to vector<1x128xf32>
    %cst_116 = arith.constant dense<0.000000e+00> : vector<16xf32>
    %164 = vector.multi_reduction <add>, %159, %cst_116 [1] : vector<16x128xf32> to vector<16xf32>
    %165 = vector.shape_cast %164 : vector<16xf32> to vector<16x1xf32>
    %cst_117 = arith.constant 1.280000e+02 : f32
    %166 = vector.broadcast %cst_117 : f32 to vector<16x1xf32>
    %167 = arith.divf %165, %166 : vector<16x1xf32>
    %168 = vector.broadcast %167 : vector<16x1xf32> to vector<16x128xf32>
    %169 = arith.subf %159, %168 : vector<16x128xf32>
    %170 = arith.mulf %169, %169 : vector<16x128xf32>
    %cst_118 = arith.constant dense<0.000000e+00> : vector<16xf32>
    %171 = vector.multi_reduction <add>, %170, %cst_118 [1] : vector<16x128xf32> to vector<16xf32>
    %172 = vector.shape_cast %171 : vector<16xf32> to vector<16x1xf32>
    %cst_119 = arith.constant 1.280000e+02 : f32
    %173 = vector.broadcast %cst_119 : f32 to vector<16x1xf32>
    %174 = arith.divf %172, %173 : vector<16x1xf32>
    %175 = vector.broadcast %167 : vector<16x1xf32> to vector<16x128xf32>
    %176 = arith.subf %159, %175 : vector<16x128xf32>
    %cst_120 = arith.constant 9.99999996E-13 : f32
    %177 = vector.broadcast %cst_120 : f32 to vector<16x1xf32>
    %178 = arith.addf %174, %177 : vector<16x1xf32>
    %179 = math.rsqrt %178 : vector<16x1xf32>
    %180 = vector.broadcast %179 : vector<16x1xf32> to vector<16x128xf32>
    %181 = arith.mulf %176, %180 : vector<16x128xf32>
    %182 = vector.broadcast %161 : vector<1x128xf32> to vector<16x128xf32>
    %183 = arith.mulf %181, %182 : vector<16x128xf32>
    %184 = vector.broadcast %163 : vector<1x128xf32> to vector<16x128xf32>
    %185 = arith.addf %183, %184 : vector<16x128xf32>
    %c0_121 = arith.constant 0 : index
    %c0_122 = arith.constant 0 : index
    %c0_123 = arith.constant 0 : index
    %186 = vector.load %arg22[%c0_121, %c0_122, %c0_123] : memref<1x16x128xf32, #tpu.memory_space<vmem>>, vector<1x16x128xf32>
    %187 = vector.shape_cast %186 : vector<1x16x128xf32> to vector<16x128xf32>
    %188 = vector.shape_cast %185 : vector<16x128xf32> to vector<1x16x128xf32>
    tpu.vector_store %arg22[%c0_121, %c0_122, %c0_123], %188 {strides = array<i32>} : memref<1x16x128xf32, #tpu.memory_space<vmem>>, vector<1x16x128xf32>,
    return
  }
  func.func @transform_0(%arg0: i32, %arg1: i32) -> (i32, i32, i32) {
    %c0_i32 = arith.constant 0 : i32
    %c0_i32_0 = arith.constant 0 : i32
    %c0_i32_1 = arith.constant 0 : i32
    return %arg0, %c0_i32, %c0_i32_0 : i32, i32, i32
  }
  func.func @transform_1(%arg0: i32, %arg1: i32) -> (i32, i32, i32) {
    %c0_i32 = arith.constant 0 : i32
    %c0_i32_0 = arith.constant 0 : i32
    %c0_i32_1 = arith.constant 0 : i32
    return %arg0, %c0_i32, %c0_i32_0 : i32, i32, i32
  }
  func.func @transform_2(%arg0: i32, %arg1: i32) -> (i32, i32) {
    %c0_i32 = arith.constant 0 : i32
    %c0_i32_0 = arith.constant 0 : i32
    %c0_i32_1 = arith.constant 0 : i32
    return %c0_i32, %c0_i32_0 : i32, i32
  }
  func.func @transform_3(%arg0: i32, %arg1: i32) -> (i32, i32) {
    %c0_i32 = arith.constant 0 : i32
    %c0_i32_0 = arith.constant 0 : i32
    %c0_i32_1 = arith.constant 0 : i32
    return %c0_i32, %c0_i32_0 : i32, i32
  }
  func.func @transform_4(%arg0: i32, %arg1: i32) -> (i32, i32, i32, i32) {
    %c0_i32 = arith.constant 0 : i32
    %c0_i32_0 = arith.constant 0 : i32
    %c0_i32_1 = arith.constant 0 : i32
    %c0_i32_2 = arith.constant 0 : i32
    return %arg1, %c0_i32, %c0_i32_0, %c0_i32_1 : i32, i32, i32, i32
  }
  func.func @transform_5(%arg0: i32, %arg1: i32) -> (i32, i32, i32, i32) {
    %c0_i32 = arith.constant 0 : i32
    %c0_i32_0 = arith.constant 0 : i32
    %c0_i32_1 = arith.constant 0 : i32
    %c0_i32_2 = arith.constant 0 : i32
    return %arg1, %c0_i32, %c0_i32_0, %c0_i32_1 : i32, i32, i32, i32
  }
  func.func @transform_6(%arg0: i32, %arg1: i32) -> (i32, i32, i32, i32) {
    %c0_i32 = arith.constant 0 : i32
    %c0_i32_0 = arith.constant 0 : i32
    %c0_i32_1 = arith.constant 0 : i32
    %c0_i32_2 = arith.constant 0 : i32
    return %arg1, %c0_i32, %c0_i32_0, %c0_i32_1 : i32, i32, i32, i32
  }
  func.func @transform_7(%arg0: i32, %arg1: i32) -> (i32, i32, i32, i32) {
    %c0_i32 = arith.constant 0 : i32
    %c0_i32_0 = arith.constant 0 : i32
    %c0_i32_1 = arith.constant 0 : i32
    %c0_i32_2 = arith.constant 0 : i32
    return %arg1, %c0_i32, %c0_i32_0, %c0_i32_1 : i32, i32, i32, i32
  }
  func.func @transform_8(%arg0: i32, %arg1: i32) -> (i32, i32, i32, i32) {
    %c0_i32 = arith.constant 0 : i32
    %c0_i32_0 = arith.constant 0 : i32
    %c0_i32_1 = arith.constant 0 : i32
    %c0_i32_2 = arith.constant 0 : i32
    return %arg1, %c0_i32, %c0_i32_0, %c0_i32_1 : i32, i32, i32, i32
  }
  func.func @transform_9(%arg0: i32, %arg1: i32) -> (i32, i32, i32, i32) {
    %c0_i32 = arith.constant 0 : i32
    %c0_i32_0 = arith.constant 0 : i32
    %c0_i32_1 = arith.constant 0 : i32
    %c0_i32_2 = arith.constant 0 : i32
    return %arg1, %c0_i32, %c0_i32_0, %c0_i32_1 : i32, i32, i32, i32
  }
  func.func @transform_10(%arg0: i32, %arg1: i32) -> (i32, i32, i32, i32) {
    %c0_i32 = arith.constant 0 : i32
    %c0_i32_0 = arith.constant 0 : i32
    %c0_i32_1 = arith.constant 0 : i32
    %c0_i32_2 = arith.constant 0 : i32
    return %arg1, %c0_i32, %c0_i32_0, %c0_i32_1 : i32, i32, i32, i32
  }
  func.func @transform_11(%arg0: i32, %arg1: i32) -> (i32, i32, i32) {
    %c0_i32 = arith.constant 0 : i32
    %c0_i32_0 = arith.constant 0 : i32
    %c0_i32_1 = arith.constant 0 : i32
    return %arg1, %c0_i32, %c0_i32_0 : i32, i32, i32
  }
  func.func @transform_12(%arg0: i32, %arg1: i32) -> (i32, i32, i32) {
    %c0_i32 = arith.constant 0 : i32
    %c0_i32_0 = arith.constant 0 : i32
    %c0_i32_1 = arith.constant 0 : i32
    return %arg1, %c0_i32, %c0_i32_0 : i32, i32, i32
  }
  func.func @transform_13(%arg0: i32, %arg1: i32) -> (i32, i32, i32) {
    %c0_i32 = arith.constant 0 : i32
    %c0_i32_0 = arith.constant 0 : i32
    %c0_i32_1 = arith.constant 0 : i32
    return %arg1, %c0_i32, %c0_i32_0 : i32, i32, i32
  }
  func.func @transform_14(%arg0: i32, %arg1: i32) -> (i32, i32, i32) {
    %c0_i32 = arith.constant 0 : i32
    %c0_i32_0 = arith.constant 0 : i32
    %c0_i32_1 = arith.constant 0 : i32
    return %arg1, %c0_i32, %c0_i32_0 : i32, i32, i32
  }
  func.func @transform_15(%arg0: i32, %arg1: i32) -> (i32, i32, i32) {
    %c0_i32 = arith.constant 0 : i32
    %c0_i32_0 = arith.constant 0 : i32
    %c0_i32_1 = arith.constant 0 : i32
    return %arg1, %c0_i32, %c0_i32_0 : i32, i32, i32
  }
  func.func @transform_16(%arg0: i32, %arg1: i32) -> (i32, i32, i32) {
    %c0_i32 = arith.constant 0 : i32
    %c0_i32_0 = arith.constant 0 : i32
    %c0_i32_1 = arith.constant 0 : i32
    return %arg1, %c0_i32, %c0_i32_0 : i32, i32, i32
  }
  func.func @transform_17(%arg0: i32, %arg1: i32) -> (i32, i32, i32) {
    %c0_i32 = arith.constant 0 : i32
    %c0_i32_0 = arith.constant 0 : i32
    %c0_i32_1 = arith.constant 0 : i32
    return %arg1, %c0_i32, %c0_i32_0 : i32, i32, i32
  }
  func.func @transform_18(%arg0: i32, %arg1: i32) -> (i32, i32, i32) {
    %c0_i32 = arith.constant 0 : i32
    %c0_i32_0 = arith.constant 0 : i32
    %c0_i32_1 = arith.constant 0 : i32
    return %arg1, %c0_i32, %c0_i32_0 : i32, i32, i32
  }
  func.func @transform_19(%arg0: i32, %arg1: i32) -> (i32, i32, i32) {
    %c0_i32 = arith.constant 0 : i32
    %c0_i32_0 = arith.constant 0 : i32
    %c0_i32_1 = arith.constant 0 : i32
    return %arg1, %c0_i32, %c0_i32_0 : i32, i32, i32
  }
  func.func @transform_20(%arg0: i32, %arg1: i32) -> (i32, i32, i32) {
    %c0_i32 = arith.constant 0 : i32
    %c0_i32_0 = arith.constant 0 : i32
    %c0_i32_1 = arith.constant 0 : i32
    return %arg0, %c0_i32, %c0_i32_0 : i32, i32, i32
  }
}

</mosaic_0001>

<llo_original>
// kernel: bert_cls_forward.1
$region0: #{bert_cls_forward.1}
  #allocation0 [shape = 'u32[]', space=smem, size = 0x4, offset = 0x4, fixed_abs, tag = 'smem constant byte address 0x4 - core index']
  #allocation1 [shape = 'u32[144,128]{1,0:T(1,128)}', space=vmem, size = 0x12000, scoped, tag = 'internal scratch']
  %s0 = inlined_call_operand.vmem [shape: f32[2,16,128], index: 0, kind: input, shape index: {}]
  %s1 = inlined_call_operand.vmem [shape: f32[2,1,16], index: 1, kind: input, shape index: {}]
  %s2 = inlined_call_operand.vmem [shape: f32[1,128], index: 2, kind: input, shape index: {}]
  %s3 = inlined_call_operand.vmem [shape: f32[1,128], index: 3, kind: input, shape index: {}]
  %s4 = inlined_call_operand.vmem [shape: bf16[2,2,128,64], index: 4, kind: input, shape index: {}]
  %s5 = inlined_call_operand.vmem [shape: f32[2,2,1,64], index: 5, kind: input, shape index: {}]
  %s6 = inlined_call_operand.vmem [shape: bf16[2,2,128,64], index: 6, kind: input, shape index: {}]
  %s7 = inlined_call_operand.vmem [shape: f32[2,2,1,64], index: 7, kind: input, shape index: {}]
  %s8 = inlined_call_operand.vmem [shape: bf16[2,2,128,64], index: 8, kind: input, shape index: {}]
  %s9 = inlined_call_operand.vmem [shape: f32[2,2,1,64], index: 9, kind: input, shape index: {}]
  %s10 = inlined_call_operand.vmem [shape: bf16[2,2,64,128], index: 10, kind: input, shape index: {}]
  %s11 = inlined_call_operand.vmem [shape: f32[2,1,128], index: 11, kind: input, shape index: {}]
  %s12 = inlined_call_operand.vmem [shape: f32[2,1,128], index: 12, kind: input, shape index: {}]
  %s13 = inlined_call_operand.vmem [shape: f32[2,1,128], index: 13, kind: input, shape index: {}]
  %s14 = inlined_call_operand.vmem [shape: bf16[2,128,512], index: 14, kind: input, shape index: {}]
  %s15 = inlined_call_operand.vmem [shape: f32[2,1,512], index: 15, kind: input, shape index: {}]
  %s16 = inlined_call_operand.vmem [shape: bf16[2,512,128], index: 16, kind: input, shape index: {}]
  %s17 = inlined_call_operand.vmem [shape: f32[2,1,128], index: 17, kind: input, shape index: {}]
  %s18 = inlined_call_operand.vmem [shape: f32[2,1,128], index: 18, kind: input, shape index: {}]
  %s19 = inlined_call_operand.vmem [shape: f32[2,1,128], index: 19, kind: input, shape index: {}]
  %s20 = inlined_call_operand.vmem [shape: f32[2,16,128], index: 20, kind: output, shape index: {}]
  %s21 = sld [smem:[#allocation0]]
  $region117: #{bert_cls_forward.1} parent=0
    _
  %s23 = ssub.s32 1, %s21
  %s24 = scalar_select 0, %s23, %s21
  loop: start=0, step=1, limit=6
  $region2: #{bert_cls_forward.1} parent=0 // loop_pre_header
    _
  $region3: #{bert_cls_forward.1} parent=0 // loop_header
    %s26 = sphi 0, %s30
    %p27 = scmp.ge.s32.totalorder %s26, 6
    %s33 = sphi 0, %s45
    %s34 = sphi 0, %s41
    %s35 = sphi 0, %s33
    %s36 = sphi 0, %s34
    %s37 = sphi 0, %s35
    %s38 = sphi 0, %s36
    %s48 = sphi 0, %s50
    %s51 = sphi 0, %s48
    %s52 = sphi 0, %s51
    %s68 = sphi 0, %s52
    %s74 = sphi 0, %s76
    %s77 = sphi 0, %s74
    %s78 = sphi 0, %s77
    %s94 = sphi 0, %s78
    %s98 = sphi 0, %s98
    %s100 = sphi 0, %s98
    %s101 = sphi 0, %s100
    %s115 = sphi 0, %s101
    %s119 = sphi 0, %s119
    %s121 = sphi 0, %s119
    %s122 = sphi 0, %s121
    %s136 = sphi 0, %s122
    %s142 = sphi 0, %s144
    %s145 = sphi 0, %s142
    %s146 = sphi 0, %s145
    %s162 = sphi 0, %s146
    %s168 = sphi 0, %s170
    %s171 = sphi 0, %s168
    %s172 = sphi 0, %s171
    %s188 = sphi 0, %s172
    %s194 = sphi 0, %s196
    %s197 = sphi 0, %s194
    %s198 = sphi 0, %s197
    %s214 = sphi 0, %s198
    %s220 = sphi 0, %s222
    %s223 = sphi 0, %s220
    %s224 = sphi 0, %s223
    %s240 = sphi 0, %s224
    %s246 = sphi 0, %s248
    %s249 = sphi 0, %s246
    %s250 = sphi 0, %s249
    %s266 = sphi 0, %s250
    %s272 = sphi 0, %s274
    %s275 = sphi 0, %s272
    %s276 = sphi 0, %s275
    %s292 = sphi 0, %s276
    %s298 = sphi 0, %s300
    %s301 = sphi 0, %s298
    %s302 = sphi 0, %s301
    %s318 = sphi 0, %s302
    %s324 = sphi 0, %s326
    %s327 = sphi 0, %s324
    %s328 = sphi 0, %s327
    %s344 = sphi 0, %s328
    %s350 = sphi 0, %s352
    %s353 = sphi 0, %s350
    %s354 = sphi 0, %s353
    %s370 = sphi 0, %s354
    %s376 = sphi 0, %s378
    %s379 = sphi 0, %s376
    %s380 = sphi 0, %s379
    %s396 = sphi 0, %s380
    %s402 = sphi 0, %s404
    %s405 = sphi 0, %s402
    %s406 = sphi 0, %s405
    %s422 = sphi 0, %s406
    %s428 = sphi 0, %s430
    %s431 = sphi 0, %s428
    %s432 = sphi 0, %s431
    %s448 = sphi 0, %s432
    %s454 = sphi 0, %s456
    %s457 = sphi 0, %s454
    %s458 = sphi 0, %s457
    %s474 = sphi 0, %s458
    %s480 = sphi 0, %s482
    %s483 = sphi 0, %s480
    %s484 = sphi 0, %s483
    %s500 = sphi 0, %s484
    %s506 = sphi 0, %s508
    %s509 = sphi 0, %s506
    %s510 = sphi 0, %s509
    %s526 = sphi 0, %s510
    %s532 = sphi 0, %s534
    %s535 = sphi 0, %s532
    %s536 = sphi 0, %s535
    %s552 = sphi 0, %s536
    %s558 = sphi 0, %s560
    %s561 = sphi 0, %s558
    %s562 = sphi 0, %s561
    %s578 = sphi 0, %s562
  $region4: #{bert_cls_forward.1} parent=0 // loop_header_branch
    %29 = sbr.rel (%p27) target = $region8
  $region5: #{bert_cls_forward.1} parent=0 // loop_body
    %s31 = ssub.s32 %s26, 1
    %s32 = ssub.s32 %s26, 2
    %s39 = sadd.s32 1, %s34
    %p40 = scmp.ge.s32.totalorder %s39, 2
    %s41 = scalar_select %p40, 0, %s39
    %s42 = sadd.s32 1, %s33
    %s43 = scalar_select %p40, %s42, %s33
    %p44 = scmp.ge.s32.totalorder %s43, 2
    %s45 = scalar_select %p44, 0, %s43
    %s46 = ssub.s32 %s33, %s45
    %p47 = scmp.eq.s32.totalorder %s46, 0
    %s49 = sadd.s32 %s48, 1
    %s50 = scalar_select %p47, %s48, %s49
    %p53 = pneg %p47
    %p54 = scmp.eq.s32.totalorder %s26, 3
    %p55 = por %p53, %p54
    %p56 = scmp.ne.s32.totalorder %s48, %s51
    %p57 = scmp.eq.s32.totalorder %s26, 0
    %p58 = por %p56, %p57
    %p59 = scmp.ne.s32.totalorder %s48, %s51
    %p60 = scmp.eq.s32.totalorder %s31, 3
    %p61 = por %p59, %p60
    %p62 = scmp.ne.s32.totalorder %s51, %s52
    %p63 = scmp.eq.s32.totalorder %s31, 0
    %p64 = por %p62, %p63
    %p65 = scmp.ne.s32.totalorder %s51, %s52
    %p66 = scmp.eq.s32.totalorder %s32, 3
    %p67 = por %p65, %p66
    %p69 = scmp.ne.s32.totalorder %s52, %s68
    %p70 = scmp.eq.s32.totalorder %s32, 0
    %p71 = por %p69, %p70
    %s72 = ssub.s32 %s33, %s45
    %p73 = scmp.eq.s32.totalorder %s72, 0
    %s75 = sadd.s32 %s74, 1
    %s76 = scalar_select %p73, %s74, %s75
    %p79 = pneg %p73
    %p80 = scmp.eq.s32.totalorder %s26, 3
    %p81 = por %p79, %p80
    %p82 = scmp.ne.s32.totalorder %s74, %s77
    %p83 = scmp.eq.s32.totalorder %s26, 0
    %p84 = por %p82, %p83
    %p85 = scmp.ne.s32.totalorder %s74, %s77
    %p86 = scmp.eq.s32.totalorder %s31, 3
    %p87 = por %p85, %p86
    %p88 = scmp.ne.s32.totalorder %s77, %s78
    %p89 = scmp.eq.s32.totalorder %s31, 0
    %p90 = por %p88, %p89
    %p91 = scmp.ne.s32.totalorder %s77, %s78
    %p92 = scmp.eq.s32.totalorder %s32, 3
    %p93 = por %p91, %p92
    %p95 = scmp.ne.s32.totalorder %s78, %s94
    %p96 = scmp.eq.s32.totalorder %s32, 0
    %p97 = por %p95, %p96
    %s99 = sadd.s32 %s98, 1
    %p102 = scmp.eq.s32.totalorder %s26, 3
    %p103 = scmp.ne.s32.totalorder %s98, %s100
    %p104 = scmp.eq.s32.totalorder %s26, 0
    %p105 = por %p103, %p104
    %p106 = scmp.ne.s32.totalorder %s98, %s100
    %p107 = scmp.eq.s32.totalorder %s31, 3
    %p108 = por %p106, %p107
    %p109 = scmp.ne.s32.totalorder %s100, %s101
    %p110 = scmp.eq.s32.totalorder %s31, 0
    %p111 = por %p109, %p110
    %p112 = scmp.ne.s32.totalorder %s100, %s101
    %p113 = scmp.eq.s32.totalorder %s32, 3
    %p114 = por %p112, %p113
    %p116 = scmp.ne.s32.totalorder %s101, %s115
    %p117 = scmp.eq.s32.totalorder %s32, 0
    %p118 = por %p116, %p117
    %s120 = sadd.s32 %s119, 1
    %p123 = scmp.eq.s32.totalorder %s26, 3
    %p124 = scmp.ne.s32.totalorder %s119, %s121
    %p125 = scmp.eq.s32.totalorder %s26, 0
    %p126 = por %p124, %p125
    %p127 = scmp.ne.s32.totalorder %s119, %s121
    %p128 = scmp.eq.s32.totalorder %s31, 3
    %p129 = por %p127, %p128
    %p130 = scmp.ne.s32.totalorder %s121, %s122
    %p131 = scmp.eq.s32.totalorder %s31, 0
    %p132 = por %p130, %p131
    %p133 = scmp.ne.s32.totalorder %s121, %s122
    %p134 = scmp.eq.s32.totalorder %s32, 3
    %p135 = por %p133, %p134
    %p137 = scmp.ne.s32.totalorder %s122, %s136
    %p138 = scmp.eq.s32.totalorder %s32, 0
    %p139 = por %p137, %p138
    %s140 = ssub.s32 %s34, %s41
    %p141 = scmp.eq.s32.totalorder %s140, 0
    %s143 = sadd.s32 %s142, 1
    %s144 = scalar_select %p141, %s142, %s143
    %p147 = pneg %p141
    %p148 = scmp.eq.s32.totalorder %s26, 3
    %p149 = por %p147, %p148
    %p150 = scmp.ne.s32.totalorder %s142, %s145
    %p151 = scmp.eq.s32.totalorder %s26, 0
    %p152 = por %p150, %p151
    %p153 = scmp.ne.s32.totalorder %s142, %s145
    %p154 = scmp.eq.s32.totalorder %s31, 3
    %p155 = por %p153, %p154
    %p156 = scmp.ne.s32.totalorder %s145, %s146
    %p157 = scmp.eq.s32.totalorder %s31, 0
    %p158 = por %p156, %p157
    %p159 = scmp.ne.s32.totalorder %s145, %s146
    %p160 = scmp.eq.s32.totalorder %s32, 3
    %p161 = por %p159, %p160
    %p163 = scmp.ne.s32.totalorder %s146, %s162
    %p164 = scmp.eq.s32.totalorder %s32, 0
    %p165 = por %p163, %p164
    %s166 = ssub.s32 %s34, %s41
    %p167 = scmp.eq.s32.totalorder %s166, 0
    %s169 = sadd.s32 %s168, 1
    %s170 = scalar_select %p167, %s168, %s169
    %p173 = pneg %p167
    %p174 = scmp.eq.s32.totalorder %s26, 3
    %p175 = por %p173, %p174
    %p176 = scmp.ne.s32.totalorder %s168, %s171
    %p177 = scmp.eq.s32.totalorder %s26, 0
    %p178 = por %p176, %p177
    %p179 = scmp.ne.s32.totalorder %s168, %s171
    %p180 = scmp.eq.s32.totalorder %s31, 3
    %p181 = por %p179, %p180
    %p182 = scmp.ne.s32.totalorder %s171, %s172
    %p183 = scmp.eq.s32.totalorder %s31, 0
    %p184 = por %p182, %p183
    %p185 = scmp.ne.s32.totalorder %s171, %s172
    %p186 = scmp.eq.s32.totalorder %s32, 3
    %p187 = por %p185, %p186
    %p189 = scmp.ne.s32.totalorder %s172, %s188
    %p190 = scmp.eq.s32.totalorder %s32, 0
    %p191 = por %p189, %p190
    %s192 = ssub.s32 %s34, %s41
    %p193 = scmp.eq.s32.totalorder %s192, 0
    %s195 = sadd.s32 %s194, 1
    %s196 = scalar_select %p193, %s194, %s195
    %p199 = pneg %p193
    %p200 = scmp.eq.s32.totalorder %s26, 3
    %p201 = por %p199, %p200
    %p202 = scmp.ne.s32.totalorder %s194, %s197
    %p203 = scmp.eq.s32.totalorder %s26, 0
    %p204 = por %p202, %p203
    %p205 = scmp.ne.s32.totalorder %s194, %s197
    %p206 = scmp.eq.s32.totalorder %s31, 3
    %p207 = por %p205, %p206
    %p208 = scmp.ne.s32.totalorder %s197, %s198
    %p209 = scmp.eq.s32.totalorder %s31, 0
    %p210 = por %p208, %p209
    %p211 = scmp.ne.s32.totalorder %s197, %s198
    %p212 = scmp.eq.s32.totalorder %s32, 3
    %p213 = por %p211, %p212
    %p215 = scmp.ne.s32.totalorder %s198, %s214
    %p216 = scmp.eq.s32.totalorder %s32, 0
    %p217 = por %p215, %p216
    %s218 = ssub.s32 %s34, %s41
    %p219 = scmp.eq.s32.totalorder %s218, 0
    %s221 = sadd.s32 %s220, 1
    %s222 = scalar_select %p219, %s220, %s221
    %p225 = pneg %p219
    %p226 = scmp.eq.s32.totalorder %s26, 3
    %p227 = por %p225, %p226
    %p228 = scmp.ne.s32.totalorder %s220, %s223
    %p229 = scmp.eq.s32.totalorder %s26, 0
    %p230 = por %p228, %p229
    %p231 = scmp.ne.s32.totalorder %s220, %s223
    %p232 = scmp.eq.s32.totalorder %s31, 3
    %p233 = por %p231, %p232
    %p234 = scmp.ne.s32.totalorder %s223, %s224
    %p235 = scmp.eq.s32.totalorder %s31, 0
    %p236 = por %p234, %p235
    %p237 = scmp.ne.s32.totalorder %s223, %s224
    %p238 = scmp.eq.s32.totalorder %s32, 3
    %p239 = por %p237, %p238
    %p241 = scmp.ne.s32.totalorder %s224, %s240
    %p242 = scmp.eq.s32.totalorder %s32, 0
    %p243 = por %p241, %p242
    %s244 = ssub.s32 %s34, %s41
    %p245 = scmp.eq.s32.totalorder %s244, 0
    %s247 = sadd.s32 %s246, 1
    %s248 = scalar_select %p245, %s246, %s247
    %p251 = pneg %p245
    %p252 = scmp.eq.s32.totalorder %s26, 3
    %p253 = por %p251, %p252
    %p254 = scmp.ne.s32.totalorder %s246, %s249
    %p255 = scmp.eq.s32.totalorder %s26, 0
    %p256 = por %p254, %p255
    %p257 = scmp.ne.s32.totalorder %s246, %s249
    %p258 = scmp.eq.s32.totalorder %s31, 3
    %p259 = por %p257, %p258
    %p260 = scmp.ne.s32.totalorder %s249, %s250
    %p261 = scmp.eq.s32.totalorder %s31, 0
    %p262 = por %p260, %p261
    %p263 = scmp.ne.s32.totalorder %s249, %s250
    %p264 = scmp.eq.s32.totalorder %s32, 3
    %p265 = por %p263, %p264
    %p267 = scmp.ne.s32.totalorder %s250, %s266
    %p268 = scmp.eq.s32.totalorder %s32, 0
    %p269 = por %p267, %p268
    %s270 = ssub.s32 %s34, %s41
    %p271 = scmp.eq.s32.totalorder %s270, 0
    %s273 = sadd.s32 %s272, 1
    %s274 = scalar_select %p271, %s272, %s273
    %p277 = pneg %p271
    %p278 = scmp.eq.s32.totalorder %s26, 3
    %p279 = por %p277, %p278
    %p280 = scmp.ne.s32.totalorder %s272, %s275
    %p281 = scmp.eq.s32.totalorder %s26, 0
    %p282 = por %p280, %p281
    %p283 = scmp.ne.s32.totalorder %s272, %s275
    %p284 = scmp.eq.s32.totalorder %s31, 3
    %p285 = por %p283, %p284
    %p286 = scmp.ne.s32.totalorder %s275, %s276
    %p287 = scmp.eq.s32.totalorder %s31, 0
    %p288 = por %p286, %p287
    %p289 = scmp.ne.s32.totalorder %s275, %s276
    %p290 = scmp.eq.s32.totalorder %s32, 3
    %p291 = por %p289, %p290
    %p293 = scmp.ne.s32.totalorder %s276, %s292
    %p294 = scmp.eq.s32.totalorder %s32, 0
    %p295 = por %p293, %p294
    %s296 = ssub.s32 %s34, %s41
    %p297 = scmp.eq.s32.totalorder %s296, 0
    %s299 = sadd.s32 %s298, 1
    %s300 = scalar_select %p297, %s298, %s299
    %p303 = pneg %p297
    %p304 = scmp.eq.s32.totalorder %s26, 3
    %p305 = por %p303, %p304
    %p306 = scmp.ne.s32.totalorder %s298, %s301
    %p307 = scmp.eq.s32.totalorder %s26, 0
    %p308 = por %p306, %p307
    %p309 = scmp.ne.s32.totalorder %s298, %s301
    %p310 = scmp.eq.s32.totalorder %s31, 3
    %p311 = por %p309, %p310
    %p312 = scmp.ne.s32.totalorder %s301, %s302
    %p313 = scmp.eq.s32.totalorder %s31, 0
    %p314 = por %p312, %p313
    %p315 = scmp.ne.s32.totalorder %s301, %s302
    %p316 = scmp.eq.s32.totalorder %s32, 3
    %p317 = por %p315, %p316
    %p319 = scmp.ne.s32.totalorder %s302, %s318
    %p320 = scmp.eq.s32.totalorder %s32, 0
    %p321 = por %p319, %p320
    %s322 = ssub.s32 %s34, %s41
    %p323 = scmp.eq.s32.totalorder %s322, 0
    %s325 = sadd.s32 %s324, 1
    %s326 = scalar_select %p323, %s324, %s325
    %p329 = pneg %p323
    %p330 = scmp.eq.s32.totalorder %s26, 3
    %p331 = por %p329, %p330
    %p332 = scmp.ne.s32.totalorder %s324, %s327
    %p333 = scmp.eq.s32.totalorder %s26, 0
    %p334 = por %p332, %p333
    %p335 = scmp.ne.s32.totalorder %s324, %s327
    %p336 = scmp.eq.s32.totalorder %s31, 3
    %p337 = por %p335, %p336
    %p338 = scmp.ne.s32.totalorder %s327, %s328
    %p339 = scmp.eq.s32.totalorder %s31, 0
    %p340 = por %p338, %p339
    %p341 = scmp.ne.s32.totalorder %s327, %s328
    %p342 = scmp.eq.s32.totalorder %s32, 3
    %p343 = por %p341, %p342
    %p345 = scmp.ne.s32.totalorder %s328, %s344
    %p346 = scmp.eq.s32.totalorder %s32, 0
    %p347 = por %p345, %p346
    %s348 = ssub.s32 %s34, %s41
    %p349 = scmp.eq.s32.totalorder %s348, 0
    %s351 = sadd.s32 %s350, 1
    %s352 = scalar_select %p349, %s350, %s351
    %p355 = pneg %p349
    %p356 = scmp.eq.s32.totalorder %s26, 3
    %p357 = por %p355, %p356
    %p358 = scmp.ne.s32.totalorder %s350, %s353
    %p359 = scmp.eq.s32.totalorder %s26, 0
    %p360 = por %p358, %p359
    %p361 = scmp.ne.s32.totalorder %s350, %s353
    %p362 = scmp.eq.s32.totalorder %s31, 3
    %p363 = por %p361, %p362
    %p364 = scmp.ne.s32.totalorder %s353, %s354
    %p365 = scmp.eq.s32.totalorder %s31, 0
    %p366 = por %p364, %p365
    %p367 = scmp.ne.s32.totalorder %s353, %s354
    %p368 = scmp.eq.s32.totalorder %s32, 3
    %p369 = por %p367, %p368
    %p371 = scmp.ne.s32.totalorder %s354, %s370
    %p372 = scmp.eq.s32.totalorder %s32, 0
    %p373 = por %p371, %p372
    %s374 = ssub.s32 %s34, %s41
    %p375 = scmp.eq.s32.totalorder %s374, 0
    %s377 = sadd.s32 %s376, 1
    %s378 = scalar_select %p375, %s376, %s377
    %p381 = pneg %p375
    %p382 = scmp.eq.s32.totalorder %s26, 3
    %p383 = por %p381, %p382
    %p384 = scmp.ne.s32.totalorder %s376, %s379
    %p385 = scmp.eq.s32.totalorder %s26, 0
    %p386 = por %p384, %p385
    %p387 = scmp.ne.s32.totalorder %s376, %s379
    %p388 = scmp.eq.s32.totalorder %s31, 3
    %p389 = por %p387, %p388
    %p390 = scmp.ne.s32.totalorder %s379, %s380
    %p391 = scmp.eq.s32.totalorder %s31, 0
    %p392 = por %p390, %p391
    %p393 = scmp.ne.s32.totalorder %s379, %s380
    %p394 = scmp.eq.s32.totalorder %s32, 3
    %p395 = por %p393, %p394
    %p397 = scmp.ne.s32.totalorder %s380, %s396
    %p398 = scmp.eq.s32.totalorder %s32, 0
    %p399 = por %p397, %p398
    %s400 = ssub.s32 %s34, %s41
    %p401 = scmp.eq.s32.totalorder %s400, 0
    %s403 = sadd.s32 %s402, 1
    %s404 = scalar_select %p401, %s402, %s403
    %p407 = pneg %p401
    %p408 = scmp.eq.s32.totalorder %s26, 3
    %p409 = por %p407, %p408
    %p410 = scmp.ne.s32.totalorder %s402, %s405
    %p411 = scmp.eq.s32.totalorder %s26, 0
    %p412 = por %p410, %p411
    %p413 = scmp.ne.s32.totalorder %s402, %s405
    %p414 = scmp.eq.s32.totalorder %s31, 3
    %p415 = por %p413, %p414
    %p416 = scmp.ne.s32.totalorder %s405, %s406
    %p417 = scmp.eq.s32.totalorder %s31, 0
    %p418 = por %p416, %p417
    %p419 = scmp.ne.s32.totalorder %s405, %s406
    %p420 = scmp.eq.s32.totalorder %s32, 3
    %p421 = por %p419, %p420
    %p423 = scmp.ne.s32.totalorder %s406, %s422
    %p424 = scmp.eq.s32.totalorder %s32, 0
    %p425 = por %p423, %p424
    %s426 = ssub.s32 %s34, %s41
    %p427 = scmp.eq.s32.totalorder %s426, 0
    %s429 = sadd.s32 %s428, 1
    %s430 = scalar_select %p427, %s428, %s429
    %p433 = pneg %p427
    %p434 = scmp.eq.s32.totalorder %s26, 3
    %p435 = por %p433, %p434
    %p436 = scmp.ne.s32.totalorder %s428, %s431
    %p437 = scmp.eq.s32.totalorder %s26, 0
    %p438 = por %p436, %p437
    %p439 = scmp.ne.s32.totalorder %s428, %s431
    %p440 = scmp.eq.s32.totalorder %s31, 3
    %p441 = por %p439, %p440
    %p442 = scmp.ne.s32.totalorder %s431, %s432
    %p443 = scmp.eq.s32.totalorder %s31, 0
    %p444 = por %p442, %p443
    %p445 = scmp.ne.s32.totalorder %s431, %s432
    %p446 = scmp.eq.s32.totalorder %s32, 3
    %p447 = por %p445, %p446
    %p449 = scmp.ne.s32.totalorder %s432, %s448
    %p450 = scmp.eq.s32.totalorder %s32, 0
    %p451 = por %p449, %p450
    %s452 = ssub.s32 %s34, %s41
    %p453 = scmp.eq.s32.totalorder %s452, 0
    %s455 = sadd.s32 %s454, 1
    %s456 = scalar_select %p453, %s454, %s455
    %p459 = pneg %p453
    %p460 = scmp.eq.s32.totalorder %s26, 3
    %p461 = por %p459, %p460
    %p462 = scmp.ne.s32.totalorder %s454, %s457
    %p463 = scmp.eq.s32.totalorder %s26, 0
    %p464 = por %p462, %p463
    %p465 = scmp.ne.s32.totalorder %s454, %s457
    %p466 = scmp.eq.s32.totalorder %s31, 3
    %p467 = por %p465, %p466
    %p468 = scmp.ne.s32.totalorder %s457, %s458
    %p469 = scmp.eq.s32.totalorder %s31, 0
    %p470 = por %p468, %p469
    %p471 = scmp.ne.s32.totalorder %s457, %s458
    %p472 = scmp.eq.s32.totalorder %s32, 3
    %p473 = por %p471, %p472
    %p475 = scmp.ne.s32.totalorder %s458, %s474
    %p476 = scmp.eq.s32.totalorder %s32, 0
    %p477 = por %p475, %p476
    %s478 = ssub.s32 %s34, %s41
    %p479 = scmp.eq.s32.totalorder %s478, 0
    %s481 = sadd.s32 %s480, 1
    %s482 = scalar_select %p479, %s480, %s481
    %p485 = pneg %p479
    %p486 = scmp.eq.s32.totalorder %s26, 3
    %p487 = por %p485, %p486
    %p488 = scmp.ne.s32.totalorder %s480, %s483
    %p489 = scmp.eq.s32.totalorder %s26, 0
    %p490 = por %p488, %p489
    %p491 = scmp.ne.s32.totalorder %s480, %s483
    %p492 = scmp.eq.s32.totalorder %s31, 3
    %p493 = por %p491, %p492
    %p494 = scmp.ne.s32.totalorder %s483, %s484
    %p495 = scmp.eq.s32.totalorder %s31, 0
    %p496 = por %p494, %p495
    %p497 = scmp.ne.s32.totalorder %s483, %s484
    %p498 = scmp.eq.s32.totalorder %s32, 3
    %p499 = por %p497, %p498
    %p501 = scmp.ne.s32.totalorder %s484, %s500
    %p502 = scmp.eq.s32.totalorder %s32, 0
    %p503 = por %p501, %p502
    %s504 = ssub.s32 %s34, %s41
    %p505 = scmp.eq.s32.totalorder %s504, 0
    %s507 = sadd.s32 %s506, 1
    %s508 = scalar_select %p505, %s506, %s507
    %p511 = pneg %p505
    %p512 = scmp.eq.s32.totalorder %s26, 3
    %p513 = por %p511, %p512
    %p514 = scmp.ne.s32.totalorder %s506, %s509
    %p515 = scmp.eq.s32.totalorder %s26, 0
    %p516 = por %p514, %p515
    %p517 = scmp.ne.s32.totalorder %s506, %s509
    %p518 = scmp.eq.s32.totalorder %s31, 3
    %p519 = por %p517, %p518
    %p520 = scmp.ne.s32.totalorder %s509, %s510
    %p521 = scmp.eq.s32.totalorder %s31, 0
    %p522 = por %p520, %p521
    %p523 = scmp.ne.s32.totalorder %s509, %s510
    %p524 = scmp.eq.s32.totalorder %s32, 3
    %p525 = por %p523, %p524
    %p527 = scmp.ne.s32.totalorder %s510, %s526
    %p528 = scmp.eq.s32.totalorder %s32, 0
    %p529 = por %p527, %p528
    %s530 = ssub.s32 %s34, %s41
    %p531 = scmp.eq.s32.totalorder %s530, 0
    %s533 = sadd.s32 %s532, 1
    %s534 = scalar_select %p531, %s532, %s533
    %p537 = pneg %p531
    %p538 = scmp.eq.s32.totalorder %s26, 3
    %p539 = por %p537, %p538
    %p540 = scmp.ne.s32.totalorder %s532, %s535
    %p541 = scmp.eq.s32.totalorder %s26, 0
    %p542 = por %p540, %p541
    %p543 = scmp.ne.s32.totalorder %s532, %s535
    %p544 = scmp.eq.s32.totalorder %s31, 3
    %p545 = por %p543, %p544
    %p546 = scmp.ne.s32.totalorder %s535, %s536
    %p547 = scmp.eq.s32.totalorder %s31, 0
    %p548 = por %p546, %p547
    %p549 = scmp.ne.s32.totalorder %s535, %s536
    %p550 = scmp.eq.s32.totalorder %s32, 3
    %p551 = por %p549, %p550
    %p553 = scmp.ne.s32.totalorder %s536, %s552
    %p554 = scmp.eq.s32.totalorder %s32, 0
    %p555 = por %p553, %p554
    %s556 = ssub.s32 %s33, %s45
    %p557 = scmp.eq.s32.totalorder %s556, 0
    %s559 = sadd.s32 %s558, 1
    %s560 = scalar_select %p557, %s558, %s559
    %p563 = pneg %p557
    %p564 = scmp.eq.s32.totalorder %s26, 3
    %p565 = por %p563, %p564
    %p566 = scmp.ne.s32.totalorder %s558, %s561
    %p567 = scmp.eq.s32.totalorder %s26, 0
    %p568 = por %p566, %p567
    %p569 = scmp.ne.s32.totalorder %s558, %s561
    %p570 = scmp.eq.s32.totalorder %s31, 3
    %p571 = por %p569, %p570
    %p572 = scmp.ne.s32.totalorder %s561, %s562
    %p573 = scmp.eq.s32.totalorder %s31, 0
    %p574 = por %p572, %p573
    %p575 = scmp.ne.s32.totalorder %s561, %s562
    %p576 = scmp.eq.s32.totalorder %s32, 3
    %p577 = por %p575, %p576
    %p579 = scmp.ne.s32.totalorder %s562, %s578
    %p580 = scmp.eq.s32.totalorder %s32, 0
    %p581 = por %p579, %p580
    %p582 = scmp.le.s32.totalorder 1, %s26
    %p583 = scmp.lt.s32.totalorder %s26, 5
    %p584 = pnand %p582, %p583
    %p585 = pneg %p584
    // Predicated region
    $region9: #{bert_cls_forward.1} parent=5 // pred_check
      _
    $region10: #{bert_cls_forward.1} parent=5 // pred_check_branch
      %587 = sbr.rel (%p584) target = $region12
    $region11: #{bert_cls_forward.1} parent=5 // pred_region
      %s588 = ssub.s32 %s26, 1
      // Predicated region
      $region13: #{bert_cls_forward.1} parent=11 // pred_check
        %p589 = pneg %p111
      $region14: #{bert_cls_forward.1} parent=11 // pred_check_branch
        %591 = sbr.rel (%p589) target = $region16
      $region15: #{bert_cls_forward.1} parent=11 // pred_region
        _
      $region16: #{bert_cls_forward.1} parent=11 // pred_fallthru
        _
      // Predicated region
      $region17: #{bert_cls_forward.1} parent=11 // pred_check
        %p592 = pneg %p132
      $region18: #{bert_cls_forward.1} parent=11 // pred_check_branch
        %594 = sbr.rel (%p592) target = $region20
      $region19: #{bert_cls_forward.1} parent=11 // pred_region
        _
      $region20: #{bert_cls_forward.1} parent=11 // pred_fallthru
        _
    $region12: #{bert_cls_forward.1} parent=5 // pred_fallthru
      _
    %p595 = scmp.lt.s32.totalorder %s26, 4
    // Predicated region
    $region21: #{bert_cls_forward.1} parent=5 // pred_check
      %p596 = pneg %p595
    $region22: #{bert_cls_forward.1} parent=5 // pred_check_branch
      %598 = sbr.rel (%p596) target = $region24
    $region23: #{bert_cls_forward.1} parent=5 // pred_region
      // Predicated region
      $region25: #{bert_cls_forward.1} parent=23 // pred_check
        %p599 = pneg %p58
      $region26: #{bert_cls_forward.1} parent=23 // pred_check_branch
        %601 = sbr.rel (%p599) target = $region28
      $region27: #{bert_cls_forward.1} parent=23 // pred_region
        %p602 = scmp.lt.s32.totalorder %s33, 1
        %s603 = scalar_select %p602, %s33, 1
        %s604 = smul.addr %s603, 2
        %s605 = smul.addr %s604, 8
        %s606 = scalar_lea.vmem %s0, %s605
      $region28: #{bert_cls_forward.1} parent=23 // pred_fallthru
        _
      // Predicated region
      $region29: #{bert_cls_forward.1} parent=23 // pred_check
        %p607 = pneg %p84
      $region30: #{bert_cls_forward.1} parent=23 // pred_check_branch
        %609 = sbr.rel (%p607) target = $region32
      $region31: #{bert_cls_forward.1} parent=23 // pred_region
        %p610 = scmp.lt.s32.totalorder %s33, 1
        %s611 = scalar_select %p610, %s33, 1
        %s612 = scalar_lea.vmem %s1, %s611
      $region32: #{bert_cls_forward.1} parent=23 // pred_fallthru
        _
      // Predicated region
      $region33: #{bert_cls_forward.1} parent=23 // pred_check
        %p613 = pneg %p152
      $region34: #{bert_cls_forward.1} parent=23 // pred_check_branch
        %615 = sbr.rel (%p613) target = $region36
      $region35: #{bert_cls_forward.1} parent=23 // pred_region
        %p616 = scmp.lt.s32.totalorder %s34, 1
        %s617 = scalar_select %p616, %s34, 1
        %s618 = smul.addr %s617, 32
        %s619 = smul.addr %s618, 4
        %s620 = scalar_lea.vmem %s4, %s619
      $region36: #{bert_cls_forward.1} parent=23 // pred_fallthru
        _
      // Predicated region
      $region37: #{bert_cls_forward.1} parent=23 // pred_check
        %p621 = pneg %p178
      $region38: #{bert_cls_forward.1} parent=23 // pred_check_branch
        %623 = sbr.rel (%p621) target = $region40
      $region39: #{bert_cls_forward.1} parent=23 // pred_region
        %p624 = scmp.lt.s32.totalorder %s34, 1
        %s625 = scalar_select %p624, %s34, 1
        %s626 = smul.addr %s625, 2
        %s627 = scalar_lea.vmem %s5, %s626
      $region40: #{bert_cls_forward.1} parent=23 // pred_fallthru
        _
      // Predicated region
      $region41: #{bert_cls_forward.1} parent=23 // pred_check
        %p628 = pneg %p204
      $region42: #{bert_cls_forward.1} parent=23 // pred_check_branch
        %630 = sbr.rel (%p628) target = $region44
      $region43: #{bert_cls_forward.1} parent=23 // pred_region
        %p631 = scmp.lt.s32.totalorder %s34, 1
        %s632 = scalar_select %p631, %s34, 1
        %s633 = smul.addr %s632, 32
        %s634 = smul.addr %s633, 4
        %s635 = scalar_lea.vmem %s6, %s634
      $region44: #{bert_cls_forward.1} parent=23 // pred_fallthru
        _
      // Predicated region
      $region45: #{bert_cls_forward.1} parent=23 // pred_check
        %p636 = pneg %p230
      $region46: #{bert_cls_forward.1} parent=23 // pred_check_branch
        %638 = sbr.rel (%p636) target = $region48
      $region47: #{bert_cls_forward.1} parent=23 // pred_region
        %p639 = scmp.lt.s32.totalorder %s34, 1
        %s640 = scalar_select %p639, %s34, 1
        %s641 = smul.addr %s640, 2
        %s642 = scalar_lea.vmem %s7, %s641
      $region48: #{bert_cls_forward.1} parent=23 // pred_fallthru
        _
      // Predicated region
      $region49: #{bert_cls_forward.1} parent=23 // pred_check
        %p643 = pneg %p256
      $region50: #{bert_cls_forward.1} parent=23 // pred_check_branch
        %645 = sbr.rel (%p643) target = $region52
      $region51: #{bert_cls_forward.1} parent=23 // pred_region
        %p646 = scmp.lt.s32.totalorder %s34, 1
        %s647 = scalar_select %p646, %s34, 1
        %s648 = smul.addr %s647, 32
        %s649 = smul.addr %s648, 4
        %s650 = scalar_lea.vmem %s8, %s649
      $region52: #{bert_cls_forward.1} parent=23 // pred_fallthru
        _
      // Predicated region
      $region53: #{bert_cls_forward.1} parent=23 // pred_check
        %p651 = pneg %p282
      $region54: #{bert_cls_forward.1} parent=23 // pred_check_branch
        %653 = sbr.rel (%p651) target = $region56
      $region55: #{bert_cls_forward.1} parent=23 // pred_region
        %p654 = scmp.lt.s32.totalorder %s34, 1
        %s655 = scalar_select %p654, %s34, 1
        %s656 = smul.addr %s655, 2
        %s657 = scalar_lea.vmem %s9, %s656
      $region56: #{bert_cls_forward.1} parent=23 // pred_fallthru
        _
      // Predicated region
      $region57: #{bert_cls_forward.1} parent=23 // pred_check
        %p658 = pneg %p308
      $region58: #{bert_cls_forward.1} parent=23 // pred_check_branch
        %660 = sbr.rel (%p658) target = $region60
      $region59: #{bert_cls_forward.1} parent=23 // pred_region
        %p661 = scmp.lt.s32.totalorder %s34, 1
        %s662 = scalar_select %p661, %s34, 1
        %s663 = smul.addr %s662, 16
        %s664 = smul.addr %s663, 4
        %s665 = scalar_lea.vmem %s10, %s664
      $region60: #{bert_cls_forward.1} parent=23 // pred_fallthru
        _
      // Predicated region
      $region61: #{bert_cls_forward.1} parent=23 // pred_check
        %p666 = pneg %p334
      $region62: #{bert_cls_forward.1} parent=23 // pred_check_branch
        %668 = sbr.rel (%p666) target = $region64
      $region63: #{bert_cls_forward.1} parent=23 // pred_region
        %p669 = scmp.lt.s32.totalorder %s34, 1
        %s670 = scalar_select %p669, %s34, 1
        %s671 = scalar_lea.vmem %s11, %s670
      $region64: #{bert_cls_forward.1} parent=23 // pred_fallthru
        _
      // Predicated region
      $region65: #{bert_cls_forward.1} parent=23 // pred_check
        %p672 = pneg %p360
      $region66: #{bert_cls_forward.1} parent=23 // pred_check_branch
        %674 = sbr.rel (%p672) target = $region68
      $region67: #{bert_cls_forward.1} parent=23 // pred_region
        %p675 = scmp.lt.s32.totalorder %s34, 1
        %s676 = scalar_select %p675, %s34, 1
        %s677 = scalar_lea.vmem %s12, %s676
      $region68: #{bert_cls_forward.1} parent=23 // pred_fallthru
        _
      // Predicated region
      $region69: #{bert_cls_forward.1} parent=23 // pred_check
        %p678 = pneg %p386
      $region70: #{bert_cls_forward.1} parent=23 // pred_check_branch
        %680 = sbr.rel (%p678) target = $region72
      $region71: #{bert_cls_forward.1} parent=23 // pred_region
        %p681 = scmp.lt.s32.totalorder %s34, 1
        %s682 = scalar_select %p681, %s34, 1
        %s683 = scalar_lea.vmem %s13, %s682
      $region72: #{bert_cls_forward.1} parent=23 // pred_fallthru
        _
      // Predicated region
      $region73: #{bert_cls_forward.1} parent=23 // pred_check
        %p684 = pneg %p412
      $region74: #{bert_cls_forward.1} parent=23 // pred_check_branch
        %686 = sbr.rel (%p684) target = $region76
      $region75: #{bert_cls_forward.1} parent=23 // pred_region
        %p687 = scmp.lt.s32.totalorder %s34, 1
        %s688 = scalar_select %p687, %s34, 1
        %s689 = smul.addr %s688, 64
        %s690 = smul.addr %s689, 4
        %s691 = scalar_lea.vmem %s14, %s690
      $region76: #{bert_cls_forward.1} parent=23 // pred_fallthru
        _
      // Predicated region
      $region77: #{bert_cls_forward.1} parent=23 // pred_check
        %p692 = pneg %p438
      $region78: #{bert_cls_forward.1} parent=23 // pred_check_branch
        %694 = sbr.rel (%p692) target = $region80
      $region79: #{bert_cls_forward.1} parent=23 // pred_region
        %p695 = scmp.lt.s32.totalorder %s34, 1
        %s696 = scalar_select %p695, %s34, 1
        %s697 = smul.addr %s696, 4
        %s698 = scalar_lea.vmem %s15, %s697
      $region80: #{bert_cls_forward.1} parent=23 // pred_fallthru
        _
      // Predicated region
      $region81: #{bert_cls_forward.1} parent=23 // pred_check
        %p699 = pneg %p464
      $region82: #{bert_cls_forward.1} parent=23 // pred_check_branch
        %701 = sbr.rel (%p699) target = $region84
      $region83: #{bert_cls_forward.1} parent=23 // pred_region
        %p702 = scmp.lt.s32.totalorder %s34, 1
        %s703 = scalar_select %p702, %s34, 1
        %s704 = smul.addr %s703, 64
        %s705 = smul.addr %s704, 4
        %s706 = scalar_lea.vmem %s16, %s705
      $region84: #{bert_cls_forward.1} parent=23 // pred_fallthru
        _
      // Predicated region
      $region85: #{bert_cls_forward.1} parent=23 // pred_check
        %p707 = pneg %p490
      $region86: #{bert_cls_forward.1} parent=23 // pred_check_branch
        %709 = sbr.rel (%p707) target = $region88
      $region87: #{bert_cls_forward.1} parent=23 // pred_region
        %p710 = scmp.lt.s32.totalorder %s34, 1
        %s711 = scalar_select %p710, %s34, 1
        %s712 = scalar_lea.vmem %s17, %s711
      $region88: #{bert_cls_forward.1} parent=23 // pred_fallthru
        _
      // Predicated region
      $region89: #{bert_cls_forward.1} parent=23 // pred_check
        %p713 = pneg %p516
      $region90: #{bert_cls_forward.1} parent=23 // pred_check_branch
        %715 = sbr.rel (%p713) target = $region92
      $region91: #{bert_cls_forward.1} parent=23 // pred_region
        %p716 = scmp.lt.s32.totalorder %s34, 1
        %s717 = scalar_select %p716, %s34, 1
        %s718 = scalar_lea.vmem %s18, %s717
      $region92: #{bert_cls_forward.1} parent=23 // pred_fallthru
        _
      // Predicated region
      $region93: #{bert_cls_forward.1} parent=23 // pred_check
        %p719 = pneg %p542
      $region94: #{bert_cls_forward.1} parent=23 // pred_check_branch
        %721 = sbr.rel (%p719) target = $region96
      $region95: #{bert_cls_forward.1} parent=23 // pred_region
        %p722 = scmp.lt.s32.totalorder %s34, 1
        %s723 = scalar_select %p722, %s34, 1
        %s724 = scalar_lea.vmem %s19, %s723
      $region96: #{bert_cls_forward.1} parent=23 // pred_fallthru
        _
    $region24: #{bert_cls_forward.1} parent=5 // pred_fallthru
      _
    %p725 = scmp.le.s32.totalorder 1, %s26
    %p726 = scmp.lt.s32.totalorder %s26, 5
    %p727 = pnand %p725, %p726
    %p728 = pneg %p727
    // Predicated region
    $region97: #{bert_cls_forward.1} parent=5 // pred_check
      _
    $region98: #{bert_cls_forward.1} parent=5 // pred_check_branch
      %730 = sbr.rel (%p727) target = $region100
    $region99: #{bert_cls_forward.1} parent=5 // pred_region
      %s731 = ssub.s32 %s26, 1
      %p732 = scmp.lt.s32.totalorder %s35, 1
      %s733 = scalar_select %p732, %s35, 1
      %s734 = smul.addr %s733, 2
      %s735 = smul.addr %s734, 8
      %s736 = scalar_lea.vmem %s0, %s735
      %p737 = pneg %p64
      %p738 = pneg %p61
      %p739 = scmp.lt.s32.totalorder %s35, 1
      %s740 = scalar_select %p739, %s35, 1
      %s741 = scalar_lea.vmem %s1, %s740
      %p742 = pneg %p90
      %p743 = pneg %p87
      %p744 = pneg %p111
      %p745 = pneg %p108
      %p746 = pneg %p132
      %p747 = pneg %p129
      %p748 = scmp.lt.s32.totalorder %s36, 1
      %s749 = scalar_select %p748, %s36, 1
      %s750 = smul.addr %s749, 32
      %s751 = smul.addr %s750, 4
      %s752 = scalar_lea.vmem %s4, %s751
      %p753 = pneg %p158
      %p754 = pneg %p155
      %p755 = scmp.lt.s32.totalorder %s36, 1
      %s756 = scalar_select %p755, %s36, 1
      %s757 = smul.addr %s756, 2
      %s758 = scalar_lea.vmem %s5, %s757
      %p759 = pneg %p184
      %p760 = pneg %p181
      %p761 = scmp.lt.s32.totalorder %s36, 1
      %s762 = scalar_select %p761, %s36, 1
      %s763 = smul.addr %s762, 32
      %s764 = smul.addr %s763, 4
      %s765 = scalar_lea.vmem %s6, %s764
      %p766 = pneg %p210
      %p767 = pneg %p207
      %p768 = scmp.lt.s32.totalorder %s36, 1
      %s769 = scalar_select %p768, %s36, 1
      %s770 = smul.addr %s769, 2
      %s771 = scalar_lea.vmem %s7, %s770
      %p772 = pneg %p236
      %p773 = pneg %p233
      %p774 = scmp.lt.s32.totalorder %s36, 1
      %s775 = scalar_select %p774, %s36, 1
      %s776 = smul.addr %s775, 32
      %s777 = smul.addr %s776, 4
      %s778 = scalar_lea.vmem %s8, %s777
      %p779 = pneg %p262
      %p780 = pneg %p259
      %p781 = scmp.lt.s32.totalorder %s36, 1
      %s782 = scalar_select %p781, %s36, 1
      %s783 = smul.addr %s782, 2
      %s784 = scalar_lea.vmem %s9, %s783
      %p785 = pneg %p288
      %p786 = pneg %p285
      %p787 = scmp.lt.s32.totalorder %s36, 1
      %s788 = scalar_select %p787, %s36, 1
      %s789 = smul.addr %s788, 16
      %s790 = smul.addr %s789, 4
      %s791 = scalar_lea.vmem %s10, %s790
      %p792 = pneg %p314
      %p793 = pneg %p311
      %p794 = scmp.lt.s32.totalorder %s36, 1
      %s795 = scalar_select %p794, %s36, 1
      %s796 = scalar_lea.vmem %s11, %s795
      %p797 = pneg %p340
      %p798 = pneg %p337
      %p799 = scmp.lt.s32.totalorder %s36, 1
      %s800 = scalar_select %p799, %s36, 1
      %s801 = scalar_lea.vmem %s12, %s800
      %p802 = pneg %p366
      %p803 = pneg %p363
      %p804 = scmp.lt.s32.totalorder %s36, 1
      %s805 = scalar_select %p804, %s36, 1
      %s806 = scalar_lea.vmem %s13, %s805
      %p807 = pneg %p392
      %p808 = pneg %p389
      %p809 = scmp.lt.s32.totalorder %s36, 1
      %s810 = scalar_select %p809, %s36, 1
      %s811 = smul.addr %s810, 64
      %s812 = smul.addr %s811, 4
      %s813 = scalar_lea.vmem %s14, %s812
      %p814 = pneg %p418
      %p815 = pneg %p415
      %p816 = scmp.lt.s32.totalorder %s36, 1
      %s817 = scalar_select %p816, %s36, 1
      %s818 = smul.addr %s817, 4
      %s819 = scalar_lea.vmem %s15, %s818
      %p820 = pneg %p444
      %p821 = pneg %p441
      %p822 = scmp.lt.s32.totalorder %s36, 1
      %s823 = scalar_select %p822, %s36, 1
      %s824 = smul.addr %s823, 64
      %s825 = smul.addr %s824, 4
      %s826 = scalar_lea.vmem %s16, %s825
      %p827 = pneg %p470
      %p828 = pneg %p467
      %p829 = scmp.lt.s32.totalorder %s36, 1
      %s830 = scalar_select %p829, %s36, 1
      %s831 = scalar_lea.vmem %s17, %s830
      %p832 = pneg %p496
      %p833 = pneg %p493
      %p834 = scmp.lt.s32.totalorder %s36, 1
      %s835 = scalar_select %p834, %s36, 1
      %s836 = scalar_lea.vmem %s18, %s835
      %p837 = pneg %p522
      %p838 = pneg %p519
      %p839 = scmp.lt.s32.totalorder %s36, 1
      %s840 = scalar_select %p839, %s36, 1
      %s841 = scalar_lea.vmem %s19, %s840
      %p842 = pneg %p548
      %p843 = pneg %p545
      %p844 = pneg %p574
      %p845 = pneg %p571
      %p846 = scmp.lt.s32.totalorder %s35, 1
      %s847 = scalar_select %p846, %s35, 1
      %s848 = smul.addr %s847, 2
      %s849 = smul.addr %s848, 8
      %s850 = scalar_lea.vmem %s20, %s849
      %p851 = scmp.lt.s32.totalorder %s35, 1
      %s852 = scalar_select %p851, %s35, 1
      %s853 = smul.addr %s852, 2
      %s854 = smul.addr %s853, 8
      %s855 = scalar_lea.vmem %s0, %s854
      %p856 = scmp.lt.s32.totalorder %s35, 1
      %s857 = scalar_select %p856, %s35, 1
      %s858 = scalar_lea.vmem %s1, %s857
      %p859 = scmp.lt.s32.totalorder %s36, 1
      %s860 = scalar_select %p859, %s36, 1
      %s861 = smul.addr %s860, 32
      %s862 = smul.addr %s861, 4
      %s863 = scalar_lea.vmem %s4, %s862
      %p864 = scmp.lt.s32.totalorder %s36, 1
      %s865 = scalar_select %p864, %s36, 1
      %s866 = smul.addr %s865, 2
      %s867 = scalar_lea.vmem %s5, %s866
      %p868 = scmp.lt.s32.totalorder %s36, 1
      %s869 = scalar_select %p868, %s36, 1
      %s870 = smul.addr %s869, 32
      %s871 = smul.addr %s870, 4
      %s872 = scalar_lea.vmem %s6, %s871
      %p873 = scmp.lt.s32.totalorder %s36, 1
      %s874 = scalar_select %p873, %s36, 1
      %s875 = smul.addr %s874, 2
      %s876 = scalar_lea.vmem %s7, %s875
      %p877 = scmp.lt.s32.totalorder %s36, 1
      %s878 = scalar_select %p877, %s36, 1
      %s879 = smul.addr %s878, 32
      %s880 = smul.addr %s879, 4
      %s881 = scalar_lea.vmem %s8, %s880
      %p882 = scmp.lt.s32.totalorder %s36, 1
      %s883 = scalar_select %p882, %s36, 1
      %s884 = smul.addr %s883, 2
      %s885 = scalar_lea.vmem %s9, %s884
      %p886 = scmp.lt.s32.totalorder %s36, 1
      %s887 = scalar_select %p886, %s36, 1
      %s888 = smul.addr %s887, 16
      %s889 = smul.addr %s888, 4
      %s890 = scalar_lea.vmem %s10, %s889
      %p891 = scmp.lt.s32.totalorder %s36, 1
      %s892 = scalar_select %p891, %s36, 1
      %s893 = scalar_lea.vmem %s11, %s892
      %p894 = scmp.lt.s32.totalorder %s36, 1
      %s895 = scalar_select %p894, %s36, 1
      %s896 = scalar_lea.vmem %s12, %s895
      %p897 = scmp.lt.s32.totalorder %s36, 1
      %s898 = scalar_select %p897, %s36, 1
      %s899 = scalar_lea.vmem %s13, %s898
      %p900 = scmp.lt.s32.totalorder %s36, 1
      %s901 = scalar_select %p900, %s36, 1
      %s902 = smul.addr %s901, 64
      %s903 = smul.addr %s902, 4
      %s904 = scalar_lea.vmem %s14, %s903
      %p905 = scmp.lt.s32.totalorder %s36, 1
      %s906 = scalar_select %p905, %s36, 1
      %s907 = smul.addr %s906, 4
      %s908 = scalar_lea.vmem %s15, %s907
      %p909 = scmp.lt.s32.totalorder %s36, 1
      %s910 = scalar_select %p909, %s36, 1
      %s911 = smul.addr %s910, 64
      %s912 = smul.addr %s911, 4
      %s913 = scalar_lea.vmem %s16, %s912
      %p914 = scmp.lt.s32.totalorder %s36, 1
      %s915 = scalar_select %p914, %s36, 1
      %s916 = scalar_lea.vmem %s17, %s915
      %p917 = scmp.lt.s32.totalorder %s36, 1
      %s918 = scalar_select %p917, %s36, 1
      %s919 = scalar_lea.vmem %s18, %s918
      %p920 = scmp.lt.s32.totalorder %s36, 1
      %s921 = scalar_select %p920, %s36, 1
      %s922 = scalar_lea.vmem %s19, %s921
      %p923 = scmp.lt.s32.totalorder %s35, 1
      %s924 = scalar_select %p923, %s35, 1
      %s925 = smul.addr %s924, 2
      %s926 = smul.addr %s925, 8
      %s927 = scalar_lea.vmem %s20, %s926
      %p929 = scmp.eq.s32.totalorder %s36, 0
      // Predicated region
      $region101: #{bert_cls_forward.1} parent=99 // pred_check
        %p930 = pneg %p929
      $region102: #{bert_cls_forward.1} parent=99 // pred_check_branch
        %932 = sbr.rel (%p930) target = $region104
      $region103: #{bert_cls_forward.1} parent=99 // pred_region
        %v933 = vld [vmem:[%s855] sm:$0xff]
        %v934 = vld [vmem:[%s855 + $0x8] sm:$0xff]
        %v935 = vld [vmem:[%s2] sm:$0x1]
        %v936 = vld [vmem:[%s3] sm:$0x1]
        %937 = vadd.xlane.f32.xlu0 %v933
        %v938 = vpop.xlane.xlu0 %937
        %939 = vadd.xlane.f32.xlu0 %v934
        %v940 = vpop.xlane.xlu0 %939
        %v941 = vrcp.pop 128.0
        %v942 = vmul.f32 %v938, %v941
        %v943 = vmul.f32 %v940, %v941
        %v944 = vsub.f32 %v933, %v942
        %v945 = vsub.f32 %v934, %v943
        %v946 = vmul.f32 %v944, %v944
        %v947 = vmul.f32 %v945, %v945
        %948 = vadd.xlane.f32.xlu0 %v946
        %v949 = vpop.xlane.xlu0 %948
        %950 = vadd.xlane.f32.xlu0 %v947
        %v951 = vpop.xlane.xlu0 %950
        %v952 = vmul.f32 %v949, %v941
        %v953 = vmul.f32 %v951, %v941
        %v954 = vadd.f32 %v952, 1e-12
        %v955 = vadd.f32 %v953, 1e-12
        %v956 = vrsqrt.pop %v954
        %v957 = vrsqrt.pop %v955
        %v958 = vmul.f32 %v944, %v956
        %v959 = vmul.f32 %v945, %v957
        %v961 = vlaneseq
        %v962 = vshrl.u32 %v961, 7
        %v963 = vsub.s32 0, %v962
        %v964 = vrot.slane %v935, %v963
        %v966 = vmul.f32 %v958, %v964
        %v967 = vmul.f32 %v959, %v964
        %v969 = vlaneseq
        %v970 = vshrl.u32 %v969, 7
        %v971 = vsub.s32 0, %v970
        %v972 = vrot.slane %v936, %v971
        %v974 = vadd.f32 %v966, %v972
        %v975 = vadd.f32 %v967, %v972
        %976 = vst [vmem:[%s927] sm:$0xff] %v974
        %977 = vst [vmem:[%s927 + $0x8] sm:$0xff] %v975
      $region104: #{bert_cls_forward.1} parent=99 // pred_fallthru
        _
      %v978 = vld [vmem:[%s927] sm:$0xff]
      %v979 = vld [vmem:[%s927 + $0x8] sm:$0xff]
      %v980 = vpack.c.bf16 %v979, %v978
      %v981 = vld [vmem:[%s858] sm:$0x1]
      %v982 = vld [vmem:[%s893] sm:$0x1]
      %v983 = vld [vmem:[%s863] sm:$0xf]
      %v984 = vld [vmem:[%s863 + $0x4] sm:$0xf]
      %v985 = vld [vmem:[%s863 + $0x8] sm:$0xf]
      %v986 = vld [vmem:[%s863 + $0xc] sm:$0xf]
      %v987 = vld [vmem:[%s863 + $0x10] sm:$0xf]
      %v988 = vld [vmem:[%s863 + $0x14] sm:$0xf]
      %v989 = vld [vmem:[%s863 + $0x18] sm:$0xf]
      %v990 = vld [vmem:[%s863 + $0x1c] sm:$0xf]
      %v991 = vld [vmem:[%s863 + $0x20] sm:$0xf]
      %v992 = vld [vmem:[%s863 + $0x24] sm:$0xf]
      %v993 = vld [vmem:[%s863 + $0x28] sm:$0xf]
      %v994 = vld [vmem:[%s863 + $0x2c] sm:$0xf]
      %v995 = vld [vmem:[%s863 + $0x30] sm:$0xf]
      %v996 = vld [vmem:[%s863 + $0x34] sm:$0xf]
      %v997 = vld [vmem:[%s863 + $0x38] sm:$0xf]
      %v998 = vld [vmem:[%s863 + $0x3c] sm:$0xf]
      %v999 = vld [vmem:[%s867] sm:$0x1]
      %v1001 = vlaneseq
      %v1002 = vshrl.u32 %v1001, 7
      %v1003 = vsub.s32 0, %v1002
      %v1004 = vrot.slane %v999, %v1003
      %v1022 = vunpack.c.l.b16 %v983
      %v1023 = vunpack.c.l.b16 %v984
      %v1024 = vunpack.c.l.b16 %v985
      %v1025 = vunpack.c.l.b16 %v986
      %v1026 = vunpack.c.l.b16 %v987
      %v1027 = vunpack.c.l.b16 %v988
      %v1028 = vunpack.c.l.b16 %v989
      %v1029 = vunpack.c.l.b16 %v990
      %v1030 = vunpack.c.l.b16 %v991
      %v1031 = vunpack.c.l.b16 %v992
      %v1032 = vunpack.c.l.b16 %v993
      %v1033 = vunpack.c.l.b16 %v994
      %v1034 = vunpack.c.l.b16 %v995
      %v1035 = vunpack.c.l.b16 %v996
      %v1036 = vunpack.c.l.b16 %v997
      %v1037 = vunpack.c.l.b16 %v998
      %v1038 = vpack.c.b16 %v1023, %v1022
      %v1039 = vpack.c.b16 %v1025, %v1024
      %v1040 = vpack.c.b16 %v1027, %v1026
      %v1041 = vpack.c.b16 %v1029, %v1028
      %v1042 = vpack.c.b16 %v1031, %v1030
      %v1043 = vpack.c.b16 %v1033, %v1032
      %v1044 = vpack.c.b16 %v1035, %v1034
      %v1045 = vpack.c.b16 %v1037, %v1036
      %1054 = vmatprep.subr.bf16.mxu0 0
      %1055 = vmatpush1.bf16.msra.mxu0 %v1038
      %1056 = vmatprep.subr.bf16.mxu0 0
      %1057 = vmatpush1.bf16.msra.mxu0 %v1039
      %1058 = vmatprep.subr.bf16.mxu0 0
      %1059 = vmatpush1.bf16.msra.mxu0 %v1040
      %1060 = vmatprep.subr.bf16.mxu0 0
      %1061 = vmatpush1.bf16.msra.mxu0 %v1041
      %1062 = vmatprep.subr.bf16.mxu0 0
      %1063 = vmatpush1.bf16.msra.mxu0 %v1042
      %1064 = vmatprep.subr.bf16.mxu0 0
      %1065 = vmatpush1.bf16.msra.mxu0 %v1043
      %1066 = vmatprep.subr.bf16.mxu0 0
      %1067 = vmatpush1.bf16.msra.mxu0 %v1044
      %1068 = vmatprep.subr.bf16.mxu0 0
      %1069 = vmatpush1.bf16.msra.mxu0 %v1045
      %1070 = vmatprep.subr.bf16.mxu0 0
      %1071 = vmatpush1.bf16.msra.mxu0 0
      %1072 = vmatprep.subr.bf16.mxu0 0
      %1073 = vmatpush1.bf16.msra.mxu0 0
      %1074 = vmatprep.subr.bf16.mxu0 0
      %1075 = vmatpush1.bf16.msra.mxu0 0
      %1076 = vmatprep.subr.bf16.mxu0 0
      %1077 = vmatpush1.bf16.msra.mxu0 0
      %1078 = vmatprep.subr.bf16.mxu0 0
      %1079 = vmatpush1.bf16.msra.mxu0 0
      %1080 = vmatprep.subr.bf16.mxu0 0
      %1081 = vmatpush1.bf16.msra.mxu0 0
      %1082 = vmatprep.subr.bf16.mxu0 0
      %1083 = vmatpush1.bf16.msra.mxu0 0
      %1084 = vmatprep.subr.bf16.mxu0 0
      %1085 = vmatpush1.bf16.msra.mxu0 0
      %1086 = vmatprep.mubr.bf16.mxu0 0
      %1087 = vmatmul.mubr.bf16.gmra.mrb[0].mxu0 %v980
      %v1088 = vpop.f32.mrb[0].mxu0
      %v1089 = vadd.f32 %v1004, %v1088
      %v1090 = vpop.f32.mrb[0].mxu0
      %v1091 = vpop.f32.mrb[0].mxu0
      %v1092 = vadd.f32 %v1004, %v1091
      %v1093 = vpop.f32.mrb[0].mxu0
      %1094 = vdwg.mxu0
      %v1095 = vld [vmem:[%s872] sm:$0xf]
      %v1096 = vld [vmem:[%s872 + $0x4] sm:$0xf]
      %v1097 = vld [vmem:[%s872 + $0x8] sm:$0xf]
      %v1098 = vld [vmem:[%s872 + $0xc] sm:$0xf]
      %v1099 = vld [vmem:[%s872 + $0x10] sm:$0xf]
      %v1100 = vld [vmem:[%s872 + $0x14] sm:$0xf]
      %v1101 = vld [vmem:[%s872 + $0x18] sm:$0xf]
      %v1102 = vld [vmem:[%s872 + $0x1c] sm:$0xf]
      %v1103 = vld [vmem:[%s872 + $0x20] sm:$0xf]
      %v1104 = vld [vmem:[%s872 + $0x24] sm:$0xf]
      %v1105 = vld [vmem:[%s872 + $0x28] sm:$0xf]
      %v1106 = vld [vmem:[%s872 + $0x2c] sm:$0xf]
      %v1107 = vld [vmem:[%s872 + $0x30] sm:$0xf]
      %v1108 = vld [vmem:[%s872 + $0x34] sm:$0xf]
      %v1109 = vld [vmem:[%s872 + $0x38] sm:$0xf]
      %v1110 = vld [vmem:[%s872 + $0x3c] sm:$0xf]
      %v1111 = vld [vmem:[%s876] sm:$0x1]
      %v1113 = vlaneseq
      %v1114 = vshrl.u32 %v1113, 7
      %v1115 = vsub.s32 0, %v1114
      %v1116 = vrot.slane %v1111, %v1115
      %v1134 = vunpack.c.l.b16 %v1095
      %v1135 = vunpack.c.l.b16 %v1096
      %v1136 = vunpack.c.l.b16 %v1097
      %v1137 = vunpack.c.l.b16 %v1098
      %v1138 = vunpack.c.l.b16 %v1099
      %v1139 = vunpack.c.l.b16 %v1100
      %v1140 = vunpack.c.l.b16 %v1101
      %v1141 = vunpack.c.l.b16 %v1102
      %v1142 = vunpack.c.l.b16 %v1103
      %v1143 = vunpack.c.l.b16 %v1104
      %v1144 = vunpack.c.l.b16 %v1105
      %v1145 = vunpack.c.l.b16 %v1106
      %v1146 = vunpack.c.l.b16 %v1107
      %v1147 = vunpack.c.l.b16 %v1108
      %v1148 = vunpack.c.l.b16 %v1109
      %v1149 = vunpack.c.l.b16 %v1110
      %v1150 = vpack.c.b16 %v1135, %v1134
      %v1151 = vpack.c.b16 %v1137, %v1136
      %v1152 = vpack.c.b16 %v1139, %v1138
      %v1153 = vpack.c.b16 %v1141, %v1140
      %v1154 = vpack.c.b16 %v1143, %v1142
      %v1155 = vpack.c.b16 %v1145, %v1144
      %v1156 = vpack.c.b16 %v1147, %v1146
      %v1157 = vpack.c.b16 %v1149, %v1148
      %1166 = vmatprep.subr.bf16.mxu0 0
      %1167 = vmatpush1.bf16.msra.mxu0 %v1150
      %1168 = vmatprep.subr.bf16.mxu0 0
      %1169 = vmatpush1.bf16.msra.mxu0 %v1151
      %1170 = vmatprep.subr.bf16.mxu0 0
      %1171 = vmatpush1.bf16.msra.mxu0 %v1152
      %1172 = vmatprep.subr.bf16.mxu0 0
      %1173 = vmatpush1.bf16.msra.mxu0 %v1153
      %1174 = vmatprep.subr.bf16.mxu0 0
      %1175 = vmatpush1.bf16.msra.mxu0 %v1154
      %1176 = vmatprep.subr.bf16.mxu0 0
      %1177 = vmatpush1.bf16.msra.mxu0 %v1155
      %1178 = vmatprep.subr.bf16.mxu0 0
      %1179 = vmatpush1.bf16.msra.mxu0 %v1156
      %1180 = vmatprep.subr.bf16.mxu0 0
      %1181 = vmatpush1.bf16.msra.mxu0 %v1157
      %1182 = vmatprep.subr.bf16.mxu0 0
      %1183 = vmatpush1.bf16.msra.mxu0 0
      %1184 = vmatprep.subr.bf16.mxu0 0
      %1185 = vmatpush1.bf16.msra.mxu0 0
      %1186 = vmatprep.subr.bf16.mxu0 0
      %1187 = vmatpush1.bf16.msra.mxu0 0
      %1188 = vmatprep.subr.bf16.mxu0 0
      %1189 = vmatpush1.bf16.msra.mxu0 0
      %1190 = vmatprep.subr.bf16.mxu0 0
      %1191 = vmatpush1.bf16.msra.mxu0 0
      %1192 = vmatprep.subr.bf16.mxu0 0
      %1193 = vmatpush1.bf16.msra.mxu0 0
      %1194 = vmatprep.subr.bf16.mxu0 0
      %1195 = vmatpush1.bf16.msra.mxu0 0
      %1196 = vmatprep.subr.bf16.mxu0 0
      %1197 = vmatpush1.bf16.msra.mxu0 0
      %1198 = vmatprep.mubr.bf16.mxu0 0
      %1199 = vmatmul.mubr.bf16.gmra.mrb[0].mxu0 %v980
      %v1200 = vpop.f32.mrb[0].mxu0
      %v1201 = vadd.f32 %v1116, %v1200
      %v1202 = vpop.f32.mrb[0].mxu0
      %v1203 = vpop.f32.mrb[0].mxu0
      %v1204 = vadd.f32 %v1116, %v1203
      %v1205 = vpop.f32.mrb[0].mxu0
      %1206 = vdwg.mxu0
      %v1207 = vld [vmem:[%s881] sm:$0xf]
      %v1208 = vld [vmem:[%s881 + $0x4] sm:$0xf]
      %v1209 = vld [vmem:[%s881 + $0x8] sm:$0xf]
      %v1210 = vld [vmem:[%s881 + $0xc] sm:$0xf]
      %v1211 = vld [vmem:[%s881 + $0x10] sm:$0xf]
      %v1212 = vld [vmem:[%s881 + $0x14] sm:$0xf]
      %v1213 = vld [vmem:[%s881 + $0x18] sm:$0xf]
      %v1214 = vld [vmem:[%s881 + $0x1c] sm:$0xf]
      %v1215 = vld [vmem:[%s881 + $0x20] sm:$0xf]
      %v1216 = vld [vmem:[%s881 + $0x24] sm:$0xf]
      %v1217 = vld [vmem:[%s881 + $0x28] sm:$0xf]
      %v1218 = vld [vmem:[%s881 + $0x2c] sm:$0xf]
      %v1219 = vld [vmem:[%s881 + $0x30] sm:$0xf]
      %v1220 = vld [vmem:[%s881 + $0x34] sm:$0xf]
      %v1221 = vld [vmem:[%s881 + $0x38] sm:$0xf]
      %v1222 = vld [vmem:[%s881 + $0x3c] sm:$0xf]
      %v1223 = vld [vmem:[%s885] sm:$0x1]
      %v1225 = vlaneseq
      %v1226 = vshrl.u32 %v1225, 7
      %v1227 = vsub.s32 0, %v1226
      %v1228 = vrot.slane %v1223, %v1227
      %v1246 = vunpack.c.l.b16 %v1207
      %v1247 = vunpack.c.l.b16 %v1208
      %v1248 = vunpack.c.l.b16 %v1209
      %v1249 = vunpack.c.l.b16 %v1210
      %v1250 = vunpack.c.l.b16 %v1211
      %v1251 = vunpack.c.l.b16 %v1212
      %v1252 = vunpack.c.l.b16 %v1213
      %v1253 = vunpack.c.l.b16 %v1214
      %v1254 = vunpack.c.l.b16 %v1215
      %v1255 = vunpack.c.l.b16 %v1216
      %v1256 = vunpack.c.l.b16 %v1217
      %v1257 = vunpack.c.l.b16 %v1218
      %v1258 = vunpack.c.l.b16 %v1219
      %v1259 = vunpack.c.l.b16 %v1220
      %v1260 = vunpack.c.l.b16 %v1221
      %v1261 = vunpack.c.l.b16 %v1222
      %v1262 = vpack.c.b16 %v1247, %v1246
      %v1263 = vpack.c.b16 %v1249, %v1248
      %v1264 = vpack.c.b16 %v1251, %v1250
      %v1265 = vpack.c.b16 %v1253, %v1252
      %v1266 = vpack.c.b16 %v1255, %v1254
      %v1267 = vpack.c.b16 %v1257, %v1256
      %v1268 = vpack.c.b16 %v1259, %v1258
      %v1269 = vpack.c.b16 %v1261, %v1260
      %1278 = vmatprep.subr.bf16.mxu0 0
      %1279 = vmatpush1.bf16.msra.mxu0 %v1262
      %1280 = vmatprep.subr.bf16.mxu0 0
      %1281 = vmatpush1.bf16.msra.mxu0 %v1263
      %1282 = vmatprep.subr.bf16.mxu0 0
      %1283 = vmatpush1.bf16.msra.mxu0 %v1264
      %1284 = vmatprep.subr.bf16.mxu0 0
      %1285 = vmatpush1.bf16.msra.mxu0 %v1265
      %1286 = vmatprep.subr.bf16.mxu0 0
      %1287 = vmatpush1.bf16.msra.mxu0 %v1266
      %1288 = vmatprep.subr.bf16.mxu0 0
      %1289 = vmatpush1.bf16.msra.mxu0 %v1267
      %1290 = vmatprep.subr.bf16.mxu0 0
      %1291 = vmatpush1.bf16.msra.mxu0 %v1268
      %1292 = vmatprep.subr.bf16.mxu0 0
      %1293 = vmatpush1.bf16.msra.mxu0 %v1269
      %1294 = vmatprep.subr.bf16.mxu0 0
      %1295 = vmatpush1.bf16.msra.mxu0 0
      %1296 = vmatprep.subr.bf16.mxu0 0
      %1297 = vmatpush1.bf16.msra.mxu0 0
      %1298 = vmatprep.subr.bf16.mxu0 0
      %1299 = vmatpush1.bf16.msra.mxu0 0
      %1300 = vmatprep.subr.bf16.mxu0 0
      %1301 = vmatpush1.bf16.msra.mxu0 0
      %1302 = vmatprep.subr.bf16.mxu0 0
      %1303 = vmatpush1.bf16.msra.mxu0 0
      %1304 = vmatprep.subr.bf16.mxu0 0
      %1305 = vmatpush1.bf16.msra.mxu0 0
      %1306 = vmatprep.subr.bf16.mxu0 0
      %1307 = vmatpush1.bf16.msra.mxu0 0
      %1308 = vmatprep.subr.bf16.mxu0 0
      %1309 = vmatpush1.bf16.msra.mxu0 0
      %1310 = vmatprep.mubr.bf16.mxu0 0
      %1311 = vmatmul.mubr.bf16.gmra.mrb[0].mxu0 %v980
      %v1312 = vpop.f32.mrb[0].mxu0
      %v1313 = vadd.f32 %v1228, %v1312
      %v1314 = vpop.f32.mrb[0].mxu0
      %v1315 = vpop.f32.mrb[0].mxu0
      %v1316 = vadd.f32 %v1228, %v1315
      %v1317 = vpop.f32.mrb[0].mxu0
      %1318 = vdwg.mxu0
      %v1319 = vpack.c.bf16 %v1092, %v1089
      %v1320 = vpack.c.bf16 %v1204, %v1201
      %vm1321 = vcmask 523264
      %v1323 = vsel %vm1321, %v1319, 0
      %v1326 = vsel %vm1321, %v1320, 0
      %1328 = vmatprep.subr.bf16.mxu0 0
      %1329 = vmatpush1.bf16.xpose.msra.mxu0 %v1326
      %1330 = vmatprep.subr.bf16.mxu0 0
      %1331 = vmatpush1.bf16.xpose.msra.mxu0 0
      %1332 = vmatprep.subr.bf16.mxu0 0
      %1333 = vmatpush1.bf16.xpose.msra.mxu0 0
      %1334 = vmatprep.subr.bf16.mxu0 0
      %1335 = vmatpush1.bf16.xpose.msra.mxu0 0
      %1336 = vmatprep.subr.bf16.mxu0 0
      %1337 = vmatpush1.bf16.xpose.msra.mxu0 0
      %1338 = vmatprep.subr.bf16.mxu0 0
      %1339 = vmatpush1.bf16.xpose.msra.mxu0 0
      %1340 = vmatprep.subr.bf16.mxu0 0
      %1341 = vmatpush1.bf16.xpose.msra.mxu0 0
      %1342 = vmatprep.subr.bf16.mxu0 0
      %1343 = vmatpush1.bf16.xpose.msra.mxu0 0
      %1344 = vmatprep.subr.bf16.mxu0 0
      %1345 = vmatpush1.bf16.xpose.msra.mxu0 0
      %1346 = vmatprep.subr.bf16.mxu0 0
      %1347 = vmatpush1.bf16.xpose.msra.mxu0 0
      %1348 = vmatprep.subr.bf16.mxu0 0
      %1349 = vmatpush1.bf16.xpose.msra.mxu0 0
      %1350 = vmatprep.subr.bf16.mxu0 0
      %1351 = vmatpush1.bf16.xpose.msra.mxu0 0
      %1352 = vmatprep.subr.bf16.mxu0 0
      %1353 = vmatpush1.bf16.xpose.msra.mxu0 0
      %1354 = vmatprep.subr.bf16.mxu0 0
      %1355 = vmatpush1.bf16.xpose.msra.mxu0 0
      %1356 = vmatprep.subr.bf16.mxu0 0
      %1357 = vmatpush1.bf16.xpose.msra.mxu0 0
      %1358 = vmatprep.subr.bf16.mxu0 0
      %1359 = vmatpush1.bf16.xpose.msra.mxu0 0
      %1360 = vmatprep.mubr.bf16.mxu0 0
      %1361 = vmatmul.mubr.bf16.gmra.mrb[0].mxu0 %v1323
      %v1362 = vpop.f32.mrb[0].mxu0
      %v1363 = vadd.f32 0.0, %v1362
      %v1364 = vpop.f32.mrb[0].mxu0
      %v1365 = vpop.f32.mrb[0].mxu0
      %v1366 = vadd.f32 0.0, %v1365
      %v1367 = vpop.f32.mrb[0].mxu0
      %1368 = vdwg.mxu0
      %v1369 = vmul.f32 %v1363, 0.125
      %v1370 = vmul.f32 %v1366, 0.125
      %v1372 = vlaneseq
      %v1373 = vshrl.u32 %v1372, 7
      %v1374 = vsub.s32 0, %v1373
      %v1375 = vrot.slane %v981, %v1374
      %v1377 = vadd.f32 %v1369, %v1375
      %v1378 = vadd.f32 %v1370, %v1375
      %vm1379 = vcmask 130048
      %v1380 = vsel %vm1379, %v1377, -inf
      %1381 = vmax.xlane.f32.xlu0 %v1380
      %v1382 = vpop.xlane.xlu0 %1381
      %v1383 = vsel %vm1379, %v1378, -inf
      %1384 = vmax.xlane.f32.xlu0 %v1383
      %v1385 = vpop.xlane.xlu0 %1384
      %v1386 = vsub.f32 %v1377, %v1382
      %v1387 = vsub.f32 %v1378, %v1385
      %v1388 = vmul.f32 %v1386, 1.442695
      %v1389 = vpow.pop %v1388
      %v1390 = vmul.f32 %v1387, 1.442695
      %v1391 = vpow.pop %v1390
      %v1392 = vsel %vm1379, %v1389, 0.0
      %1393 = vadd.xlane.f32.xlu0 %v1392
      %v1394 = vpop.xlane.xlu0 %1393
      %v1395 = vsel %vm1379, %v1391, 0.0
      %1396 = vadd.xlane.f32.xlu0 %v1395
      %v1397 = vpop.xlane.xlu0 %1396
      %v1398 = vrcp.pop %v1394
      %v1399 = vrcp.pop %v1397
      %v1400 = vmul.f32 %v1389, %v1398
      %v1401 = vmul.f32 %v1391, %v1399
      %v1402 = vpack.c.bf16 %v1401, %v1400
      %v1403 = vpack.c.bf16 %v1316, %v1313
      %v1405 = vsel %vm1379, %v1402, 0
      %1407 = vmatprep.subr.bf16.mxu0 0
      %1408 = vmatpush1.bf16.msra.mxu0 %v1403
      %1409 = vmatprep.subr.bf16.mxu0 0
      %1410 = vmatpush1.bf16.msra.mxu0 0
      %1411 = vmatprep.subr.bf16.mxu0 0
      %1412 = vmatpush1.bf16.msra.mxu0 0
      %1413 = vmatprep.subr.bf16.mxu0 0
      %1414 = vmatpush1.bf16.msra.mxu0 0
      %1415 = vmatprep.subr.bf16.mxu0 0
      %1416 = vmatpush1.bf16.msra.mxu0 0
      %1417 = vmatprep.subr.bf16.mxu0 0
      %1418 = vmatpush1.bf16.msra.mxu0 0
      %1419 = vmatprep.subr.bf16.mxu0 0
      %1420 = vmatpush1.bf16.msra.mxu0 0
      %1421 = vmatprep.subr.bf16.mxu0 0
      %1422 = vmatpush1.bf16.msra.mxu0 0
      %1423 = vmatprep.subr.bf16.mxu0 0
      %1424 = vmatpush1.bf16.msra.mxu0 0
      %1425 = vmatprep.subr.bf16.mxu0 0
      %1426 = vmatpush1.bf16.msra.mxu0 0
      %1427 = vmatprep.subr.bf16.mxu0 0
      %1428 = vmatpush1.bf16.msra.mxu0 0
      %1429 = vmatprep.subr.bf16.mxu0 0
      %1430 = vmatpush1.bf16.msra.mxu0 0
      %1431 = vmatprep.subr.bf16.mxu0 0
      %1432 = vmatpush1.bf16.msra.mxu0 0
      %1433 = vmatprep.subr.bf16.mxu0 0
      %1434 = vmatpush1.bf16.msra.mxu0 0
      %1435 = vmatprep.subr.bf16.mxu0 0
      %1436 = vmatpush1.bf16.msra.mxu0 0
      %1437 = vmatprep.subr.bf16.mxu0 0
      %1438 = vmatpush1.bf16.msra.mxu0 0
      %1439 = vmatprep.mubr.bf16.mxu0 0
      %1440 = vmatmul.mubr.bf16.gmra.mrb[0].mxu0 %v1405
      %v1441 = vpop.f32.mrb[0].mxu0
      %v1442 = vadd.f32 0.0, %v1441
      %v1443 = vpop.f32.mrb[0].mxu0
      %v1444 = vpop.f32.mrb[0].mxu0
      %v1445 = vadd.f32 0.0, %v1444
      %v1446 = vpop.f32.mrb[0].mxu0
      %1447 = vdwg.mxu0
      %v1448 = vpack.c.bf16 %v1445, %v1442
      %v1449 = vld [vmem:[%s890] sm:$0xf]
      %v1450 = vld [vmem:[%s890 + $0x4] sm:$0xf]
      %v1451 = vld [vmem:[%s890 + $0x8] sm:$0xf]
      %v1452 = vld [vmem:[%s890 + $0xc] sm:$0xf]
      %v1453 = vld [vmem:[%s890 + $0x10] sm:$0xf]
      %v1454 = vld [vmem:[%s890 + $0x14] sm:$0xf]
      %v1455 = vld [vmem:[%s890 + $0x18] sm:$0xf]
      %v1456 = vld [vmem:[%s890 + $0x1c] sm:$0xf]
      %v1465 = vunpack.c.l.b16 %v1449
      %v1466 = vunpack.c.l.b16 %v1450
      %v1467 = vunpack.c.l.b16 %v1451
      %v1468 = vunpack.c.l.b16 %v1452
      %v1469 = vunpack.c.l.b16 %v1453
      %v1470 = vunpack.c.l.b16 %v1454
      %v1471 = vunpack.c.l.b16 %v1455
      %v1472 = vunpack.c.l.b16 %v1456
      %v1473 = vpack.c.b16 %v1466, %v1465
      %v1474 = vpack.c.b16 %v1468, %v1467
      %v1475 = vpack.c.b16 %v1470, %v1469
      %v1476 = vpack.c.b16 %v1472, %v1471
      %v1482 = vsel %vm1321, %v1448, 0
      %1484 = vmatprep.subr.bf16.mxu0 0
      %1485 = vmatpush1.bf16.msra.mxu0 %v1473
      %1486 = vmatprep.subr.bf16.mxu0 0
      %1487 = vmatpush1.bf16.msra.mxu0 %v1474
      %1488 = vmatprep.subr.bf16.mxu0 0
      %1489 = vmatpush1.bf16.msra.mxu0 %v1475
      %1490 = vmatprep.subr.bf16.mxu0 0
      %1491 = vmatpush1.bf16.msra.mxu0 %v1476
      %1492 = vmatprep.subr.bf16.mxu0 0
      %1493 = vmatpush1.bf16.msra.mxu0 0
      %1494 = vmatprep.subr.bf16.mxu0 0
      %1495 = vmatpush1.bf16.msra.mxu0 0
      %1496 = vmatprep.subr.bf16.mxu0 0
      %1497 = vmatpush1.bf16.msra.mxu0 0
      %1498 = vmatprep.subr.bf16.mxu0 0
      %1499 = vmatpush1.bf16.msra.mxu0 0
      %1500 = vmatprep.subr.bf16.mxu0 0
      %1501 = vmatpush1.bf16.msra.mxu0 0
      %1502 = vmatprep.subr.bf16.mxu0 0
      %1503 = vmatpush1.bf16.msra.mxu0 0
      %1504 = vmatprep.subr.bf16.mxu0 0
      %1505 = vmatpush1.bf16.msra.mxu0 0
      %1506 = vmatprep.subr.bf16.mxu0 0
      %1507 = vmatpush1.bf16.msra.mxu0 0
      %1508 = vmatprep.subr.bf16.mxu0 0
      %1509 = vmatpush1.bf16.msra.mxu0 0
      %1510 = vmatprep.subr.bf16.mxu0 0
      %1511 = vmatpush1.bf16.msra.mxu0 0
      %1512 = vmatprep.subr.bf16.mxu0 0
      %1513 = vmatpush1.bf16.msra.mxu0 0
      %1514 = vmatprep.subr.bf16.mxu0 0
      %1515 = vmatpush1.bf16.msra.mxu0 0
      %1516 = vmatprep.mubr.bf16.mxu0 0
      %1517 = vmatmul.mubr.bf16.gmra.mrb[0].mxu0 %v1482
      %v1518 = vpop.f32.mrb[0].mxu0
      %v1519 = vadd.f32 0.0, %v1518
      %v1520 = vpop.f32.mrb[0].mxu0
      %v1521 = vpop.f32.mrb[0].mxu0
      %v1522 = vadd.f32 0.0, %v1521
      %v1523 = vpop.f32.mrb[0].mxu0
      %1524 = vdwg.mxu0
      %v1526 = vlaneseq
      %v1527 = vshrl.u32 %v1526, 7
      %v1528 = vsub.s32 0, %v1527
      %v1529 = vrot.slane %v982, %v1528
      %v1531 = vadd.f32 %v1529, %v1519
      %v1532 = vadd.f32 %v1529, %v1522
      %s1533 = scalar_lea.vmem %s863, 64
      %v1534 = vld [vmem:[%s1533] sm:$0xf]
      %v1535 = vld [vmem:[%s1533 + $0x4] sm:$0xf]
      %v1536 = vld [vmem:[%s1533 + $0x8] sm:$0xf]
      %v1537 = vld [vmem:[%s1533 + $0xc] sm:$0xf]
      %v1538 = vld [vmem:[%s1533 + $0x10] sm:$0xf]
      %v1539 = vld [vmem:[%s1533 + $0x14] sm:$0xf]
      %v1540 = vld [vmem:[%s1533 + $0x18] sm:$0xf]
      %v1541 = vld [vmem:[%s1533 + $0x1c] sm:$0xf]
      %v1542 = vld [vmem:[%s1533 + $0x20] sm:$0xf]
      %v1543 = vld [vmem:[%s1533 + $0x24] sm:$0xf]
      %v1544 = vld [vmem:[%s1533 + $0x28] sm:$0xf]
      %v1545 = vld [vmem:[%s1533 + $0x2c] sm:$0xf]
      %v1546 = vld [vmem:[%s1533 + $0x30] sm:$0xf]
      %v1547 = vld [vmem:[%s1533 + $0x34] sm:$0xf]
      %v1548 = vld [vmem:[%s1533 + $0x38] sm:$0xf]
      %v1549 = vld [vmem:[%s1533 + $0x3c] sm:$0xf]
      %s1550 = scalar_lea.vmem %s867, 1
      %v1551 = vld [vmem:[%s1550] sm:$0x1]
      %v1553 = vlaneseq
      %v1554 = vshrl.u32 %v1553, 7
      %v1555 = vsub.s32 0, %v1554
      %v1556 = vrot.slane %v1551, %v1555
      %v1574 = vunpack.c.l.b16 %v1534
      %v1575 = vunpack.c.l.b16 %v1535
      %v1576 = vunpack.c.l.b16 %v1536
      %v1577 = vunpack.c.l.b16 %v1537
      %v1578 = vunpack.c.l.b16 %v1538
      %v1579 = vunpack.c.l.b16 %v1539
      %v1580 = vunpack.c.l.b16 %v1540
      %v1581 = vunpack.c.l.b16 %v1541
      %v1582 = vunpack.c.l.b16 %v1542
      %v1583 = vunpack.c.l.b16 %v1543
      %v1584 = vunpack.c.l.b16 %v1544
      %v1585 = vunpack.c.l.b16 %v1545
      %v1586 = vunpack.c.l.b16 %v1546
      %v1587 = vunpack.c.l.b16 %v1547
      %v1588 = vunpack.c.l.b16 %v1548
      %v1589 = vunpack.c.l.b16 %v1549
      %v1590 = vpack.c.b16 %v1575, %v1574
      %v1591 = vpack.c.b16 %v1577, %v1576
      %v1592 = vpack.c.b16 %v1579, %v1578
      %v1593 = vpack.c.b16 %v1581, %v1580
      %v1594 = vpack.c.b16 %v1583, %v1582
      %v1595 = vpack.c.b16 %v1585, %v1584
      %v1596 = vpack.c.b16 %v1587, %v1586
      %v1597 = vpack.c.b16 %v1589, %v1588
      %1606 = vmatprep.subr.bf16.mxu0 0
      %1607 = vmatpush1.bf16.msra.mxu0 %v1590
      %1608 = vmatprep.subr.bf16.mxu0 0
      %1609 = vmatpush1.bf16.msra.mxu0 %v1591
      %1610 = vmatprep.subr.bf16.mxu0 0
      %1611 = vmatpush1.bf16.msra.mxu0 %v1592
      %1612 = vmatprep.subr.bf16.mxu0 0
      %1613 = vmatpush1.bf16.msra.mxu0 %v1593
      %1614 = vmatprep.subr.bf16.mxu0 0
      %1615 = vmatpush1.bf16.msra.mxu0 %v1594
      %1616 = vmatprep.subr.bf16.mxu0 0
      %1617 = vmatpush1.bf16.msra.mxu0 %v1595
      %1618 = vmatprep.subr.bf16.mxu0 0
      %1619 = vmatpush1.bf16.msra.mxu0 %v1596
      %1620 = vmatprep.subr.bf16.mxu0 0
      %1621 = vmatpush1.bf16.msra.mxu0 %v1597
      %1622 = vmatprep.subr.bf16.mxu0 0
      %1623 = vmatpush1.bf16.msra.mxu0 0
      %1624 = vmatprep.subr.bf16.mxu0 0
      %1625 = vmatpush1.bf16.msra.mxu0 0
      %1626 = vmatprep.subr.bf16.mxu0 0
      %1627 = vmatpush1.bf16.msra.mxu0 0
      %1628 = vmatprep.subr.bf16.mxu0 0
      %1629 = vmatpush1.bf16.msra.mxu0 0
      %1630 = vmatprep.subr.bf16.mxu0 0
      %1631 = vmatpush1.bf16.msra.mxu0 0
      %1632 = vmatprep.subr.bf16.mxu0 0
      %1633 = vmatpush1.bf16.msra.mxu0 0
      %1634 = vmatprep.subr.bf16.mxu0 0
      %1635 = vmatpush1.bf16.msra.mxu0 0
      %1636 = vmatprep.subr.bf16.mxu0 0
      %1637 = vmatpush1.bf16.msra.mxu0 0
      %1638 = vmatprep.mubr.bf16.mxu0 0
      %1639 = vmatmul.mubr.bf16.gmra.mrb[0].mxu0 %v980
      %v1640 = vpop.f32.mrb[0].mxu0
      %v1641 = vadd.f32 %v1556, %v1640
      %v1642 = vpop.f32.mrb[0].mxu0
      %v1643 = vpop.f32.mrb[0].mxu0
      %v1644 = vadd.f32 %v1556, %v1643
      %v1645 = vpop.f32.mrb[0].mxu0
      %1646 = vdwg.mxu0
      %s1647 = scalar_lea.vmem %s872, 64
      %v1648 = vld [vmem:[%s1647] sm:$0xf]
      %v1649 = vld [vmem:[%s1647 + $0x4] sm:$0xf]
      %v1650 = vld [vmem:[%s1647 + $0x8] sm:$0xf]
      %v1651 = vld [vmem:[%s1647 + $0xc] sm:$0xf]
      %v1652 = vld [vmem:[%s1647 + $0x10] sm:$0xf]
      %v1653 = vld [vmem:[%s1647 + $0x14] sm:$0xf]
      %v1654 = vld [vmem:[%s1647 + $0x18] sm:$0xf]
      %v1655 = vld [vmem:[%s1647 + $0x1c] sm:$0xf]
      %v1656 = vld [vmem:[%s1647 + $0x20] sm:$0xf]
      %v1657 = vld [vmem:[%s1647 + $0x24] sm:$0xf]
      %v1658 = vld [vmem:[%s1647 + $0x28] sm:$0xf]
      %v1659 = vld [vmem:[%s1647 + $0x2c] sm:$0xf]
      %v1660 = vld [vmem:[%s1647 + $0x30] sm:$0xf]
      %v1661 = vld [vmem:[%s1647 + $0x34] sm:$0xf]
      %v1662 = vld [vmem:[%s1647 + $0x38] sm:$0xf]
      %v1663 = vld [vmem:[%s1647 + $0x3c] sm:$0xf]
      %s1664 = scalar_lea.vmem %s876, 1
      %v1665 = vld [vmem:[%s1664] sm:$0x1]
      %v1667 = vlaneseq
      %v1668 = vshrl.u32 %v1667, 7
      %v1669 = vsub.s32 0, %v1668
      %v1670 = vrot.slane %v1665, %v1669
      %v1688 = vunpack.c.l.b16 %v1648
      %v1689 = vunpack.c.l.b16 %v1649
      %v1690 = vunpack.c.l.b16 %v1650
      %v1691 = vunpack.c.l.b16 %v1651
      %v1692 = vunpack.c.l.b16 %v1652
      %v1693 = vunpack.c.l.b16 %v1653
      %v1694 = vunpack.c.l.b16 %v1654
      %v1695 = vunpack.c.l.b16 %v1655
      %v1696 = vunpack.c.l.b16 %v1656
      %v1697 = vunpack.c.l.b16 %v1657
      %v1698 = vunpack.c.l.b16 %v1658
      %v1699 = vunpack.c.l.b16 %v1659
      %v1700 = vunpack.c.l.b16 %v1660
      %v1701 = vunpack.c.l.b16 %v1661
      %v1702 = vunpack.c.l.b16 %v1662
      %v1703 = vunpack.c.l.b16 %v1663
      %v1704 = vpack.c.b16 %v1689, %v1688
      %v1705 = vpack.c.b16 %v1691, %v1690
      %v1706 = vpack.c.b16 %v1693, %v1692
      %v1707 = vpack.c.b16 %v1695, %v1694
      %v1708 = vpack.c.b16 %v1697, %v1696
      %v1709 = vpack.c.b16 %v1699, %v1698
      %v1710 = vpack.c.b16 %v1701, %v1700
      %v1711 = vpack.c.b16 %v1703, %v1702
      %1720 = vmatprep.subr.bf16.mxu0 0
      %1721 = vmatpush1.bf16.msra.mxu0 %v1704
      %1722 = vmatprep.subr.bf16.mxu0 0
      %1723 = vmatpush1.bf16.msra.mxu0 %v1705
      %1724 = vmatprep.subr.bf16.mxu0 0
      %1725 = vmatpush1.bf16.msra.mxu0 %v1706
      %1726 = vmatprep.subr.bf16.mxu0 0
      %1727 = vmatpush1.bf16.msra.mxu0 %v1707
      %1728 = vmatprep.subr.bf16.mxu0 0
      %1729 = vmatpush1.bf16.msra.mxu0 %v1708
      %1730 = vmatprep.subr.bf16.mxu0 0
      %1731 = vmatpush1.bf16.msra.mxu0 %v1709
      %1732 = vmatprep.subr.bf16.mxu0 0
      %1733 = vmatpush1.bf16.msra.mxu0 %v1710
      %1734 = vmatprep.subr.bf16.mxu0 0
      %1735 = vmatpush1.bf16.msra.mxu0 %v1711
      %1736 = vmatprep.subr.bf16.mxu0 0
      %1737 = vmatpush1.bf16.msra.mxu0 0
      %1738 = vmatprep.subr.bf16.mxu0 0
      %1739 = vmatpush1.bf16.msra.mxu0 0
      %1740 = vmatprep.subr.bf16.mxu0 0
      %1741 = vmatpush1.bf16.msra.mxu0 0
      %1742 = vmatprep.subr.bf16.mxu0 0
      %1743 = vmatpush1.bf16.msra.mxu0 0
      %1744 = vmatprep.subr.bf16.mxu0 0
      %1745 = vmatpush1.bf16.msra.mxu0 0
      %1746 = vmatprep.subr.bf16.mxu0 0
      %1747 = vmatpush1.bf16.msra.mxu0 0
      %1748 = vmatprep.subr.bf16.mxu0 0
      %1749 = vmatpush1.bf16.msra.mxu0 0
      %1750 = vmatprep.subr.bf16.mxu0 0
      %1751 = vmatpush1.bf16.msra.mxu0 0
      %1752 = vmatprep.mubr.bf16.mxu0 0
      %1753 = vmatmul.mubr.bf16.gmra.mrb[0].mxu0 %v980
      %v1754 = vpop.f32.mrb[0].mxu0
      %v1755 = vadd.f32 %v1670, %v1754
      %v1756 = vpop.f32.mrb[0].mxu0
      %v1757 = vpop.f32.mrb[0].mxu0
      %v1758 = vadd.f32 %v1670, %v1757
      %v1759 = vpop.f32.mrb[0].mxu0
      %1760 = vdwg.mxu0
      %s1761 = scalar_lea.vmem %s881, 64
      %v1762 = vld [vmem:[%s1761] sm:$0xf]
      %v1763 = vld [vmem:[%s1761 + $0x4] sm:$0xf]
      %v1764 = vld [vmem:[%s1761 + $0x8] sm:$0xf]
      %v1765 = vld [vmem:[%s1761 + $0xc] sm:$0xf]
      %v1766 = vld [vmem:[%s1761 + $0x10] sm:$0xf]
      %v1767 = vld [vmem:[%s1761 + $0x14] sm:$0xf]
      %v1768 = vld [vmem:[%s1761 + $0x18] sm:$0xf]
      %v1769 = vld [vmem:[%s1761 + $0x1c] sm:$0xf]
      %v1770 = vld [vmem:[%s1761 + $0x20] sm:$0xf]
      %v1771 = vld [vmem:[%s1761 + $0x24] sm:$0xf]
      %v1772 = vld [vmem:[%s1761 + $0x28] sm:$0xf]
      %v1773 = vld [vmem:[%s1761 + $0x2c] sm:$0xf]
      %v1774 = vld [vmem:[%s1761 + $0x30] sm:$0xf]
      %v1775 = vld [vmem:[%s1761 + $0x34] sm:$0xf]
      %v1776 = vld [vmem:[%s1761 + $0x38] sm:$0xf]
      %v1777 = vld [vmem:[%s1761 + $0x3c] sm:$0xf]
      %s1778 = scalar_lea.vmem %s885, 1
      %v1779 = vld [vmem:[%s1778] sm:$0x1]
      %v1781 = vlaneseq
      %v1782 = vshrl.u32 %v1781, 7
      %v1783 = vsub.s32 0, %v1782
      %v1784 = vrot.slane %v1779, %v1783
      %v1802 = vunpack.c.l.b16 %v1762
      %v1803 = vunpack.c.l.b16 %v1763
      %v1804 = vunpack.c.l.b16 %v1764
      %v1805 = vunpack.c.l.b16 %v1765
      %v1806 = vunpack.c.l.b16 %v1766
      %v1807 = vunpack.c.l.b16 %v1767
      %v1808 = vunpack.c.l.b16 %v1768
      %v1809 = vunpack.c.l.b16 %v1769
      %v1810 = vunpack.c.l.b16 %v1770
      %v1811 = vunpack.c.l.b16 %v1771
      %v1812 = vunpack.c.l.b16 %v1772
      %v1813 = vunpack.c.l.b16 %v1773
      %v1814 = vunpack.c.l.b16 %v1774
      %v1815 = vunpack.c.l.b16 %v1775
      %v1816 = vunpack.c.l.b16 %v1776
      %v1817 = vunpack.c.l.b16 %v1777
      %v1818 = vpack.c.b16 %v1803, %v1802
      %v1819 = vpack.c.b16 %v1805, %v1804
      %v1820 = vpack.c.b16 %v1807, %v1806
      %v1821 = vpack.c.b16 %v1809, %v1808
      %v1822 = vpack.c.b16 %v1811, %v1810
      %v1823 = vpack.c.b16 %v1813, %v1812
      %v1824 = vpack.c.b16 %v1815, %v1814
      %v1825 = vpack.c.b16 %v1817, %v1816
      %1834 = vmatprep.subr.bf16.mxu0 0
      %1835 = vmatpush1.bf16.msra.mxu0 %v1818
      %1836 = vmatprep.subr.bf16.mxu0 0
      %1837 = vmatpush1.bf16.msra.mxu0 %v1819
      %1838 = vmatprep.subr.bf16.mxu0 0
      %1839 = vmatpush1.bf16.msra.mxu0 %v1820
      %1840 = vmatprep.subr.bf16.mxu0 0
      %1841 = vmatpush1.bf16.msra.mxu0 %v1821
      %1842 = vmatprep.subr.bf16.mxu0 0
      %1843 = vmatpush1.bf16.msra.mxu0 %v1822
      %1844 = vmatprep.subr.bf16.mxu0 0
      %1845 = vmatpush1.bf16.msra.mxu0 %v1823
      %1846 = vmatprep.subr.bf16.mxu0 0
      %1847 = vmatpush1.bf16.msra.mxu0 %v1824
      %1848 = vmatprep.subr.bf16.mxu0 0
      %1849 = vmatpush1.bf16.msra.mxu0 %v1825
      %1850 = vmatprep.subr.bf16.mxu0 0
      %1851 = vmatpush1.bf16.msra.mxu0 0
      %1852 = vmatprep.subr.bf16.mxu0 0
      %1853 = vmatpush1.bf16.msra.mxu0 0
      %1854 = vmatprep.subr.bf16.mxu0 0
      %1855 = vmatpush1.bf16.msra.mxu0 0
      %1856 = vmatprep.subr.bf16.mxu0 0
      %1857 = vmatpush1.bf16.msra.mxu0 0
      %1858 = vmatprep.subr.bf16.mxu0 0
      %1859 = vmatpush1.bf16.msra.mxu0 0
      %1860 = vmatprep.subr.bf16.mxu0 0
      %1861 = vmatpush1.bf16.msra.mxu0 0
      %1862 = vmatprep.subr.bf16.mxu0 0
      %1863 = vmatpush1.bf16.msra.mxu0 0
      %1864 = vmatprep.subr.bf16.mxu0 0
      %1865 = vmatpush1.bf16.msra.mxu0 0
      %1866 = vmatprep.mubr.bf16.mxu0 0
      %1867 = vmatmul.mubr.bf16.gmra.mrb[0].mxu0 %v980
      %v1868 = vpop.f32.mrb[0].mxu0
      %v1869 = vadd.f32 %v1784, %v1868
      %v1870 = vpop.f32.mrb[0].mxu0
      %v1871 = vpop.f32.mrb[0].mxu0
      %v1872 = vadd.f32 %v1784, %v1871
      %v1873 = vpop.f32.mrb[0].mxu0
      %1874 = vdwg.mxu0
      %v1875 = vpack.c.bf16 %v1644, %v1641
      %v1876 = vpack.c.bf16 %v1758, %v1755
      %v1878 = vsel %vm1321, %v1875, 0
      %v1881 = vsel %vm1321, %v1876, 0
      %1883 = vmatprep.subr.bf16.mxu0 0
      %1884 = vmatpush1.bf16.xpose.msra.mxu0 %v1881
      %1885 = vmatprep.subr.bf16.mxu0 0
      %1886 = vmatpush1.bf16.xpose.msra.mxu0 0
      %1887 = vmatprep.subr.bf16.mxu0 0
      %1888 = vmatpush1.bf16.xpose.msra.mxu0 0
      %1889 = vmatprep.subr.bf16.mxu0 0
      %1890 = vmatpush1.bf16.xpose.msra.mxu0 0
      %1891 = vmatprep.subr.bf16.mxu0 0
      %1892 = vmatpush1.bf16.xpose.msra.mxu0 0
      %1893 = vmatprep.subr.bf16.mxu0 0
      %1894 = vmatpush1.bf16.xpose.msra.mxu0 0
      %1895 = vmatprep.subr.bf16.mxu0 0
      %1896 = vmatpush1.bf16.xpose.msra.mxu0 0
      %1897 = vmatprep.subr.bf16.mxu0 0
      %1898 = vmatpush1.bf16.xpose.msra.mxu0 0
      %1899 = vmatprep.subr.bf16.mxu0 0
      %1900 = vmatpush1.bf16.xpose.msra.mxu0 0
      %1901 = vmatprep.subr.bf16.mxu0 0
      %1902 = vmatpush1.bf16.xpose.msra.mxu0 0
      %1903 = vmatprep.subr.bf16.mxu0 0
      %1904 = vmatpush1.bf16.xpose.msra.mxu0 0
      %1905 = vmatprep.subr.bf16.mxu0 0
      %1906 = vmatpush1.bf16.xpose.msra.mxu0 0
      %1907 = vmatprep.subr.bf16.mxu0 0
      %1908 = vmatpush1.bf16.xpose.msra.mxu0 0
      %1909 = vmatprep.subr.bf16.mxu0 0
      %1910 = vmatpush1.bf16.xpose.msra.mxu0 0
      %1911 = vmatprep.subr.bf16.mxu0 0
      %1912 = vmatpush1.bf16.xpose.msra.mxu0 0
      %1913 = vmatprep.subr.bf16.mxu0 0
      %1914 = vmatpush1.bf16.xpose.msra.mxu0 0
      %1915 = vmatprep.mubr.bf16.mxu0 0
      %1916 = vmatmul.mubr.bf16.gmra.mrb[0].mxu0 %v1878
      %v1917 = vpop.f32.mrb[0].mxu0
      %v1918 = vadd.f32 0.0, %v1917
      %v1919 = vpop.f32.mrb[0].mxu0
      %v1920 = vpop.f32.mrb[0].mxu0
      %v1921 = vadd.f32 0.0, %v1920
      %v1922 = vpop.f32.mrb[0].mxu0
      %1923 = vdwg.mxu0
      %v1924 = vmul.f32 %v1918, 0.125
      %v1925 = vmul.f32 %v1921, 0.125
      %v1926 = vadd.f32 %v1924, %v1375
      %v1927 = vadd.f32 %v1925, %v1375
      %v1928 = vsel %vm1379, %v1926, -inf
      %1929 = vmax.xlane.f32.xlu0 %v1928
      %v1930 = vpop.xlane.xlu0 %1929
      %v1931 = vsel %vm1379, %v1927, -inf
      %1932 = vmax.xlane.f32.xlu0 %v1931
      %v1933 = vpop.xlane.xlu0 %1932
      %v1934 = vsub.f32 %v1926, %v1930
      %v1935 = vsub.f32 %v1927, %v1933
      %v1936 = vmul.f32 %v1934, 1.442695
      %v1937 = vpow.pop %v1936
      %v1938 = vmul.f32 %v1935, 1.442695
      %v1939 = vpow.pop %v1938
      %v1940 = vsel %vm1379, %v1937, 0.0
      %1941 = vadd.xlane.f32.xlu0 %v1940
      %v1942 = vpop.xlane.xlu0 %1941
      %v1943 = vsel %vm1379, %v1939, 0.0
      %1944 = vadd.xlane.f32.xlu0 %v1943
      %v1945 = vpop.xlane.xlu0 %1944
      %v1946 = vrcp.pop %v1942
      %v1947 = vrcp.pop %v1945
      %v1948 = vmul.f32 %v1937, %v1946
      %v1949 = vmul.f32 %v1939, %v1947
      %v1950 = vpack.c.bf16 %v1949, %v1948
      %v1951 = vpack.c.bf16 %v1872, %v1869
      %v1953 = vsel %vm1379, %v1950, 0
      %1955 = vmatprep.subr.bf16.mxu0 0
      %1956 = vmatpush1.bf16.msra.mxu0 %v1951
      %1957 = vmatprep.subr.bf16.mxu0 0
      %1958 = vmatpush1.bf16.msra.mxu0 0
      %1959 = vmatprep.subr.bf16.mxu0 0
      %1960 = vmatpush1.bf16.msra.mxu0 0
      %1961 = vmatprep.subr.bf16.mxu0 0
      %1962 = vmatpush1.bf16.msra.mxu0 0
      %1963 = vmatprep.subr.bf16.mxu0 0
      %1964 = vmatpush1.bf16.msra.mxu0 0
      %1965 = vmatprep.subr.bf16.mxu0 0
      %1966 = vmatpush1.bf16.msra.mxu0 0
      %1967 = vmatprep.subr.bf16.mxu0 0
      %1968 = vmatpush1.bf16.msra.mxu0 0
      %1969 = vmatprep.subr.bf16.mxu0 0
      %1970 = vmatpush1.bf16.msra.mxu0 0
      %1971 = vmatprep.subr.bf16.mxu0 0
      %1972 = vmatpush1.bf16.msra.mxu0 0
      %1973 = vmatprep.subr.bf16.mxu0 0
      %1974 = vmatpush1.bf16.msra.mxu0 0
      %1975 = vmatprep.subr.bf16.mxu0 0
      %1976 = vmatpush1.bf16.msra.mxu0 0
      %1977 = vmatprep.subr.bf16.mxu0 0
      %1978 = vmatpush1.bf16.msra.mxu0 0
      %1979 = vmatprep.subr.bf16.mxu0 0
      %1980 = vmatpush1.bf16.msra.mxu0 0
      %1981 = vmatprep.subr.bf16.mxu0 0
      %1982 = vmatpush1.bf16.msra.mxu0 0
      %1983 = vmatprep.subr.bf16.mxu0 0
      %1984 = vmatpush1.bf16.msra.mxu0 0
      %1985 = vmatprep.subr.bf16.mxu0 0
      %1986 = vmatpush1.bf16.msra.mxu0 0
      %1987 = vmatprep.mubr.bf16.mxu0 0
      %1988 = vmatmul.mubr.bf16.gmra.mrb[0].mxu0 %v1953
      %v1989 = vpop.f32.mrb[0].mxu0
      %v1990 = vadd.f32 0.0, %v1989
      %v1991 = vpop.f32.mrb[0].mxu0
      %v1992 = vpop.f32.mrb[0].mxu0
      %v1993 = vadd.f32 0.0, %v1992
      %v1994 = vpop.f32.mrb[0].mxu0
      %1995 = vdwg.mxu0
      %v1996 = vpack.c.bf16 %v1993, %v1990
      %s1997 = scalar_lea.vmem %s890, 32
      %v1998 = vld [vmem:[%s1997] sm:$0xf]
      %v1999 = vld [vmem:[%s1997 + $0x4] sm:$0xf]
      %v2000 = vld [vmem:[%s1997 + $0x8] sm:$0xf]
      %v2001 = vld [vmem:[%s1997 + $0xc] sm:$0xf]
      %v2002 = vld [vmem:[%s1997 + $0x10] sm:$0xf]
      %v2003 = vld [vmem:[%s1997 + $0x14] sm:$0xf]
      %v2004 = vld [vmem:[%s1997 + $0x18] sm:$0xf]
      %v2005 = vld [vmem:[%s1997 + $0x1c] sm:$0xf]
      %v2014 = vunpack.c.l.b16 %v1998
      %v2015 = vunpack.c.l.b16 %v1999
      %v2016 = vunpack.c.l.b16 %v2000
      %v2017 = vunpack.c.l.b16 %v2001
      %v2018 = vunpack.c.l.b16 %v2002
      %v2019 = vunpack.c.l.b16 %v2003
      %v2020 = vunpack.c.l.b16 %v2004
      %v2021 = vunpack.c.l.b16 %v2005
      %v2022 = vpack.c.b16 %v2015, %v2014
      %v2023 = vpack.c.b16 %v2017, %v2016
      %v2024 = vpack.c.b16 %v2019, %v2018
      %v2025 = vpack.c.b16 %v2021, %v2020
      %v2031 = vsel %vm1321, %v1996, 0
      %2033 = vmatprep.subr.bf16.mxu0 0
      %2034 = vmatpush1.bf16.msra.mxu0 %v2022
      %2035 = vmatprep.subr.bf16.mxu0 0
      %2036 = vmatpush1.bf16.msra.mxu0 %v2023
      %2037 = vmatprep.subr.bf16.mxu0 0
      %2038 = vmatpush1.bf16.msra.mxu0 %v2024
      %2039 = vmatprep.subr.bf16.mxu0 0
      %2040 = vmatpush1.bf16.msra.mxu0 %v2025
      %2041 = vmatprep.subr.bf16.mxu0 0
      %2042 = vmatpush1.bf16.msra.mxu0 0
      %2043 = vmatprep.subr.bf16.mxu0 0
      %2044 = vmatpush1.bf16.msra.mxu0 0
      %2045 = vmatprep.subr.bf16.mxu0 0
      %2046 = vmatpush1.bf16.msra.mxu0 0
      %2047 = vmatprep.subr.bf16.mxu0 0
      %2048 = vmatpush1.bf16.msra.mxu0 0
      %2049 = vmatprep.subr.bf16.mxu0 0
      %2050 = vmatpush1.bf16.msra.mxu0 0
      %2051 = vmatprep.subr.bf16.mxu0 0
      %2052 = vmatpush1.bf16.msra.mxu0 0
      %2053 = vmatprep.subr.bf16.mxu0 0
      %2054 = vmatpush1.bf16.msra.mxu0 0
      %2055 = vmatprep.subr.bf16.mxu0 0
      %2056 = vmatpush1.bf16.msra.mxu0 0
      %2057 = vmatprep.subr.bf16.mxu0 0
      %2058 = vmatpush1.bf16.msra.mxu0 0
      %2059 = vmatprep.subr.bf16.mxu0 0
      %2060 = vmatpush1.bf16.msra.mxu0 0
      %2061 = vmatprep.subr.bf16.mxu0 0
      %2062 = vmatpush1.bf16.msra.mxu0 0
      %2063 = vmatprep.subr.bf16.mxu0 0
      %2064 = vmatpush1.bf16.msra.mxu0 0
      %2065 = vmatprep.mubr.bf16.mxu0 0
      %2066 = vmatmul.mubr.bf16.gmra.mrb[0].mxu0 %v2031
      %v2067 = vpop.f32.mrb[0].mxu0
      %v2068 = vadd.f32 0.0, %v2067
      %v2069 = vpop.f32.mrb[0].mxu0
      %v2070 = vpop.f32.mrb[0].mxu0
      %v2071 = vadd.f32 0.0, %v2070
      %v2072 = vpop.f32.mrb[0].mxu0
      %2073 = vdwg.mxu0
      %v2074 = vadd.f32 %v1531, %v2068
      %v2075 = vadd.f32 %v1532, %v2071
      %v2076 = vadd.f32 %v978, %v2074
      %v2077 = vadd.f32 %v979, %v2075
      %v2078 = vld [vmem:[%s896] sm:$0x1]
      %v2079 = vld [vmem:[%s899] sm:$0x1]
      %2080 = vadd.xlane.f32.xlu0 %v2076
      %v2081 = vpop.xlane.xlu0 %2080
      %2082 = vadd.xlane.f32.xlu0 %v2077
      %v2083 = vpop.xlane.xlu0 %2082
      %v2084 = vrcp.pop 128.0
      %v2085 = vmul.f32 %v2081, %v2084
      %v2086 = vmul.f32 %v2083, %v2084
      %v2087 = vsub.f32 %v2076, %v2085
      %v2088 = vsub.f32 %v2077, %v2086
      %v2089 = vmul.f32 %v2087, %v2087
      %v2090 = vmul.f32 %v2088, %v2088
      %2091 = vadd.xlane.f32.xlu0 %v2089
      %v2092 = vpop.xlane.xlu0 %2091
      %2093 = vadd.xlane.f32.xlu0 %v2090
      %v2094 = vpop.xlane.xlu0 %2093
      %v2095 = vmul.f32 %v2092, %v2084
      %v2096 = vmul.f32 %v2094, %v2084
      %v2097 = vadd.f32 %v2095, 1e-12
      %v2098 = vadd.f32 %v2096, 1e-12
      %v2099 = vrsqrt.pop %v2097
      %v2100 = vrsqrt.pop %v2098
      %v2101 = vmul.f32 %v2087, %v2099
      %v2102 = vmul.f32 %v2088, %v2100
      %v2104 = vlaneseq
      %v2105 = vshrl.u32 %v2104, 7
      %v2106 = vsub.s32 0, %v2105
      %v2107 = vrot.slane %v2078, %v2106
      %v2109 = vmul.f32 %v2101, %v2107
      %v2110 = vmul.f32 %v2102, %v2107
      %v2112 = vlaneseq
      %v2113 = vshrl.u32 %v2112, 7
      %v2114 = vsub.s32 0, %v2113
      %v2115 = vrot.slane %v2079, %v2114
      %v2117 = vadd.f32 %v2109, %v2115
      %v2118 = vadd.f32 %v2110, %v2115
      %v2119 = vpack.c.bf16 %v2118, %v2117
      %v2120 = vld [vmem:[%s904] sm:$0xff]
      %v2121 = vld [vmem:[%s904 + $0x8] sm:$0xff]
      %v2122 = vld [vmem:[%s904 + $0x10] sm:$0xff]
      %v2123 = vld [vmem:[%s904 + $0x18] sm:$0xff]
      %v2124 = vld [vmem:[%s904 + $0x20] sm:$0xff]
      %v2125 = vld [vmem:[%s904 + $0x28] sm:$0xff]
      %v2126 = vld [vmem:[%s904 + $0x30] sm:$0xff]
      %v2127 = vld [vmem:[%s904 + $0x38] sm:$0xff]
      %v2128 = vld [vmem:[%s904 + $0x40] sm:$0xff]
      %v2129 = vld [vmem:[%s904 + $0x48] sm:$0xff]
      %v2130 = vld [vmem:[%s904 + $0x50] sm:$0xff]
      %v2131 = vld [vmem:[%s904 + $0x58] sm:$0xff]
      %v2132 = vld [vmem:[%s904 + $0x60] sm:$0xff]
      %v2133 = vld [vmem:[%s904 + $0x68] sm:$0xff]
      %v2134 = vld [vmem:[%s904 + $0x70] sm:$0xff]
      %v2135 = vld [vmem:[%s904 + $0x78] sm:$0xff]
      %v2136 = vld [vmem:[%s904 + $0x80] sm:$0xff]
      %v2137 = vld [vmem:[%s904 + $0x88] sm:$0xff]
      %v2138 = vld [vmem:[%s904 + $0x90] sm:$0xff]
      %v2139 = vld [vmem:[%s904 + $0x98] sm:$0xff]
      %v2140 = vld [vmem:[%s904 + $0xa0] sm:$0xff]
      %v2141 = vld [vmem:[%s904 + $0xa8] sm:$0xff]
      %v2142 = vld [vmem:[%s904 + $0xb0] sm:$0xff]
      %v2143 = vld [vmem:[%s904 + $0xb8] sm:$0xff]
      %v2144 = vld [vmem:[%s904 + $0xc0] sm:$0xff]
      %v2145 = vld [vmem:[%s904 + $0xc8] sm:$0xff]
      %v2146 = vld [vmem:[%s904 + $0xd0] sm:$0xff]
      %v2147 = vld [vmem:[%s904 + $0xd8] sm:$0xff]
      %v2148 = vld [vmem:[%s904 + $0xe0] sm:$0xff]
      %v2149 = vld [vmem:[%s904 + $0xe8] sm:$0xff]
      %v2150 = vld [vmem:[%s904 + $0xf0] sm:$0xff]
      %v2151 = vld [vmem:[%s904 + $0xf8] sm:$0xff]
      %v2152 = vld [vmem:[%s908] sm:$0xf]
      %v2154 = vlaneseq
      %v2155 = vshrl.u32 %v2154, 7
      %v2156 = vsub.s32 0, %v2155
      %v2157 = vrot.slane %v2152, %v2156
      %v2158 = vlaneseq
      %v2159 = vshrl.u32 %v2158, 7
      %v2160 = vsub.s32 1, %v2159
      %v2161 = vrot.slane %v2152, %v2160
      %v2162 = vlaneseq
      %v2163 = vshrl.u32 %v2162, 7
      %v2164 = vsub.s32 2, %v2163
      %v2165 = vrot.slane %v2152, %v2164
      %v2166 = vlaneseq
      %v2167 = vshrl.u32 %v2166, 7
      %v2168 = vsub.s32 3, %v2167
      %v2169 = vrot.slane %v2152, %v2168
      %v2206 = vunpack.c.l.b16 %v2120
      %v2207 = vunpack.c.h.b16 %v2120
      %v2208 = vunpack.c.l.b16 %v2121
      %v2209 = vunpack.c.h.b16 %v2121
      %v2210 = vunpack.c.l.b16 %v2122
      %v2211 = vunpack.c.h.b16 %v2122
      %v2212 = vunpack.c.l.b16 %v2123
      %v2213 = vunpack.c.h.b16 %v2123
      %v2214 = vunpack.c.l.b16 %v2124
      %v2215 = vunpack.c.h.b16 %v2124
      %v2216 = vunpack.c.l.b16 %v2125
      %v2217 = vunpack.c.h.b16 %v2125
      %v2218 = vunpack.c.l.b16 %v2126
      %v2219 = vunpack.c.h.b16 %v2126
      %v2220 = vunpack.c.l.b16 %v2127
      %v2221 = vunpack.c.h.b16 %v2127
      %v2222 = vunpack.c.l.b16 %v2128
      %v2223 = vunpack.c.h.b16 %v2128
      %v2224 = vunpack.c.l.b16 %v2129
      %v2225 = vunpack.c.h.b16 %v2129
      %v2226 = vunpack.c.l.b16 %v2130
      %v2227 = vunpack.c.h.b16 %v2130
      %v2228 = vunpack.c.l.b16 %v2131
      %v2229 = vunpack.c.h.b16 %v2131
      %v2230 = vunpack.c.l.b16 %v2132
      %v2231 = vunpack.c.h.b16 %v2132
      %v2232 = vunpack.c.l.b16 %v2133
      %v2233 = vunpack.c.h.b16 %v2133
      %v2234 = vunpack.c.l.b16 %v2134
      %v2235 = vunpack.c.h.b16 %v2134
      %v2236 = vunpack.c.l.b16 %v2135
      %v2237 = vunpack.c.h.b16 %v2135
      %v2238 = vunpack.c.l.b16 %v2136
      %v2239 = vunpack.c.h.b16 %v2136
      %v2240 = vunpack.c.l.b16 %v2137
      %v2241 = vunpack.c.h.b16 %v2137
      %v2242 = vunpack.c.l.b16 %v2138
      %v2243 = vunpack.c.h.b16 %v2138
      %v2244 = vunpack.c.l.b16 %v2139
      %v2245 = vunpack.c.h.b16 %v2139
      %v2246 = vunpack.c.l.b16 %v2140
      %v2247 = vunpack.c.h.b16 %v2140
      %v2248 = vunpack.c.l.b16 %v2141
      %v2249 = vunpack.c.h.b16 %v2141
      %v2250 = vunpack.c.l.b16 %v2142
      %v2251 = vunpack.c.h.b16 %v2142
      %v2252 = vunpack.c.l.b16 %v2143
      %v2253 = vunpack.c.h.b16 %v2143
      %v2254 = vunpack.c.l.b16 %v2144
      %v2255 = vunpack.c.h.b16 %v2144
      %v2256 = vunpack.c.l.b16 %v2145
      %v2257 = vunpack.c.h.b16 %v2145
      %v2258 = vunpack.c.l.b16 %v2146
      %v2259 = vunpack.c.h.b16 %v2146
      %v2260 = vunpack.c.l.b16 %v2147
      %v2261 = vunpack.c.h.b16 %v2147
      %v2262 = vunpack.c.l.b16 %v2148
      %v2263 = vunpack.c.h.b16 %v2148
      %v2264 = vunpack.c.l.b16 %v2149
      %v2265 = vunpack.c.h.b16 %v2149
      %v2266 = vunpack.c.l.b16 %v2150
      %v2267 = vunpack.c.h.b16 %v2150
      %v2268 = vunpack.c.l.b16 %v2151
      %v2269 = vunpack.c.h.b16 %v2151
      %v2270 = vpack.c.b16 %v2210, %v2206
      %v2271 = vpack.c.b16 %v2211, %v2207
      %v2272 = vpack.c.b16 %v2212, %v2208
      %v2273 = vpack.c.b16 %v2213, %v2209
      %v2274 = vpack.c.b16 %v2218, %v2214
      %v2275 = vpack.c.b16 %v2219, %v2215
      %v2276 = vpack.c.b16 %v2220, %v2216
      %v2277 = vpack.c.b16 %v2221, %v2217
      %v2278 = vpack.c.b16 %v2226, %v2222
      %v2279 = vpack.c.b16 %v2227, %v2223
      %v2280 = vpack.c.b16 %v2228, %v2224
      %v2281 = vpack.c.b16 %v2229, %v2225
      %v2282 = vpack.c.b16 %v2234, %v2230
      %v2283 = vpack.c.b16 %v2235, %v2231
      %v2284 = vpack.c.b16 %v2236, %v2232
      %v2285 = vpack.c.b16 %v2237, %v2233
      %v2286 = vpack.c.b16 %v2242, %v2238
      %v2287 = vpack.c.b16 %v2243, %v2239
      %v2288 = vpack.c.b16 %v2244, %v2240
      %v2289 = vpack.c.b16 %v2245, %v2241
      %v2290 = vpack.c.b16 %v2250, %v2246
      %v2291 = vpack.c.b16 %v2251, %v2247
      %v2292 = vpack.c.b16 %v2252, %v2248
      %v2293 = vpack.c.b16 %v2253, %v2249
      %v2294 = vpack.c.b16 %v2258, %v2254
      %v2295 = vpack.c.b16 %v2259, %v2255
      %v2296 = vpack.c.b16 %v2260, %v2256
      %v2297 = vpack.c.b16 %v2261, %v2257
      %v2298 = vpack.c.b16 %v2266, %v2262
      %v2299 = vpack.c.b16 %v2267, %v2263
      %v2300 = vpack.c.b16 %v2268, %v2264
      %v2301 = vpack.c.b16 %v2269, %v2265
      %2334 = vmatprep.subr.bf16.mxu0 %v2271
      %2335 = vmatpush1.bf16.msra.mxu0 %v2270
      %2336 = vmatprep.subr.bf16.mxu0 %v2275
      %2337 = vmatpush1.bf16.msra.mxu0 %v2274
      %2338 = vmatprep.subr.bf16.mxu0 %v2279
      %2339 = vmatpush1.bf16.msra.mxu0 %v2278
      %2340 = vmatprep.subr.bf16.mxu0 %v2283
      %2341 = vmatpush1.bf16.msra.mxu0 %v2282
      %2342 = vmatprep.subr.bf16.mxu0 %v2287
      %2343 = vmatpush1.bf16.msra.mxu0 %v2286
      %2344 = vmatprep.subr.bf16.mxu0 %v2291
      %2345 = vmatpush1.bf16.msra.mxu0 %v2290
      %2346 = vmatprep.subr.bf16.mxu0 %v2295
      %2347 = vmatpush1.bf16.msra.mxu0 %v2294
      %2348 = vmatprep.subr.bf16.mxu0 %v2299
      %2349 = vmatpush1.bf16.msra.mxu0 %v2298
      %2350 = vmatprep.subr.bf16.mxu0 0
      %2351 = vmatpush1.bf16.msra.mxu0 0
      %2352 = vmatprep.subr.bf16.mxu0 0
      %2353 = vmatpush1.bf16.msra.mxu0 0
      %2354 = vmatprep.subr.bf16.mxu0 0
      %2355 = vmatpush1.bf16.msra.mxu0 0
      %2356 = vmatprep.subr.bf16.mxu0 0
      %2357 = vmatpush1.bf16.msra.mxu0 0
      %2358 = vmatprep.subr.bf16.mxu0 0
      %2359 = vmatpush1.bf16.msra.mxu0 0
      %2360 = vmatprep.subr.bf16.mxu0 0
      %2361 = vmatpush1.bf16.msra.mxu0 0
      %2362 = vmatprep.subr.bf16.mxu0 0
      %2363 = vmatpush1.bf16.msra.mxu0 0
      %2364 = vmatprep.subr.bf16.mxu0 0
      %2365 = vmatpush1.bf16.msra.mxu0 0
      %2366 = vmatprep.mubr.bf16.mxu0 0
      %2367 = vmatmul.mubr.bf16.gmra.mrb[0].mxu0 %v2119
      %v2368 = vpop.f32.mrb[0].mxu0
      %v2369 = vadd.f32 %v2157, %v2368
      %v2370 = vpop.f32.mrb[0].mxu0
      %v2371 = vadd.f32 %v2161, %v2370
      %v2372 = vpop.f32.mrb[0].mxu0
      %v2373 = vadd.f32 %v2157, %v2372
      %v2374 = vpop.f32.mrb[0].mxu0
      %v2375 = vadd.f32 %v2161, %v2374
      %2376 = vdwg.mxu0
      %2377 = vmatprep.subr.bf16.mxu0 %v2273
      %2378 = vmatpush1.bf16.msra.mxu0 %v2272
      %2379 = vmatprep.subr.bf16.mxu0 %v2277
      %2380 = vmatpush1.bf16.msra.mxu0 %v2276
      %2381 = vmatprep.subr.bf16.mxu0 %v2281
      %2382 = vmatpush1.bf16.msra.mxu0 %v2280
      %2383 = vmatprep.subr.bf16.mxu0 %v2285
      %2384 = vmatpush1.bf16.msra.mxu0 %v2284
      %2385 = vmatprep.subr.bf16.mxu0 %v2289
      %2386 = vmatpush1.bf16.msra.mxu0 %v2288
      %2387 = vmatprep.subr.bf16.mxu0 %v2293
      %2388 = vmatpush1.bf16.msra.mxu0 %v2292
      %2389 = vmatprep.subr.bf16.mxu0 %v2297
      %2390 = vmatpush1.bf16.msra.mxu0 %v2296
      %2391 = vmatprep.subr.bf16.mxu0 %v2301
      %2392 = vmatpush1.bf16.msra.mxu0 %v2300
      %2393 = vmatprep.subr.bf16.mxu0 0
      %2394 = vmatpush1.bf16.msra.mxu0 0
      %2395 = vmatprep.subr.bf16.mxu0 0
      %2396 = vmatpush1.bf16.msra.mxu0 0
      %2397 = vmatprep.subr.bf16.mxu0 0
      %2398 = vmatpush1.bf16.msra.mxu0 0
      %2399 = vmatprep.subr.bf16.mxu0 0
      %2400 = vmatpush1.bf16.msra.mxu0 0
      %2401 = vmatprep.subr.bf16.mxu0 0
      %2402 = vmatpush1.bf16.msra.mxu0 0
      %2403 = vmatprep.subr.bf16.mxu0 0
      %2404 = vmatpush1.bf16.msra.mxu0 0
      %2405 = vmatprep.subr.bf16.mxu0 0
      %2406 = vmatpush1.bf16.msra.mxu0 0
      %2407 = vmatprep.subr.bf16.mxu0 0
      %2408 = vmatpush1.bf16.msra.mxu0 0
      %2409 = vmatprep.mubr.bf16.mxu0 0
      %2410 = vmatmul.mubr.bf16.gmra.mrb[0].mxu0 %v2119
      %v2411 = vpop.f32.mrb[0].mxu0
      %v2412 = vadd.f32 %v2165, %v2411
      %v2413 = vpop.f32.mrb[0].mxu0
      %v2414 = vadd.f32 %v2169, %v2413
      %v2415 = vpop.f32.mrb[0].mxu0
      %v2416 = vadd.f32 %v2165, %v2415
      %v2417 = vpop.f32.mrb[0].mxu0
      %v2418 = vadd.f32 %v2169, %v2417
      %2419 = vdwg.mxu0
      %v2420 = vmul.f32 %v2369, 0.5
      %v2421 = vmul.f32 %v2371, 0.5
      %v2422 = vmul.f32 %v2412, 0.5
      %v2423 = vmul.f32 %v2414, 0.5
      %v2424 = vmul.f32 %v2373, 0.5
      %v2425 = vmul.f32 %v2375, 0.5
      %v2426 = vmul.f32 %v2416, 0.5
      %v2427 = vmul.f32 %v2418, 0.5
      %v2428 = vmul.f32 %v2369, 0.044715
      %v2429 = vmul.f32 %v2371, 0.044715
      %v2430 = vmul.f32 %v2412, 0.044715
      %v2431 = vmul.f32 %v2414, 0.044715
      %v2432 = vmul.f32 %v2373, 0.044715
      %v2433 = vmul.f32 %v2375, 0.044715
      %v2434 = vmul.f32 %v2416, 0.044715
      %v2435 = vmul.f32 %v2418, 0.044715
      %v2436 = vmul.f32 %v2428, %v2369
      %v2437 = vmul.f32 %v2429, %v2371
      %v2438 = vmul.f32 %v2430, %v2412
      %v2439 = vmul.f32 %v2431, %v2414
      %v2440 = vmul.f32 %v2432, %v2373
      %v2441 = vmul.f32 %v2433, %v2375
      %v2442 = vmul.f32 %v2434, %v2416
      %v2443 = vmul.f32 %v2435, %v2418
      %v2444 = vmul.f32 %v2436, %v2369
      %v2445 = vmul.f32 %v2437, %v2371
      %v2446 = vmul.f32 %v2438, %v2412
      %v2447 = vmul.f32 %v2439, %v2414
      %v2448 = vmul.f32 %v2440, %v2373
      %v2449 = vmul.f32 %v2441, %v2375
      %v2450 = vmul.f32 %v2442, %v2416
      %v2451 = vmul.f32 %v2443, %v2418
      %v2452 = vadd.f32 %v2369, %v2444
      %v2453 = vadd.f32 %v2371, %v2445
      %v2454 = vadd.f32 %v2412, %v2446
      %v2455 = vadd.f32 %v2414, %v2447
      %v2456 = vadd.f32 %v2373, %v2448
      %v2457 = vadd.f32 %v2375, %v2449
      %v2458 = vadd.f32 %v2416, %v2450
      %v2459 = vadd.f32 %v2418, %v2451
      %v2460 = vmul.f32 %v2452, 0.7978846
      %v2461 = vmul.f32 %v2453, 0.7978846
      %v2462 = vmul.f32 %v2454, 0.7978846
      %v2463 = vmul.f32 %v2455, 0.7978846
      %v2464 = vmul.f32 %v2456, 0.7978846
      %v2465 = vmul.f32 %v2457, 0.7978846
      %v2466 = vmul.f32 %v2458, 0.7978846
      %v2467 = vmul.f32 %v2459, 0.7978846
      %v2468 = vtanh.pop %v2460
      %v2469 = vtanh.pop %v2461
      %v2470 = vtanh.pop %v2462
      %v2471 = vtanh.pop %v2463
      %v2472 = vtanh.pop %v2464
      %v2473 = vtanh.pop %v2465
      %v2474 = vtanh.pop %v2466
      %v2475 = vtanh.pop %v2467
      %v2476 = vadd.f32 %v2468, 1.0
      %v2477 = vadd.f32 %v2469, 1.0
      %v2478 = vadd.f32 %v2470, 1.0
      %v2479 = vadd.f32 %v2471, 1.0
      %v2480 = vadd.f32 %v2472, 1.0
      %v2481 = vadd.f32 %v2473, 1.0
      %v2482 = vadd.f32 %v2474, 1.0
      %v2483 = vadd.f32 %v2475, 1.0
      %v2484 = vmul.f32 %v2420, %v2476
      %v2485 = vmul.f32 %v2421, %v2477
      %v2486 = vmul.f32 %v2422, %v2478
      %v2487 = vmul.f32 %v2423, %v2479
      %v2488 = vmul.f32 %v2424, %v2480
      %v2489 = vmul.f32 %v2425, %v2481
      %v2490 = vmul.f32 %v2426, %v2482
      %v2491 = vmul.f32 %v2427, %v2483
      %v2492 = vpack.c.bf16 %v2488, %v2484
      %v2493 = vpack.c.bf16 %v2489, %v2485
      %v2494 = vpack.c.bf16 %v2490, %v2486
      %v2495 = vpack.c.bf16 %v2491, %v2487
      %v2496 = vld [vmem:[%s913] sm:$0xf]
      %v2497 = vld [vmem:[%s913 + $0x4] sm:$0xf]
      %v2498 = vld [vmem:[%s913 + $0x8] sm:$0xf]
      %v2499 = vld [vmem:[%s913 + $0xc] sm:$0xf]
      %v2500 = vld [vmem:[%s913 + $0x10] sm:$0xf]
      %v2501 = vld [vmem:[%s913 + $0x14] sm:$0xf]
      %v2502 = vld [vmem:[%s913 + $0x18] sm:$0xf]
      %v2503 = vld [vmem:[%s913 + $0x1c] sm:$0xf]
      %v2504 = vld [vmem:[%s913 + $0x20] sm:$0xf]
      %v2505 = vld [vmem:[%s913 + $0x24] sm:$0xf]
      %v2506 = vld [vmem:[%s913 + $0x28] sm:$0xf]
      %v2507 = vld [vmem:[%s913 + $0x2c] sm:$0xf]
      %v2508 = vld [vmem:[%s913 + $0x30] sm:$0xf]
      %v2509 = vld [vmem:[%s913 + $0x34] sm:$0xf]
      %v2510 = vld [vmem:[%s913 + $0x38] sm:$0xf]
      %v2511 = vld [vmem:[%s913 + $0x3c] sm:$0xf]
      %v2512 = vld [vmem:[%s913 + $0x40] sm:$0xf]
      %v2513 = vld [vmem:[%s913 + $0x44] sm:$0xf]
      %v2514 = vld [vmem:[%s913 + $0x48] sm:$0xf]
      %v2515 = vld [vmem:[%s913 + $0x4c] sm:$0xf]
      %v2516 = vld [vmem:[%s913 + $0x50] sm:$0xf]
      %v2517 = vld [vmem:[%s913 + $0x54] sm:$0xf]
      %v2518 = vld [vmem:[%s913 + $0x58] sm:$0xf]
      %v2519 = vld [vmem:[%s913 + $0x5c] sm:$0xf]
      %v2520 = vld [vmem:[%s913 + $0x60] sm:$0xf]
      %v2521 = vld [vmem:[%s913 + $0x64] sm:$0xf]
      %v2522 = vld [vmem:[%s913 + $0x68] sm:$0xf]
      %v2523 = vld [vmem:[%s913 + $0x6c] sm:$0xf]
      %v2524 = vld [vmem:[%s913 + $0x70] sm:$0xf]
      %v2525 = vld [vmem:[%s913 + $0x74] sm:$0xf]
      %v2526 = vld [vmem:[%s913 + $0x78] sm:$0xf]
      %v2527 = vld [vmem:[%s913 + $0x7c] sm:$0xf]
      %v2528 = vld [vmem:[%s913 + $0x80] sm:$0xf]
      %v2529 = vld [vmem:[%s913 + $0x84] sm:$0xf]
      %v2530 = vld [vmem:[%s913 + $0x88] sm:$0xf]
      %v2531 = vld [vmem:[%s913 + $0x8c] sm:$0xf]
      %v2532 = vld [vmem:[%s913 + $0x90] sm:$0xf]
      %v2533 = vld [vmem:[%s913 + $0x94] sm:$0xf]
      %v2534 = vld [vmem:[%s913 + $0x98] sm:$0xf]
      %v2535 = vld [vmem:[%s913 + $0x9c] sm:$0xf]
      %v2536 = vld [vmem:[%s913 + $0xa0] sm:$0xf]
      %v2537 = vld [vmem:[%s913 + $0xa4] sm:$0xf]
      %v2538 = vld [vmem:[%s913 + $0xa8] sm:$0xf]
      %v2539 = vld [vmem:[%s913 + $0xac] sm:$0xf]
      %v2540 = vld [vmem:[%s913 + $0xb0] sm:$0xf]
      %v2541 = vld [vmem:[%s913 + $0xb4] sm:$0xf]
      %v2542 = vld [vmem:[%s913 + $0xb8] sm:$0xf]
      %v2543 = vld [vmem:[%s913 + $0xbc] sm:$0xf]
      %v2544 = vld [vmem:[%s913 + $0xc0] sm:$0xf]
      %v2545 = vld [vmem:[%s913 + $0xc4] sm:$0xf]
      %v2546 = vld [vmem:[%s913 + $0xc8] sm:$0xf]
      %v2547 = vld [vmem:[%s913 + $0xcc] sm:$0xf]
      %v2548 = vld [vmem:[%s913 + $0xd0] sm:$0xf]
      %v2549 = vld [vmem:[%s913 + $0xd4] sm:$0xf]
      %v2550 = vld [vmem:[%s913 + $0xd8] sm:$0xf]
      %v2551 = vld [vmem:[%s913 + $0xdc] sm:$0xf]
      %v2552 = vld [vmem:[%s913 + $0xe0] sm:$0xf]
      %v2553 = vld [vmem:[%s913 + $0xe4] sm:$0xf]
      %v2554 = vld [vmem:[%s913 + $0xe8] sm:$0xf]
      %v2555 = vld [vmem:[%s913 + $0xec] sm:$0xf]
      %v2556 = vld [vmem:[%s913 + $0xf0] sm:$0xf]
      %v2557 = vld [vmem:[%s913 + $0xf4] sm:$0xf]
      %v2558 = vld [vmem:[%s913 + $0xf8] sm:$0xf]
      %v2559 = vld [vmem:[%s913 + $0xfc] sm:$0xf]
      %v2560 = vld [vmem:[%s916] sm:$0x1]
      %v2562 = vlaneseq
      %v2563 = vshrl.u32 %v2562, 7
      %v2564 = vsub.s32 0, %v2563
      %v2565 = vrot.slane %v2560, %v2564
      %v2631 = vunpack.c.l.b16 %v2496
      %v2632 = vunpack.c.l.b16 %v2497
      %v2633 = vunpack.c.l.b16 %v2498
      %v2634 = vunpack.c.l.b16 %v2499
      %v2635 = vunpack.c.l.b16 %v2500
      %v2636 = vunpack.c.l.b16 %v2501
      %v2637 = vunpack.c.l.b16 %v2502
      %v2638 = vunpack.c.l.b16 %v2503
      %v2639 = vunpack.c.l.b16 %v2504
      %v2640 = vunpack.c.l.b16 %v2505
      %v2641 = vunpack.c.l.b16 %v2506
      %v2642 = vunpack.c.l.b16 %v2507
      %v2643 = vunpack.c.l.b16 %v2508
      %v2644 = vunpack.c.l.b16 %v2509
      %v2645 = vunpack.c.l.b16 %v2510
      %v2646 = vunpack.c.l.b16 %v2511
      %v2647 = vunpack.c.l.b16 %v2512
      %v2648 = vunpack.c.l.b16 %v2513
      %v2649 = vunpack.c.l.b16 %v2514
      %v2650 = vunpack.c.l.b16 %v2515
      %v2651 = vunpack.c.l.b16 %v2516
      %v2652 = vunpack.c.l.b16 %v2517
      %v2653 = vunpack.c.l.b16 %v2518
      %v2654 = vunpack.c.l.b16 %v2519
      %v2655 = vunpack.c.l.b16 %v2520
      %v2656 = vunpack.c.l.b16 %v2521
      %v2657 = vunpack.c.l.b16 %v2522
      %v2658 = vunpack.c.l.b16 %v2523
      %v2659 = vunpack.c.l.b16 %v2524
      %v2660 = vunpack.c.l.b16 %v2525
      %v2661 = vunpack.c.l.b16 %v2526
      %v2662 = vunpack.c.l.b16 %v2527
      %v2663 = vunpack.c.l.b16 %v2528
      %v2664 = vunpack.c.l.b16 %v2529
      %v2665 = vunpack.c.l.b16 %v2530
      %v2666 = vunpack.c.l.b16 %v2531
      %v2667 = vunpack.c.l.b16 %v2532
      %v2668 = vunpack.c.l.b16 %v2533
      %v2669 = vunpack.c.l.b16 %v2534
      %v2670 = vunpack.c.l.b16 %v2535
      %v2671 = vunpack.c.l.b16 %v2536
      %v2672 = vunpack.c.l.b16 %v2537
      %v2673 = vunpack.c.l.b16 %v2538
      %v2674 = vunpack.c.l.b16 %v2539
      %v2675 = vunpack.c.l.b16 %v2540
      %v2676 = vunpack.c.l.b16 %v2541
      %v2677 = vunpack.c.l.b16 %v2542
      %v2678 = vunpack.c.l.b16 %v2543
      %v2679 = vunpack.c.l.b16 %v2544
      %v2680 = vunpack.c.l.b16 %v2545
      %v2681 = vunpack.c.l.b16 %v2546
      %v2682 = vunpack.c.l.b16 %v2547
      %v2683 = vunpack.c.l.b16 %v2548
      %v2684 = vunpack.c.l.b16 %v2549
      %v2685 = vunpack.c.l.b16 %v2550
      %v2686 = vunpack.c.l.b16 %v2551
      %v2687 = vunpack.c.l.b16 %v2552
      %v2688 = vunpack.c.l.b16 %v2553
      %v2689 = vunpack.c.l.b16 %v2554
      %v2690 = vunpack.c.l.b16 %v2555
      %v2691 = vunpack.c.l.b16 %v2556
      %v2692 = vunpack.c.l.b16 %v2557
      %v2693 = vunpack.c.l.b16 %v2558
      %v2694 = vunpack.c.l.b16 %v2559
      %v2695 = vpack.c.b16 %v2632, %v2631
      %v2696 = vpack.c.b16 %v2634, %v2633
      %v2697 = vpack.c.b16 %v2636, %v2635
      %v2698 = vpack.c.b16 %v2638, %v2637
      %v2699 = vpack.c.b16 %v2640, %v2639
      %v2700 = vpack.c.b16 %v2642, %v2641
      %v2701 = vpack.c.b16 %v2644, %v2643
      %v2702 = vpack.c.b16 %v2646, %v2645
      %v2703 = vpack.c.b16 %v2648, %v2647
      %v2704 = vpack.c.b16 %v2650, %v2649
      %v2705 = vpack.c.b16 %v2652, %v2651
      %v2706 = vpack.c.b16 %v2654, %v2653
      %v2707 = vpack.c.b16 %v2656, %v2655
      %v2708 = vpack.c.b16 %v2658, %v2657
      %v2709 = vpack.c.b16 %v2660, %v2659
      %v2710 = vpack.c.b16 %v2662, %v2661
      %v2711 = vpack.c.b16 %v2664, %v2663
      %v2712 = vpack.c.b16 %v2666, %v2665
      %v2713 = vpack.c.b16 %v2668, %v2667
      %v2714 = vpack.c.b16 %v2670, %v2669
      %v2715 = vpack.c.b16 %v2672, %v2671
      %v2716 = vpack.c.b16 %v2674, %v2673
      %v2717 = vpack.c.b16 %v2676, %v2675
      %v2718 = vpack.c.b16 %v2678, %v2677
      %v2719 = vpack.c.b16 %v2680, %v2679
      %v2720 = vpack.c.b16 %v2682, %v2681
      %v2721 = vpack.c.b16 %v2684, %v2683
      %v2722 = vpack.c.b16 %v2686, %v2685
      %v2723 = vpack.c.b16 %v2688, %v2687
      %v2724 = vpack.c.b16 %v2690, %v2689
      %v2725 = vpack.c.b16 %v2692, %v2691
      %v2726 = vpack.c.b16 %v2694, %v2693
      %2759 = vmatprep.subr.bf16.mxu0 0
      %2760 = vmatpush1.bf16.msra.mxu0 %v2695
      %2761 = vmatprep.subr.bf16.mxu0 0
      %2762 = vmatpush1.bf16.msra.mxu0 %v2696
      %2763 = vmatprep.subr.bf16.mxu0 0
      %2764 = vmatpush1.bf16.msra.mxu0 %v2697
      %2765 = vmatprep.subr.bf16.mxu0 0
      %2766 = vmatpush1.bf16.msra.mxu0 %v2698
      %2767 = vmatprep.subr.bf16.mxu0 0
      %2768 = vmatpush1.bf16.msra.mxu0 %v2699
      %2769 = vmatprep.subr.bf16.mxu0 0
      %2770 = vmatpush1.bf16.msra.mxu0 %v2700
      %2771 = vmatprep.subr.bf16.mxu0 0
      %2772 = vmatpush1.bf16.msra.mxu0 %v2701
      %2773 = vmatprep.subr.bf16.mxu0 0
      %2774 = vmatpush1.bf16.msra.mxu0 %v2702
      %2775 = vmatprep.subr.bf16.mxu0 0
      %2776 = vmatpush1.bf16.msra.mxu0 %v2703
      %2777 = vmatprep.subr.bf16.mxu0 0
      %2778 = vmatpush1.bf16.msra.mxu0 %v2704
      %2779 = vmatprep.subr.bf16.mxu0 0
      %2780 = vmatpush1.bf16.msra.mxu0 %v2705
      %2781 = vmatprep.subr.bf16.mxu0 0
      %2782 = vmatpush1.bf16.msra.mxu0 %v2706
      %2783 = vmatprep.subr.bf16.mxu0 0
      %2784 = vmatpush1.bf16.msra.mxu0 %v2707
      %2785 = vmatprep.subr.bf16.mxu0 0
      %2786 = vmatpush1.bf16.msra.mxu0 %v2708
      %2787 = vmatprep.subr.bf16.mxu0 0
      %2788 = vmatpush1.bf16.msra.mxu0 %v2709
      %2789 = vmatprep.subr.bf16.mxu0 0
      %2790 = vmatpush1.bf16.msra.mxu0 %v2710
      %2791 = vmatprep.mubr.bf16.mxu0 %v2493
      %2792 = vmatmul.mubr.bf16.gmra.mrb[0].mxu0 %v2492
      %v2793 = vpop.f32.mrb[0].mxu0
      %v2794 = vadd.f32 %v2565, %v2793
      %v2795 = vpop.f32.mrb[0].mxu0
      %v2796 = vpop.f32.mrb[0].mxu0
      %v2797 = vadd.f32 %v2565, %v2796
      %v2798 = vpop.f32.mrb[0].mxu0
      %2799 = vdwg.mxu0
      %2800 = vmatprep.subr.bf16.mxu0 0
      %2801 = vmatpush1.bf16.msra.mxu0 %v2711
      %2802 = vmatprep.subr.bf16.mxu0 0
      %2803 = vmatpush1.bf16.msra.mxu0 %v2712
      %2804 = vmatprep.subr.bf16.mxu0 0
      %2805 = vmatpush1.bf16.msra.mxu0 %v2713
      %2806 = vmatprep.subr.bf16.mxu0 0
      %2807 = vmatpush1.bf16.msra.mxu0 %v2714
      %2808 = vmatprep.subr.bf16.mxu0 0
      %2809 = vmatpush1.bf16.msra.mxu0 %v2715
      %2810 = vmatprep.subr.bf16.mxu0 0
      %2811 = vmatpush1.bf16.msra.mxu0 %v2716
      %2812 = vmatprep.subr.bf16.mxu0 0
      %2813 = vmatpush1.bf16.msra.mxu0 %v2717
      %2814 = vmatprep.subr.bf16.mxu0 0
      %2815 = vmatpush1.bf16.msra.mxu0 %v2718
      %2816 = vmatprep.subr.bf16.mxu0 0
      %2817 = vmatpush1.bf16.msra.mxu0 %v2719
      %2818 = vmatprep.subr.bf16.mxu0 0
      %2819 = vmatpush1.bf16.msra.mxu0 %v2720
      %2820 = vmatprep.subr.bf16.mxu0 0
      %2821 = vmatpush1.bf16.msra.mxu0 %v2721
      %2822 = vmatprep.subr.bf16.mxu0 0
      %2823 = vmatpush1.bf16.msra.mxu0 %v2722
      %2824 = vmatprep.subr.bf16.mxu0 0
      %2825 = vmatpush1.bf16.msra.mxu0 %v2723
      %2826 = vmatprep.subr.bf16.mxu0 0
      %2827 = vmatpush1.bf16.msra.mxu0 %v2724
      %2828 = vmatprep.subr.bf16.mxu0 0
      %2829 = vmatpush1.bf16.msra.mxu0 %v2725
      %2830 = vmatprep.subr.bf16.mxu0 0
      %2831 = vmatpush1.bf16.msra.mxu0 %v2726
      %2832 = vmatprep.mubr.bf16.mxu0 %v2495
      %2833 = vmatmul.mubr.bf16.gmra.mrb[0].mxu0 %v2494
      %v2834 = vpop.f32.mrb[0].mxu0
      %v2835 = vadd.f32 %v2794, %v2834
      %v2836 = vpop.f32.mrb[0].mxu0
      %v2837 = vpop.f32.mrb[0].mxu0
      %v2838 = vadd.f32 %v2797, %v2837
      %v2839 = vpop.f32.mrb[0].mxu0
      %2840 = vdwg.mxu0
      %v2841 = vadd.f32 %v2117, %v2835
      %v2842 = vadd.f32 %v2118, %v2838
      %v2843 = vld [vmem:[%s919] sm:$0x1]
      %v2844 = vld [vmem:[%s922] sm:$0x1]
      %2845 = vadd.xlane.f32.xlu0 %v2841
      %v2846 = vpop.xlane.xlu0 %2845
      %2847 = vadd.xlane.f32.xlu0 %v2842
      %v2848 = vpop.xlane.xlu0 %2847
      %v2849 = vmul.f32 %v2846, %v2084
      %v2850 = vmul.f32 %v2848, %v2084
      %v2851 = vsub.f32 %v2841, %v2849
      %v2852 = vsub.f32 %v2842, %v2850
      %v2853 = vmul.f32 %v2851, %v2851
      %v2854 = vmul.f32 %v2852, %v2852
      %2855 = vadd.xlane.f32.xlu0 %v2853
      %v2856 = vpop.xlane.xlu0 %2855
      %2857 = vadd.xlane.f32.xlu0 %v2854
      %v2858 = vpop.xlane.xlu0 %2857
      %v2859 = vmul.f32 %v2856, %v2084
      %v2860 = vmul.f32 %v2858, %v2084
      %v2861 = vadd.f32 %v2859, 1e-12
      %v2862 = vadd.f32 %v2860, 1e-12
      %v2863 = vrsqrt.pop %v2861
      %v2864 = vrsqrt.pop %v2862
      %v2865 = vmul.f32 %v2851, %v2863
      %v2866 = vmul.f32 %v2852, %v2864
      %v2868 = vlaneseq
      %v2869 = vshrl.u32 %v2868, 7
      %v2870 = vsub.s32 0, %v2869
      %v2871 = vrot.slane %v2843, %v2870
      %v2873 = vmul.f32 %v2865, %v2871
      %v2874 = vmul.f32 %v2866, %v2871
      %v2876 = vlaneseq
      %v2877 = vshrl.u32 %v2876, 7
      %v2878 = vsub.s32 0, %v2877
      %v2879 = vrot.slane %v2844, %v2878
      %v2881 = vadd.f32 %v2873, %v2879
      %v2882 = vadd.f32 %v2874, %v2879
      %2883 = vst [vmem:[%s927] sm:$0xff] %v2881
      %2884 = vst [vmem:[%s927 + $0x8] sm:$0xff] %v2882
      %p2885 = scmp.lt.s32.totalorder %s35, 1
      %s2886 = scalar_select %p2885, %s35, 1
      %s2887 = smul.addr %s2886, 2
      %s2888 = smul.addr %s2887, 8
      %s2889 = scalar_lea.vmem %s20, %s2888
      // Predicated region
      $region105: #{bert_cls_forward.1} parent=99 // pred_check
        %p2890 = pneg %p571
      $region106: #{bert_cls_forward.1} parent=99 // pred_check_branch
        %2892 = sbr.rel (%p2890) target = $region108
      $region107: #{bert_cls_forward.1} parent=99 // pred_region
        _
      $region108: #{bert_cls_forward.1} parent=99 // pred_fallthru
        _
    $region100: #{bert_cls_forward.1} parent=5 // pred_fallthru
      _
    %p2893 = scmp.le.s32.totalorder 2, %s26
    // Predicated region
    $region109: #{bert_cls_forward.1} parent=5 // pred_check
      %p2894 = pneg %p2893
    $region110: #{bert_cls_forward.1} parent=5 // pred_check_branch
      %2896 = sbr.rel (%p2894) target = $region112
    $region111: #{bert_cls_forward.1} parent=5 // pred_region
      %s2897 = ssub.s32 %s26, 2
      // Predicated region
      $region113: #{bert_cls_forward.1} parent=111 // pred_check
        %p2898 = pneg %p577
      $region114: #{bert_cls_forward.1} parent=111 // pred_check_branch
        %2900 = sbr.rel (%p2898) target = $region116
      $region115: #{bert_cls_forward.1} parent=111 // pred_region
        %p2901 = scmp.lt.s32.totalorder %s37, 1
        %s2902 = scalar_select %p2901, %s37, 1
        %s2903 = smul.addr %s2902, 2
        %s2904 = smul.addr %s2903, 8
        %s2905 = scalar_lea.vmem %s20, %s2904
      $region116: #{bert_cls_forward.1} parent=111 // pred_fallthru
        _
    $region112: #{bert_cls_forward.1} parent=5 // pred_fallthru
      _
  $region6: #{bert_cls_forward.1} parent=0 // loop_footer
    %s30 = sadd.s32 1, %s26
  $region7: #{bert_cls_forward.1} parent=0 // loop_footer_branch
    %25 = sbr.rel target = $region3
  $region8: #{bert_cls_forward.1} parent=0 // loop_exit
    _

</llo_original>
